<compile_context>
chip_gen: v6e
topology: v6e:2x2x1
jax: 0.10.0
libtpu: 0.0.40
codegen_flags: <defaults>
</compile_context>

<pallas_src>
import functools

import jax
import jax.numpy as jnp
from jax.experimental import pallas as pl
from jax.experimental.pallas import tpu as pltpu


# ----------------------------- tiled linear -------------------------------- #
def _matmul_kernel(x_ref, w_ref, o_ref, acc_ref):
    @pl.when(pl.program_id(2) == 0)
    def _():
        acc_ref[...] = jnp.zeros_like(acc_ref)

    acc_ref[...] += jnp.dot(x_ref[...], w_ref[...],
                            preferred_element_type=jnp.float32)

    @pl.when(pl.program_id(2) == pl.num_programs(2) - 1)
    def _():
        o_ref[...] = acc_ref[...].astype(o_ref.dtype)


def _matmul_bias_kernel(x_ref, w_ref, b_ref, o_ref, acc_ref):
    @pl.when(pl.program_id(2) == 0)
    def _():
        acc_ref[...] = jnp.zeros_like(acc_ref)

    acc_ref[...] += jnp.dot(x_ref[...], w_ref[...],
                            preferred_element_type=jnp.float32)

    @pl.when(pl.program_id(2) == pl.num_programs(2) - 1)
    def _():
        o_ref[...] = (acc_ref[...]
                      + b_ref[...].astype(jnp.float32)).astype(o_ref.dtype)


def _fit_tile(dim, target, align):
    """Largest tile <= target that is a multiple of `align` and divides `dim`.

    Falls back to the full dimension (always a legal block shape)."""
    if dim <= target:
        return dim
    t = (target // align) * align
    while t >= align:
        if dim % t == 0:
            return t
        t -= align
    return dim


def linear_pallas(x2d, w, b=None, *, tm=256, tn=256, tk=512):
    """x2d: (M, K) @ w: (K, N) [+ b: (1, N)] -> (M, N), f32 accumulation.

    Tiles are capped so double-buffered inputs + output + scratch stay well
    under v7x's 32 MiB default scoped VMEM."""
    M, K = x2d.shape
    K2, N = w.shape
    assert K == K2
    tm = _fit_tile(M, tm, 8)
    tn = _fit_tile(N, tn, 128)
    tk = _fit_tile(K, tk, 128)
    grid = (M // tm, N // tn, K // tk)

    in_specs = [
        pl.BlockSpec((tm, tk), lambda i, j, k: (i, k)),
        pl.BlockSpec((tk, tn), lambda i, j, k: (k, j)),
    ]
    args = (x2d, w)
    kernel = _matmul_kernel
    if b is not None:
        in_specs.append(pl.BlockSpec((1, tn), lambda i, j, k: (0, j)))
        args = (x2d, w, b)
        kernel = _matmul_bias_kernel

    return pl.pallas_call(
        kernel,
        out_shape=jax.ShapeDtypeStruct((M, N), x2d.dtype),
        grid=grid,
        in_specs=in_specs,
        out_specs=pl.BlockSpec((tm, tn), lambda i, j, k: (i, j)),
        scratch_shapes=[pltpu.VMEM((tm, tn), jnp.float32)],
        compiler_params=pltpu.CompilerParams(
            dimension_semantics=("parallel", "parallel", "arbitrary")),
    )(*args)


# --------------------------- attention kernel ------------------------------ #
def _attn_kernel(q_ref, k_ref, v_ref, sin_ref, cos_ref, out_ref, attn_ref,
                 *, scale, heads):
    # Block shapes (one batch element per grid step):
    #   q/k/v : (N, H, Dh)    sin/cos : (N, Dh)
    #   out   : (N, H, Dh)    attn    : (H, N, N)
    sin = sin_ref[...]
    cos = cos_ref[...]
    dh = sin.shape[-1]
    parity = jax.lax.broadcasted_iota(jnp.int32, sin.shape, 1) % 2

    def rope(t):
        # rotate_every_two via two lane-rolls (XLU) + even/odd select (VPU):
        #   rot[:, 2i] = -t[:, 2i+1],  rot[:, 2i+1] = t[:, 2i]
        r_next = pltpu.roll(t, shift=dh - 1, axis=1)   # r_next[:, j] = t[:, j+1]
        r_prev = pltpu.roll(t, shift=1, axis=1)        # r_prev[:, j] = t[:, j-1]
        rot = jnp.where(parity == 0, -r_next, r_prev)
        # sin is 0 and cos is 1 on pass-through dims -> no slice/concatenate.
        return t * cos + rot * sin

    for h in range(heads):   # static unroll: per-head 2-D MXU matmuls
        qh = rope(q_ref[:, h, :]) * scale
        kh = rope(k_ref[:, h, :])
        vh = v_ref[:, h, :]

        # dots = q @ k^T  -> softmax along keys
        dots = jax.lax.dot_general(
            qh, kh, (((1,), (1,)), ((), ())),
            preferred_element_type=jnp.float32)             # (N, N)
        m = jnp.max(dots, axis=-1, keepdims=True)
        e = jnp.exp(dots - m)
        denom = jnp.sum(e, axis=-1, keepdims=True)
        # TODO(synk): approx=True (EUP vrcp) once bit-closeness to the f32
        #             reference is not required.
        attn = e * pl.reciprocal(denom, approx=False)
        attn_ref[h] = attn.astype(attn_ref.dtype)

        out = jnp.dot(attn.astype(vh.dtype), vh,
                      preferred_element_type=jnp.float32)
        out_ref[:, h, :] = out.astype(out_ref.dtype)


# ------------------------------ full forward -------------------------------- #
def self_attention_forward(x, pos_emb, params, *, heads, dim_head):
    B, N, D = x.shape
    inner = heads * dim_head
    scale = dim_head ** (-0.5)
    sin, cos = pos_emb                      # each (B, N, Dr)
    Dr = sin.shape[-1]
    assert Dr % 2 == 0 and Dr <= dim_head

    # --- fused q/kv projection: one HBM pass over x, one pallas_call --------
    w_qkv = jnp.concatenate([params["w_q"], params["w_kv"]], axis=1)  # (D, 3*inner)
    qkv = linear_pallas(x.reshape(B * N, D), w_qkv)                   # (B*N, 3*inner)

    # Free (layout-preserving) reshape: columns are [q | k | v], head-major.
    qkv = qkv.reshape(B, N, 3, heads, dim_head)

    # Full per-head-width rotary tables: cos=1 / sin=0 on pass-through dims.
    pad = dim_head - Dr
    sin_f = jnp.pad(sin, ((0, 0), (0, 0), (0, pad)))
    cos_f = jnp.pad(cos, ((0, 0), (0, 0), (0, pad)), constant_values=1.0)

    kernel = functools.partial(_attn_kernel, scale=scale, heads=heads)
    out_nhd, attn = pl.pallas_call(
        kernel,
        out_shape=(
            jax.ShapeDtypeStruct((B, N, heads, dim_head), x.dtype),
            jax.ShapeDtypeStruct((B, heads, N, N), jnp.float32),
        ),
        grid=(B,),
        in_specs=[
            pl.BlockSpec((None, N, None, heads, dim_head),
                         lambda b: (b, 0, 0, 0, 0)),    # q chunk
            pl.BlockSpec((None, N, None, heads, dim_head),
                         lambda b: (b, 0, 1, 0, 0)),    # k chunk
            pl.BlockSpec((None, N, None, heads, dim_head),
                         lambda b: (b, 0, 2, 0, 0)),    # v chunk
            pl.BlockSpec((None, N, dim_head), lambda b: (b, 0, 0)),   # sin
            pl.BlockSpec((None, N, dim_head), lambda b: (b, 0, 0)),   # cos
        ],
        out_specs=(
            pl.BlockSpec((None, N, heads, dim_head), lambda b: (b, 0, 0, 0)),
            pl.BlockSpec((None, heads, N, N), lambda b: (b, 0, 0, 0)),
        ),
        compiler_params=pltpu.CompilerParams(
            dimension_semantics=("parallel",)),
    )(qkv, qkv, qkv, sin_f, cos_f)

    # Head merge '(h d)' is a free reshape; output projection adds the bias.
    out2d = out_nhd.reshape(B * N, inner)
    y = linear_pallas(out2d, params["w_out"], params["b_out"])
    return y.reshape(B, N, D), attn.reshape(B * heads, N, N)


# ---------------------------- pure-JAX reference ---------------------------- #
def _rot2_ref(t):
    t2 = t.reshape(t.shape[:-1] + (t.shape[-1] // 2, 2))
    x1, x2 = t2[..., 0], t2[..., 1]
    return jnp.stack([-x2, x1], axis=-1).reshape(t.shape)


def reference_forward(x, pos_emb, params, *, heads, dim_head):
    B, N, D = x.shape
    inner = heads * dim_head
    scale = dim_head ** (-0.5)
    sin, cos = pos_emb
    Dr = sin.shape[-1]

    q = x @ params["w_q"]
    kv = x @ params["w_kv"]
    k, v = kv[..., :inner], kv[..., inner:]

    def split_heads(t):
        return (t.reshape(B, N, heads, dim_head)
                 .transpose(0, 2, 1, 3)
                 .reshape(B * heads, N, dim_head))

    q, k, v = map(split_heads, (q, k, v))
    sin_r = jnp.repeat(sin, heads, axis=0)
    cos_r = jnp.repeat(cos, heads, axis=0)

    q_rot, q_pass = q[..., :Dr], q[..., Dr:]
    k_rot, k_pass = k[..., :Dr], k[..., Dr:]
    q_rot = q_rot * cos_r + _rot2_ref(q_rot) * sin_r
    k_rot = k_rot * cos_r + _rot2_ref(k_rot) * sin_r
    q = jnp.concatenate([q_rot, q_pass], axis=-1)
    k = jnp.concatenate([k_rot, k_pass], axis=-1)

    dots = jnp.einsum("bid,bjd->bij", q, k) * scale
    attn = jax.nn.softmax(dots, axis=-1)
    out = jnp.einsum("bij,bjd->bid", attn, v)
    out = (out.reshape(B, heads, N, dim_head)
              .transpose(0, 2, 1, 3)
              .reshape(B, N, inner))
    out = out @ params["w_out"] + params["b_out"][0]
    return out, attn


# ---------------------------------- main ------------------------------------ #
if __name__ == "__main__":
    B, N, D = 2, 8, 32
    heads, dim_head = 4, 16
    inner = heads * dim_head
    Dr = 8  # rotary dim (< dim_head to exercise the pass-through path)

    key = jax.random.PRNGKey(0)
    kx, kq, kkv, ko, kb = jax.random.split(key, 5)
    x = jax.random.normal(kx, (B, N, D), jnp.float32)

    params = {
        "w_q": jax.random.normal(kq, (D, inner), jnp.float32) * 0.05,
        "w_kv": jax.random.normal(kkv, (D, 2 * inner), jnp.float32) * 0.05,
        "w_out": jax.random.normal(ko, (inner, D), jnp.float32) * 0.05,
        "b_out": jax.random.normal(kb, (1, D), jnp.float32) * 0.05,
    }

    # rotary positional embedding: (sin, cos) each of shape (B, N, Dr)
    inv_freq = 1.0 / (10000.0 ** (jnp.arange(0, Dr, 2, dtype=jnp.float32) / Dr))
    t = jnp.arange(N, dtype=jnp.float32)
    freqs = jnp.einsum("n,f->nf", t, inv_freq)           # (N, Dr//2)
    emb = jnp.repeat(freqs, 2, axis=-1)                  # (N, Dr), pair-interleaved
    sin = jnp.broadcast_to(jnp.sin(emb)[None], (B, N, Dr))
    cos = jnp.broadcast_to(jnp.cos(emb)[None], (B, N, Dr))
    pos_emb = (sin, cos)

    fwd = jax.jit(functools.partial(self_attention_forward,
                                    heads=heads, dim_head=dim_head))
    out, attn = fwd(x, pos_emb, params)
    jax.block_until_ready((out, attn))

    out_ref, attn_ref = reference_forward(x, pos_emb, params,
                                          heads=heads, dim_head=dim_head)
    assert out.shape == (B, N, D) and attn.shape == (B * heads, N, N)
    assert jnp.allclose(out, out_ref, atol=2e-5, rtol=2e-5), \
        float(jnp.max(jnp.abs(out - out_ref)))
    assert jnp.allclose(attn, attn_ref, atol=2e-5, rtol=2e-5), \
        float(jnp.max(jnp.abs(attn - attn_ref)))

    print("KERNEL_OK")
</pallas_src>

<mosaic_0001>
module attributes {stable_mosaic.version = 11 : i64} {
  func.func @_matmul_kernel(%arg0: i32, %arg1: i32, %arg2: i32, %arg3: memref<16x32xf32, #tpu.memory_space<vmem>>, %arg4: memref<32x192xf32, #tpu.memory_space<vmem>>, %arg5: memref<16x192xf32, #tpu.memory_space<vmem>>, %arg6: memref<16x192xf32, #tpu.memory_space<vmem>>) attributes {dimension_semantics = [#tpu.dimension_semantics<parallel>, #tpu.dimension_semantics<parallel>, #tpu.dimension_semantics<arbitrary>], iteration_bounds = array<i64: 1, 1, 1>, scalar_prefetch = 0 : i64, scratch_operands = 1 : i64, tpu.core_type = #tpu.core_type<tc>, window_params = [{transform_indices = @transform_0, window_bounds = array<i64: 16, 32>}, {transform_indices = @transform_1, window_bounds = array<i64: 32, 192>}, {transform_indices = @transform_2, window_bounds = array<i64: 16, 192>}]} {
    %c0_i32 = arith.constant 0 : i32
    %0 = arith.cmpi eq, %arg2, %c0_i32 : i32
    %1 = arith.extui %0 : i1 to i32
    %c0_i32_0 = arith.constant 0 : i32
    %2 = arith.cmpi ne, %1, %c0_i32_0 : i32
    scf.if %2 {
      %cst_10 = arith.constant 0.000000e+00 : f32
      %12 = vector.broadcast %cst_10 : f32 to vector<16x192xf32>
      %c0_11 = arith.constant 0 : index
      %c0_12 = arith.constant 0 : index
      %13 = vector.load %arg6[%c0_11, %c0_12] : memref<16x192xf32, #tpu.memory_space<vmem>>, vector<16x192xf32>
      tpu.vector_store %arg6[%c0_11, %c0_12], %12 {strides = array<i32>} : memref<16x192xf32, #tpu.memory_space<vmem>>, vector<16x192xf32>,
    } else {
    }
    %c0 = arith.constant 0 : index
    %c0_1 = arith.constant 0 : index
    %3 = vector.load %arg6[%c0, %c0_1] : memref<16x192xf32, #tpu.memory_space<vmem>>, vector<16x192xf32>
    %c0_2 = arith.constant 0 : index
    %c0_3 = arith.constant 0 : index
    %4 = vector.load %arg3[%c0_2, %c0_3] : memref<16x32xf32, #tpu.memory_space<vmem>>, vector<16x32xf32>
    %c0_4 = arith.constant 0 : index
    %c0_5 = arith.constant 0 : index
    %5 = vector.load %arg4[%c0_4, %c0_5] : memref<32x192xf32, #tpu.memory_space<vmem>>, vector<32x192xf32>
    %cst = arith.constant dense<0.000000e+00> : vector<16x192xf32>
    %6 = tpu.matmul %4, %5, %cst {dimension_numbers = #tpu.dot_dimension_numbers<[1], [0], [0], [1], [0, 0, 1, 1], [], []>} : vector<16x32xf32>, vector<32x192xf32>, vector<16x192xf32> -> vector<16x192xf32>
    %7 = arith.addf %3, %6 : vector<16x192xf32>
    %c0_6 = arith.constant 0 : index
    %c0_7 = arith.constant 0 : index
    %8 = vector.load %arg6[%c0_6, %c0_7] : memref<16x192xf32, #tpu.memory_space<vmem>>, vector<16x192xf32>
    tpu.vector_store %arg6[%c0_6, %c0_7], %7 {strides = array<i32>} : memref<16x192xf32, #tpu.memory_space<vmem>>, vector<16x192xf32>,
    %c0_i32_8 = arith.constant 0 : i32
    %9 = arith.cmpi eq, %arg2, %c0_i32_8 : i32
    %10 = arith.extui %9 : i1 to i32
    %c0_i32_9 = arith.constant 0 : i32
    %11 = arith.cmpi ne, %10, %c0_i32_9 : i32
    scf.if %11 {
      %c0_10 = arith.constant 0 : index
      %c0_11 = arith.constant 0 : index
      %12 = vector.load %arg6[%c0_10, %c0_11] : memref<16x192xf32, #tpu.memory_space<vmem>>, vector<16x192xf32>
      %c0_12 = arith.constant 0 : index
      %c0_13 = arith.constant 0 : index
      %13 = vector.load %arg5[%c0_12, %c0_13] : memref<16x192xf32, #tpu.memory_space<vmem>>, vector<16x192xf32>
      tpu.vector_store %arg5[%c0_12, %c0_13], %12 {strides = array<i32>} : memref<16x192xf32, #tpu.memory_space<vmem>>, vector<16x192xf32>,
    } else {
    }
    return
  }
  func.func @transform_0(%arg0: i32, %arg1: i32, %arg2: i32) -> (i32, i32) {
    %c0_i32 = arith.constant 0 : i32
    return %arg0, %arg2 : i32, i32
  }
  func.func @transform_1(%arg0: i32, %arg1: i32, %arg2: i32) -> (i32, i32) {
    %c0_i32 = arith.constant 0 : i32
    return %arg2, %arg1 : i32, i32
  }
  func.func @transform_2(%arg0: i32, %arg1: i32, %arg2: i32) -> (i32, i32) {
    %c0_i32 = arith.constant 0 : i32
    return %arg0, %arg1 : i32, i32
  }
}

module attributes {stable_mosaic.version = 11 : i64} {
  func.func @_matmul_bias_kernel(%arg0: i32, %arg1: i32, %arg2: i32, %arg3: memref<16x64xf32, #tpu.memory_space<vmem>>, %arg4: memref<64x32xf32, #tpu.memory_space<vmem>>, %arg5: memref<1x32xf32, #tpu.memory_space<vmem>>, %arg6: memref<16x32xf32, #tpu.memory_space<vmem>>, %arg7: memref<16x32xf32, #tpu.memory_space<vmem>>) attributes {dimension_semantics = [#tpu.dimension_semantics<parallel>, #tpu.dimension_semantics<parallel>, #tpu.dimension_semantics<arbitrary>], iteration_bounds = array<i64: 1, 1, 1>, scalar_prefetch = 0 : i64, scratch_operands = 1 : i64, tpu.core_type = #tpu.core_type<tc>, window_params = [{transform_indices = @transform_0, window_bounds = array<i64: 16, 64>}, {transform_indices = @transform_1, window_bounds = array<i64: 64, 32>}, {transform_indices = @transform_2, window_bounds = array<i64: 1, 32>}, {transform_indices = @transform_3, window_bounds = array<i64: 16, 32>}]} {
    %c0_i32 = arith.constant 0 : i32
    %0 = arith.cmpi eq, %arg2, %c0_i32 : i32
    %1 = arith.extui %0 : i1 to i32
    %c0_i32_0 = arith.constant 0 : i32
    %2 = arith.cmpi ne, %1, %c0_i32_0 : i32
    scf.if %2 {
      %cst_10 = arith.constant 0.000000e+00 : f32
      %12 = vector.broadcast %cst_10 : f32 to vector<16x32xf32>
      %c0_11 = arith.constant 0 : index
      %c0_12 = arith.constant 0 : index
      %13 = vector.load %arg7[%c0_11, %c0_12] : memref<16x32xf32, #tpu.memory_space<vmem>>, vector<16x32xf32>
      tpu.vector_store %arg7[%c0_11, %c0_12], %12 {strides = array<i32>} : memref<16x32xf32, #tpu.memory_space<vmem>>, vector<16x32xf32>,
    } else {
    }
    %c0 = arith.constant 0 : index
    %c0_1 = arith.constant 0 : index
    %3 = vector.load %arg7[%c0, %c0_1] : memref<16x32xf32, #tpu.memory_space<vmem>>, vector<16x32xf32>
    %c0_2 = arith.constant 0 : index
    %c0_3 = arith.constant 0 : index
    %4 = vector.load %arg3[%c0_2, %c0_3] : memref<16x64xf32, #tpu.memory_space<vmem>>, vector<16x64xf32>
    %c0_4 = arith.constant 0 : index
    %c0_5 = arith.constant 0 : index
    %5 = vector.load %arg4[%c0_4, %c0_5] : memref<64x32xf32, #tpu.memory_space<vmem>>, vector<64x32xf32>
    %cst = arith.constant dense<0.000000e+00> : vector<16x32xf32>
    %6 = tpu.matmul %4, %5, %cst {dimension_numbers = #tpu.dot_dimension_numbers<[1], [0], [0], [1], [0, 0, 1, 1], [], []>} : vector<16x64xf32>, vector<64x32xf32>, vector<16x32xf32> -> vector<16x32xf32>
    %7 = arith.addf %3, %6 : vector<16x32xf32>
    %c0_6 = arith.constant 0 : index
    %c0_7 = arith.constant 0 : index
    %8 = vector.load %arg7[%c0_6, %c0_7] : memref<16x32xf32, #tpu.memory_space<vmem>>, vector<16x32xf32>
    tpu.vector_store %arg7[%c0_6, %c0_7], %7 {strides = array<i32>} : memref<16x32xf32, #tpu.memory_space<vmem>>, vector<16x32xf32>,
    %c0_i32_8 = arith.constant 0 : i32
    %9 = arith.cmpi eq, %arg2, %c0_i32_8 : i32
    %10 = arith.extui %9 : i1 to i32
    %c0_i32_9 = arith.constant 0 : i32
    %11 = arith.cmpi ne, %10, %c0_i32_9 : i32
    scf.if %11 {
      %c0_10 = arith.constant 0 : index
      %c0_11 = arith.constant 0 : index
      %12 = vector.load %arg7[%c0_10, %c0_11] : memref<16x32xf32, #tpu.memory_space<vmem>>, vector<16x32xf32>
      %c0_12 = arith.constant 0 : index
      %c0_13 = arith.constant 0 : index
      %13 = vector.load %arg5[%c0_12, %c0_13] : memref<1x32xf32, #tpu.memory_space<vmem>>, vector<1x32xf32>
      %14 = vector.broadcast %13 : vector<1x32xf32> to vector<16x32xf32>
      %15 = arith.addf %12, %14 : vector<16x32xf32>
      %c0_14 = arith.constant 0 : index
      %c0_15 = arith.constant 0 : index
      %16 = vector.load %arg6[%c0_14, %c0_15] : memref<16x32xf32, #tpu.memory_space<vmem>>, vector<16x32xf32>
      tpu.vector_store %arg6[%c0_14, %c0_15], %15 {strides = array<i32>} : memref<16x32xf32, #tpu.memory_space<vmem>>, vector<16x32xf32>,
    } else {
    }
    return
  }
  func.func @transform_0(%arg0: i32, %arg1: i32, %arg2: i32) -> (i32, i32) {
    %c0_i32 = arith.constant 0 : i32
    return %arg0, %arg2 : i32, i32
  }
  func.func @transform_1(%arg0: i32, %arg1: i32, %arg2: i32) -> (i32, i32) {
    %c0_i32 = arith.constant 0 : i32
    return %arg2, %arg1 : i32, i32
  }
  func.func @transform_2(%arg0: i32, %arg1: i32, %arg2: i32) -> (i32, i32) {
    %c0_i32 = arith.constant 0 : i32
    %c0_i32_0 = arith.constant 0 : i32
    return %c0_i32, %arg1 : i32, i32
  }
  func.func @transform_3(%arg0: i32, %arg1: i32, %arg2: i32) -> (i32, i32) {
    %c0_i32 = arith.constant 0 : i32
    return %arg0, %arg1 : i32, i32
  }
}

module attributes {stable_mosaic.version = 11 : i64} {
  func.func @_attn_kernel(%arg0: i32, %arg1: memref<1x8x1x4x16xf32, #tpu.memory_space<vmem>>, %arg2: memref<1x8x1x4x16xf32, #tpu.memory_space<vmem>>, %arg3: memref<1x8x1x4x16xf32, #tpu.memory_space<vmem>>, %arg4: memref<1x8x16xf32, #tpu.memory_space<vmem>>, %arg5: memref<1x8x16xf32, #tpu.memory_space<vmem>>, %arg6: memref<1x8x4x16xf32, #tpu.memory_space<vmem>>, %arg7: memref<1x4x8x8xf32, #tpu.memory_space<vmem>>) attributes {dimension_semantics = [#tpu.dimension_semantics<parallel>], iteration_bounds = array<i64: 2>, scalar_prefetch = 0 : i64, scratch_operands = 0 : i64, tpu.core_type = #tpu.core_type<tc>, window_params = [{transform_indices = @transform_0, window_bounds = array<i64: 1, 8, 1, 4, 16>}, {transform_indices = @transform_1, window_bounds = array<i64: 1, 8, 1, 4, 16>}, {transform_indices = @transform_2, window_bounds = array<i64: 1, 8, 1, 4, 16>}, {transform_indices = @transform_3, window_bounds = array<i64: 1, 8, 16>}, {transform_indices = @transform_4, window_bounds = array<i64: 1, 8, 16>}, {transform_indices = @transform_5, window_bounds = array<i64: 1, 8, 4, 16>}, {transform_indices = @transform_6, window_bounds = array<i64: 1, 4, 8, 8>}]} {
    %c0 = arith.constant 0 : index
    %c0_0 = arith.constant 0 : index
    %c0_1 = arith.constant 0 : index
    %0 = vector.load %arg4[%c0, %c0_0, %c0_1] : memref<1x8x16xf32, #tpu.memory_space<vmem>>, vector<1x8x16xf32>
    %1 = vector.shape_cast %0 : vector<1x8x16xf32> to vector<8x16xf32>
    %c0_2 = arith.constant 0 : index
    %c0_3 = arith.constant 0 : index
    %c0_4 = arith.constant 0 : index
    %2 = vector.load %arg5[%c0_2, %c0_3, %c0_4] : memref<1x8x16xf32, #tpu.memory_space<vmem>>, vector<1x8x16xf32>
    %3 = vector.shape_cast %2 : vector<1x8x16xf32> to vector<8x16xf32>
    %4 = tpu.iota {dimensions = array<i32: 1>} : vector<8x16xi32>
    %c2_i32 = arith.constant 2 : i32
    %c0_i32 = arith.constant 0 : i32
    %5 = arith.cmpi eq, %c2_i32, %c0_i32 : i32
    %c1_i32 = arith.constant 1 : i32
    %6 = arith.select %5, %c1_i32, %c2_i32 : i32
    %7 = vector.broadcast %6 : i32 to vector<8x16xi32>
    %8 = arith.remsi %4, %7 : vector<8x16xi32>
    %c0_i32_5 = arith.constant 0 : i32
    %9 = vector.broadcast %c0_i32_5 : i32 to vector<8x16xi32>
    %10 = arith.cmpi ne, %8, %9 : vector<8x16xi32>
    %c0_i32_6 = arith.constant 0 : i32
    %11 = vector.broadcast %c0_i32_6 : i32 to vector<8x16xi32>
    %12 = arith.cmpi slt, %8, %11 : vector<8x16xi32>
    %c0_i32_7 = arith.constant 0 : i32
    %13 = arith.cmpi slt, %6, %c0_i32_7 : i32
    %14 = vector.broadcast %13 : i1 to vector<8x16xi1>
    %15 = vector.broadcast %14 : vector<8x16xi1> to vector<8x16xi1>
    %16 = arith.xori %12, %15 : vector<8x16xi1>
    %17 = arith.andi %16, %10 : vector<8x16xi1>
    %18 = vector.broadcast %6 : i32 to vector<8x16xi32>
    %19 = arith.addi %8, %18 : vector<8x16xi32>
    %20 = arith.select %17, %19, %8 : vector<8x16xi1>, vector<8x16xi32>
    %c0_8 = arith.constant 0 : index
    %c0_9 = arith.constant 0 : index
    %c0_10 = arith.constant 0 : index
    %c0_11 = arith.constant 0 : index
    %c0_12 = arith.constant 0 : index
    %21 = vector.load %arg1[%c0_8, %c0_9, %c0_10, %c0_11, %c0_12] : memref<1x8x1x4x16xf32, #tpu.memory_space<vmem>>, vector<1x8x1x1x16xf32>
    %22 = vector.shape_cast %21 : vector<1x8x1x1x16xf32> to vector<8x16xf32>
    %c15_i32 = arith.constant 15 : i32
    %23 = tpu.dynamic_rotate %22 by %c15_i32 dim 1 : vector<8x16xf32>, i32 -> vector<8x16xf32>
    %c1_i32_13 = arith.constant 1 : i32
    %24 = tpu.dynamic_rotate %22 by %c1_i32_13 dim 1 : vector<8x16xf32>, i32 -> vector<8x16xf32>
    %c0_i32_14 = arith.constant 0 : i32
    %25 = vector.broadcast %c0_i32_14 : i32 to vector<8x16xi32>
    %26 = arith.cmpi eq, %20, %25 : vector<8x16xi32>
    %cst = arith.constant 0.000000e+00 : f32
    %27 = vector.broadcast %cst : f32 to vector<8x16xf32>
    %28 = arith.subf %27, %23 : vector<8x16xf32>
    %29 = arith.select %26, %28, %24 : vector<8x16xi1>, vector<8x16xf32>
    %30 = arith.mulf %22, %3 : vector<8x16xf32>
    %31 = arith.mulf %29, %1 : vector<8x16xf32>
    %32 = arith.addf %30, %31 : vector<8x16xf32>
    %cst_15 = arith.constant 2.500000e-01 : f32
    %33 = vector.broadcast %cst_15 : f32 to vector<8x16xf32>
    %34 = arith.mulf %32, %33 : vector<8x16xf32>
    %c0_16 = arith.constant 0 : index
    %c0_17 = arith.constant 0 : index
    %c0_18 = arith.constant 0 : index
    %c0_19 = arith.constant 0 : index
    %c0_20 = arith.constant 0 : index
    %35 = vector.load %arg2[%c0_16, %c0_17, %c0_18, %c0_19, %c0_20] : memref<1x8x1x4x16xf32, #tpu.memory_space<vmem>>, vector<1x8x1x1x16xf32>
    %36 = vector.shape_cast %35 : vector<1x8x1x1x16xf32> to vector<8x16xf32>
    %c15_i32_21 = arith.constant 15 : i32
    %37 = tpu.dynamic_rotate %36 by %c15_i32_21 dim 1 : vector<8x16xf32>, i32 -> vector<8x16xf32>
    %c1_i32_22 = arith.constant 1 : i32
    %38 = tpu.dynamic_rotate %36 by %c1_i32_22 dim 1 : vector<8x16xf32>, i32 -> vector<8x16xf32>
    %c0_i32_23 = arith.constant 0 : i32
    %39 = vector.broadcast %c0_i32_23 : i32 to vector<8x16xi32>
    %40 = arith.cmpi eq, %20, %39 : vector<8x16xi32>
    %cst_24 = arith.constant 0.000000e+00 : f32
    %41 = vector.broadcast %cst_24 : f32 to vector<8x16xf32>
    %42 = arith.subf %41, %37 : vector<8x16xf32>
    %43 = arith.select %40, %42, %38 : vector<8x16xi1>, vector<8x16xf32>
    %44 = arith.mulf %36, %3 : vector<8x16xf32>
    %45 = arith.mulf %43, %1 : vector<8x16xf32>
    %46 = arith.addf %44, %45 : vector<8x16xf32>
    %c0_25 = arith.constant 0 : index
    %c0_26 = arith.constant 0 : index
    %c0_27 = arith.constant 0 : index
    %c0_28 = arith.constant 0 : index
    %c0_29 = arith.constant 0 : index
    %47 = vector.load %arg3[%c0_25, %c0_26, %c0_27, %c0_28, %c0_29] : memref<1x8x1x4x16xf32, #tpu.memory_space<vmem>>, vector<1x8x1x1x16xf32>
    %48 = vector.shape_cast %47 : vector<1x8x1x1x16xf32> to vector<8x16xf32>
    %cst_30 = arith.constant dense<0.000000e+00> : vector<8x8xf32>
    %49 = tpu.matmul %34, %46, %cst_30 {dimension_numbers = #tpu.dot_dimension_numbers<[1], [1], [0], [0], [0, 0, 1, 0], [], []>} : vector<8x16xf32>, vector<8x16xf32>, vector<8x8xf32> -> vector<8x8xf32>
    %cst_31 = arith.constant dense<0xFF800000> : vector<8xf32>
    %50 = vector.multi_reduction <maximumf>, %49, %cst_31 [1] : vector<8x8xf32> to vector<8xf32>
    %51 = vector.shape_cast %50 : vector<8xf32> to vector<8x1xf32>
    %52 = vector.broadcast %51 : vector<8x1xf32> to vector<8x8xf32>
    %53 = arith.subf %49, %52 : vector<8x8xf32>
    %54 = math.exp %53 : vector<8x8xf32>
    %cst_32 = arith.constant dense<0.000000e+00> : vector<8xf32>
    %55 = vector.multi_reduction <add>, %54, %cst_32 [1] : vector<8x8xf32> to vector<8xf32>
    %56 = vector.shape_cast %55 : vector<8xf32> to vector<8x1xf32>
    %57 = tpu.reciprocal %56 : vector<8x1xf32> -> vector<8x1xf32>
    %58 = vector.broadcast %57 : vector<8x1xf32> to vector<8x8xf32>
    %59 = arith.mulf %54, %58 : vector<8x8xf32>
    %c0_33 = arith.constant 0 : index
    %c0_34 = arith.constant 0 : index
    %c0_35 = arith.constant 0 : index
    %c0_36 = arith.constant 0 : index
    %60 = vector.load %arg7[%c0_33, %c0_34, %c0_35, %c0_36] : memref<1x4x8x8xf32, #tpu.memory_space<vmem>>, vector<1x1x8x8xf32>
    %61 = vector.shape_cast %60 : vector<1x1x8x8xf32> to vector<8x8xf32>
    %62 = vector.shape_cast %59 : vector<8x8xf32> to vector<1x1x8x8xf32>
    tpu.vector_store %arg7[%c0_33, %c0_34, %c0_35, %c0_36], %62 {strides = array<i32>} : memref<1x4x8x8xf32, #tpu.memory_space<vmem>>, vector<1x1x8x8xf32>,
    %cst_37 = arith.constant dense<0.000000e+00> : vector<8x16xf32>
    %63 = tpu.matmul %59, %48, %cst_37 {dimension_numbers = #tpu.dot_dimension_numbers<[1], [0], [0], [1], [0, 0, 1, 1], [], []>} : vector<8x8xf32>, vector<8x16xf32>, vector<8x16xf32> -> vector<8x16xf32>
    %c0_38 = arith.constant 0 : index
    %c0_39 = arith.constant 0 : index
    %c0_40 = arith.constant 0 : index
    %c0_41 = arith.constant 0 : index
    %64 = vector.load %arg6[%c0_38, %c0_39, %c0_40, %c0_41] : memref<1x8x4x16xf32, #tpu.memory_space<vmem>>, vector<1x8x1x16xf32>
    %65 = vector.shape_cast %64 : vector<1x8x1x16xf32> to vector<8x16xf32>
    %66 = vector.shape_cast %63 : vector<8x16xf32> to vector<1x8x1x16xf32>
    tpu.vector_store %arg6[%c0_38, %c0_39, %c0_40, %c0_41], %66 {strides = array<i32>} : memref<1x8x4x16xf32, #tpu.memory_space<vmem>>, vector<1x8x1x16xf32>,
    %c0_42 = arith.constant 0 : index
    %c0_43 = arith.constant 0 : index
    %c0_44 = arith.constant 0 : index
    %c1 = arith.constant 1 : index
    %c0_45 = arith.constant 0 : index
    %67 = vector.load %arg1[%c0_42, %c0_43, %c0_44, %c1, %c0_45] : memref<1x8x1x4x16xf32, #tpu.memory_space<vmem>>, vector<1x8x1x1x16xf32>
    %68 = vector.shape_cast %67 : vector<1x8x1x1x16xf32> to vector<8x16xf32>
    %c15_i32_46 = arith.constant 15 : i32
    %69 = tpu.dynamic_rotate %68 by %c15_i32_46 dim 1 : vector<8x16xf32>, i32 -> vector<8x16xf32>
    %c1_i32_47 = arith.constant 1 : i32
    %70 = tpu.dynamic_rotate %68 by %c1_i32_47 dim 1 : vector<8x16xf32>, i32 -> vector<8x16xf32>
    %c0_i32_48 = arith.constant 0 : i32
    %71 = vector.broadcast %c0_i32_48 : i32 to vector<8x16xi32>
    %72 = arith.cmpi eq, %20, %71 : vector<8x16xi32>
    %cst_49 = arith.constant 0.000000e+00 : f32
    %73 = vector.broadcast %cst_49 : f32 to vector<8x16xf32>
    %74 = arith.subf %73, %69 : vector<8x16xf32>
    %75 = arith.select %72, %74, %70 : vector<8x16xi1>, vector<8x16xf32>
    %76 = arith.mulf %68, %3 : vector<8x16xf32>
    %77 = arith.mulf %75, %1 : vector<8x16xf32>
    %78 = arith.addf %76, %77 : vector<8x16xf32>
    %cst_50 = arith.constant 2.500000e-01 : f32
    %79 = vector.broadcast %cst_50 : f32 to vector<8x16xf32>
    %80 = arith.mulf %78, %79 : vector<8x16xf32>
    %c0_51 = arith.constant 0 : index
    %c0_52 = arith.constant 0 : index
    %c0_53 = arith.constant 0 : index
    %c1_54 = arith.constant 1 : index
    %c0_55 = arith.constant 0 : index
    %81 = vector.load %arg2[%c0_51, %c0_52, %c0_53, %c1_54, %c0_55] : memref<1x8x1x4x16xf32, #tpu.memory_space<vmem>>, vector<1x8x1x1x16xf32>
    %82 = vector.shape_cast %81 : vector<1x8x1x1x16xf32> to vector<8x16xf32>
    %c15_i32_56 = arith.constant 15 : i32
    %83 = tpu.dynamic_rotate %82 by %c15_i32_56 dim 1 : vector<8x16xf32>, i32 -> vector<8x16xf32>
    %c1_i32_57 = arith.constant 1 : i32
    %84 = tpu.dynamic_rotate %82 by %c1_i32_57 dim 1 : vector<8x16xf32>, i32 -> vector<8x16xf32>
    %c0_i32_58 = arith.constant 0 : i32
    %85 = vector.broadcast %c0_i32_58 : i32 to vector<8x16xi32>
    %86 = arith.cmpi eq, %20, %85 : vector<8x16xi32>
    %cst_59 = arith.constant 0.000000e+00 : f32
    %87 = vector.broadcast %cst_59 : f32 to vector<8x16xf32>
    %88 = arith.subf %87, %83 : vector<8x16xf32>
    %89 = arith.select %86, %88, %84 : vector<8x16xi1>, vector<8x16xf32>
    %90 = arith.mulf %82, %3 : vector<8x16xf32>
    %91 = arith.mulf %89, %1 : vector<8x16xf32>
    %92 = arith.addf %90, %91 : vector<8x16xf32>
    %c0_60 = arith.constant 0 : index
    %c0_61 = arith.constant 0 : index
    %c0_62 = arith.constant 0 : index
    %c1_63 = arith.constant 1 : index
    %c0_64 = arith.constant 0 : index
    %93 = vector.load %arg3[%c0_60, %c0_61, %c0_62, %c1_63, %c0_64] : memref<1x8x1x4x16xf32, #tpu.memory_space<vmem>>, vector<1x8x1x1x16xf32>
    %94 = vector.shape_cast %93 : vector<1x8x1x1x16xf32> to vector<8x16xf32>
    %cst_65 = arith.constant dense<0.000000e+00> : vector<8x8xf32>
    %95 = tpu.matmul %80, %92, %cst_65 {dimension_numbers = #tpu.dot_dimension_numbers<[1], [1], [0], [0], [0, 0, 1, 0], [], []>} : vector<8x16xf32>, vector<8x16xf32>, vector<8x8xf32> -> vector<8x8xf32>
    %cst_66 = arith.constant dense<0xFF800000> : vector<8xf32>
    %96 = vector.multi_reduction <maximumf>, %95, %cst_66 [1] : vector<8x8xf32> to vector<8xf32>
    %97 = vector.shape_cast %96 : vector<8xf32> to vector<8x1xf32>
    %98 = vector.broadcast %97 : vector<8x1xf32> to vector<8x8xf32>
    %99 = arith.subf %95, %98 : vector<8x8xf32>
    %100 = math.exp %99 : vector<8x8xf32>
    %cst_67 = arith.constant dense<0.000000e+00> : vector<8xf32>
    %101 = vector.multi_reduction <add>, %100, %cst_67 [1] : vector<8x8xf32> to vector<8xf32>
    %102 = vector.shape_cast %101 : vector<8xf32> to vector<8x1xf32>
    %103 = tpu.reciprocal %102 : vector<8x1xf32> -> vector<8x1xf32>
    %104 = vector.broadcast %103 : vector<8x1xf32> to vector<8x8xf32>
    %105 = arith.mulf %100, %104 : vector<8x8xf32>
    %c0_68 = arith.constant 0 : index
    %c1_69 = arith.constant 1 : index
    %c0_70 = arith.constant 0 : index
    %c0_71 = arith.constant 0 : index
    %106 = vector.load %arg7[%c0_68, %c1_69, %c0_70, %c0_71] : memref<1x4x8x8xf32, #tpu.memory_space<vmem>>, vector<1x1x8x8xf32>
    %107 = vector.shape_cast %106 : vector<1x1x8x8xf32> to vector<8x8xf32>
    %108 = vector.shape_cast %105 : vector<8x8xf32> to vector<1x1x8x8xf32>
    tpu.vector_store %arg7[%c0_68, %c1_69, %c0_70, %c0_71], %108 {strides = array<i32>} : memref<1x4x8x8xf32, #tpu.memory_space<vmem>>, vector<1x1x8x8xf32>,
    %cst_72 = arith.constant dense<0.000000e+00> : vector<8x16xf32>
    %109 = tpu.matmul %105, %94, %cst_72 {dimension_numbers = #tpu.dot_dimension_numbers<[1], [0], [0], [1], [0, 0, 1, 1], [], []>} : vector<8x8xf32>, vector<8x16xf32>, vector<8x16xf32> -> vector<8x16xf32>
    %c0_73 = arith.constant 0 : index
    %c0_74 = arith.constant 0 : index
    %c1_75 = arith.constant 1 : index
    %c0_76 = arith.constant 0 : index
    %110 = vector.load %arg6[%c0_73, %c0_74, %c1_75, %c0_76] : memref<1x8x4x16xf32, #tpu.memory_space<vmem>>, vector<1x8x1x16xf32>
    %111 = vector.shape_cast %110 : vector<1x8x1x16xf32> to vector<8x16xf32>
    %112 = vector.shape_cast %109 : vector<8x16xf32> to vector<1x8x1x16xf32>
    tpu.vector_store %arg6[%c0_73, %c0_74, %c1_75, %c0_76], %112 {strides = array<i32>} : memref<1x8x4x16xf32, #tpu.memory_space<vmem>>, vector<1x8x1x16xf32>,
    %c0_77 = arith.constant 0 : index
    %c0_78 = arith.constant 0 : index
    %c0_79 = arith.constant 0 : index
    %c2 = arith.constant 2 : index
    %c0_80 = arith.constant 0 : index
    %113 = vector.load %arg1[%c0_77, %c0_78, %c0_79, %c2, %c0_80] : memref<1x8x1x4x16xf32, #tpu.memory_space<vmem>>, vector<1x8x1x1x16xf32>
    %114 = vector.shape_cast %113 : vector<1x8x1x1x16xf32> to vector<8x16xf32>
    %c15_i32_81 = arith.constant 15 : i32
    %115 = tpu.dynamic_rotate %114 by %c15_i32_81 dim 1 : vector<8x16xf32>, i32 -> vector<8x16xf32>
    %c1_i32_82 = arith.constant 1 : i32
    %116 = tpu.dynamic_rotate %114 by %c1_i32_82 dim 1 : vector<8x16xf32>, i32 -> vector<8x16xf32>
    %c0_i32_83 = arith.constant 0 : i32
    %117 = vector.broadcast %c0_i32_83 : i32 to vector<8x16xi32>
    %118 = arith.cmpi eq, %20, %117 : vector<8x16xi32>
    %cst_84 = arith.constant 0.000000e+00 : f32
    %119 = vector.broadcast %cst_84 : f32 to vector<8x16xf32>
    %120 = arith.subf %119, %115 : vector<8x16xf32>
    %121 = arith.select %118, %120, %116 : vector<8x16xi1>, vector<8x16xf32>
    %122 = arith.mulf %114, %3 : vector<8x16xf32>
    %123 = arith.mulf %121, %1 : vector<8x16xf32>
    %124 = arith.addf %122, %123 : vector<8x16xf32>
    %cst_85 = arith.constant 2.500000e-01 : f32
    %125 = vector.broadcast %cst_85 : f32 to vector<8x16xf32>
    %126 = arith.mulf %124, %125 : vector<8x16xf32>
    %c0_86 = arith.constant 0 : index
    %c0_87 = arith.constant 0 : index
    %c0_88 = arith.constant 0 : index
    %c2_89 = arith.constant 2 : index
    %c0_90 = arith.constant 0 : index
    %127 = vector.load %arg2[%c0_86, %c0_87, %c0_88, %c2_89, %c0_90] : memref<1x8x1x4x16xf32, #tpu.memory_space<vmem>>, vector<1x8x1x1x16xf32>
    %128 = vector.shape_cast %127 : vector<1x8x1x1x16xf32> to vector<8x16xf32>
    %c15_i32_91 = arith.constant 15 : i32
    %129 = tpu.dynamic_rotate %128 by %c15_i32_91 dim 1 : vector<8x16xf32>, i32 -> vector<8x16xf32>
    %c1_i32_92 = arith.constant 1 : i32
    %130 = tpu.dynamic_rotate %128 by %c1_i32_92 dim 1 : vector<8x16xf32>, i32 -> vector<8x16xf32>
    %c0_i32_93 = arith.constant 0 : i32
    %131 = vector.broadcast %c0_i32_93 : i32 to vector<8x16xi32>
    %132 = arith.cmpi eq, %20, %131 : vector<8x16xi32>
    %cst_94 = arith.constant 0.000000e+00 : f32
    %133 = vector.broadcast %cst_94 : f32 to vector<8x16xf32>
    %134 = arith.subf %133, %129 : vector<8x16xf32>
    %135 = arith.select %132, %134, %130 : vector<8x16xi1>, vector<8x16xf32>
    %136 = arith.mulf %128, %3 : vector<8x16xf32>
    %137 = arith.mulf %135, %1 : vector<8x16xf32>
    %138 = arith.addf %136, %137 : vector<8x16xf32>
    %c0_95 = arith.constant 0 : index
    %c0_96 = arith.constant 0 : index
    %c0_97 = arith.constant 0 : index
    %c2_98 = arith.constant 2 : index
    %c0_99 = arith.constant 0 : index
    %139 = vector.load %arg3[%c0_95, %c0_96, %c0_97, %c2_98, %c0_99] : memref<1x8x1x4x16xf32, #tpu.memory_space<vmem>>, vector<1x8x1x1x16xf32>
    %140 = vector.shape_cast %139 : vector<1x8x1x1x16xf32> to vector<8x16xf32>
    %cst_100 = arith.constant dense<0.000000e+00> : vector<8x8xf32>
    %141 = tpu.matmul %126, %138, %cst_100 {dimension_numbers = #tpu.dot_dimension_numbers<[1], [1], [0], [0], [0, 0, 1, 0], [], []>} : vector<8x16xf32>, vector<8x16xf32>, vector<8x8xf32> -> vector<8x8xf32>
    %cst_101 = arith.constant dense<0xFF800000> : vector<8xf32>
    %142 = vector.multi_reduction <maximumf>, %141, %cst_101 [1] : vector<8x8xf32> to vector<8xf32>
    %143 = vector.shape_cast %142 : vector<8xf32> to vector<8x1xf32>
    %144 = vector.broadcast %143 : vector<8x1xf32> to vector<8x8xf32>
    %145 = arith.subf %141, %144 : vector<8x8xf32>
    %146 = math.exp %145 : vector<8x8xf32>
    %cst_102 = arith.constant dense<0.000000e+00> : vector<8xf32>
    %147 = vector.multi_reduction <add>, %146, %cst_102 [1] : vector<8x8xf32> to vector<8xf32>
    %148 = vector.shape_cast %147 : vector<8xf32> to vector<8x1xf32>
    %149 = tpu.reciprocal %148 : vector<8x1xf32> -> vector<8x1xf32>
    %150 = vector.broadcast %149 : vector<8x1xf32> to vector<8x8xf32>
    %151 = arith.mulf %146, %150 : vector<8x8xf32>
    %c0_103 = arith.constant 0 : index
    %c2_104 = arith.constant 2 : index
    %c0_105 = arith.constant 0 : index
    %c0_106 = arith.constant 0 : index
    %152 = vector.load %arg7[%c0_103, %c2_104, %c0_105, %c0_106] : memref<1x4x8x8xf32, #tpu.memory_space<vmem>>, vector<1x1x8x8xf32>
    %153 = vector.shape_cast %152 : vector<1x1x8x8xf32> to vector<8x8xf32>
    %154 = vector.shape_cast %151 : vector<8x8xf32> to vector<1x1x8x8xf32>
    tpu.vector_store %arg7[%c0_103, %c2_104, %c0_105, %c0_106], %154 {strides = array<i32>} : memref<1x4x8x8xf32, #tpu.memory_space<vmem>>, vector<1x1x8x8xf32>,
    %cst_107 = arith.constant dense<0.000000e+00> : vector<8x16xf32>
    %155 = tpu.matmul %151, %140, %cst_107 {dimension_numbers = #tpu.dot_dimension_numbers<[1], [0], [0], [1], [0, 0, 1, 1], [], []>} : vector<8x8xf32>, vector<8x16xf32>, vector<8x16xf32> -> vector<8x16xf32>
    %c0_108 = arith.constant 0 : index
    %c0_109 = arith.constant 0 : index
    %c2_110 = arith.constant 2 : index
    %c0_111 = arith.constant 0 : index
    %156 = vector.load %arg6[%c0_108, %c0_109, %c2_110, %c0_111] : memref<1x8x4x16xf32, #tpu.memory_space<vmem>>, vector<1x8x1x16xf32>
    %157 = vector.shape_cast %156 : vector<1x8x1x16xf32> to vector<8x16xf32>
    %158 = vector.shape_cast %155 : vector<8x16xf32> to vector<1x8x1x16xf32>
    tpu.vector_store %arg6[%c0_108, %c0_109, %c2_110, %c0_111], %158 {strides = array<i32>} : memref<1x8x4x16xf32, #tpu.memory_space<vmem>>, vector<1x8x1x16xf32>,
    %c0_112 = arith.constant 0 : index
    %c0_113 = arith.constant 0 : index
    %c0_114 = arith.constant 0 : index
    %c3 = arith.constant 3 : index
    %c0_115 = arith.constant 0 : index
    %159 = vector.load %arg1[%c0_112, %c0_113, %c0_114, %c3, %c0_115] : memref<1x8x1x4x16xf32, #tpu.memory_space<vmem>>, vector<1x8x1x1x16xf32>
    %160 = vector.shape_cast %159 : vector<1x8x1x1x16xf32> to vector<8x16xf32>
    %c15_i32_116 = arith.constant 15 : i32
    %161 = tpu.dynamic_rotate %160 by %c15_i32_116 dim 1 : vector<8x16xf32>, i32 -> vector<8x16xf32>
    %c1_i32_117 = arith.constant 1 : i32
    %162 = tpu.dynamic_rotate %160 by %c1_i32_117 dim 1 : vector<8x16xf32>, i32 -> vector<8x16xf32>
    %c0_i32_118 = arith.constant 0 : i32
    %163 = vector.broadcast %c0_i32_118 : i32 to vector<8x16xi32>
    %164 = arith.cmpi eq, %20, %163 : vector<8x16xi32>
    %cst_119 = arith.constant 0.000000e+00 : f32
    %165 = vector.broadcast %cst_119 : f32 to vector<8x16xf32>
    %166 = arith.subf %165, %161 : vector<8x16xf32>
    %167 = arith.select %164, %166, %162 : vector<8x16xi1>, vector<8x16xf32>
    %168 = arith.mulf %160, %3 : vector<8x16xf32>
    %169 = arith.mulf %167, %1 : vector<8x16xf32>
    %170 = arith.addf %168, %169 : vector<8x16xf32>
    %cst_120 = arith.constant 2.500000e-01 : f32
    %171 = vector.broadcast %cst_120 : f32 to vector<8x16xf32>
    %172 = arith.mulf %170, %171 : vector<8x16xf32>
    %c0_121 = arith.constant 0 : index
    %c0_122 = arith.constant 0 : index
    %c0_123 = arith.constant 0 : index
    %c3_124 = arith.constant 3 : index
    %c0_125 = arith.constant 0 : index
    %173 = vector.load %arg2[%c0_121, %c0_122, %c0_123, %c3_124, %c0_125] : memref<1x8x1x4x16xf32, #tpu.memory_space<vmem>>, vector<1x8x1x1x16xf32>
    %174 = vector.shape_cast %173 : vector<1x8x1x1x16xf32> to vector<8x16xf32>
    %c15_i32_126 = arith.constant 15 : i32
    %175 = tpu.dynamic_rotate %174 by %c15_i32_126 dim 1 : vector<8x16xf32>, i32 -> vector<8x16xf32>
    %c1_i32_127 = arith.constant 1 : i32
    %176 = tpu.dynamic_rotate %174 by %c1_i32_127 dim 1 : vector<8x16xf32>, i32 -> vector<8x16xf32>
    %c0_i32_128 = arith.constant 0 : i32
    %177 = vector.broadcast %c0_i32_128 : i32 to vector<8x16xi32>
    %178 = arith.cmpi eq, %20, %177 : vector<8x16xi32>
    %cst_129 = arith.constant 0.000000e+00 : f32
    %179 = vector.broadcast %cst_129 : f32 to vector<8x16xf32>
    %180 = arith.subf %179, %175 : vector<8x16xf32>
    %181 = arith.select %178, %180, %176 : vector<8x16xi1>, vector<8x16xf32>
    %182 = arith.mulf %174, %3 : vector<8x16xf32>
    %183 = arith.mulf %181, %1 : vector<8x16xf32>
    %184 = arith.addf %182, %183 : vector<8x16xf32>
    %c0_130 = arith.constant 0 : index
    %c0_131 = arith.constant 0 : index
    %c0_132 = arith.constant 0 : index
    %c3_133 = arith.constant 3 : index
    %c0_134 = arith.constant 0 : index
    %185 = vector.load %arg3[%c0_130, %c0_131, %c0_132, %c3_133, %c0_134] : memref<1x8x1x4x16xf32, #tpu.memory_space<vmem>>, vector<1x8x1x1x16xf32>
    %186 = vector.shape_cast %185 : vector<1x8x1x1x16xf32> to vector<8x16xf32>
    %cst_135 = arith.constant dense<0.000000e+00> : vector<8x8xf32>
    %187 = tpu.matmul %172, %184, %cst_135 {dimension_numbers = #tpu.dot_dimension_numbers<[1], [1], [0], [0], [0, 0, 1, 0], [], []>} : vector<8x16xf32>, vector<8x16xf32>, vector<8x8xf32> -> vector<8x8xf32>
    %cst_136 = arith.constant dense<0xFF800000> : vector<8xf32>
    %188 = vector.multi_reduction <maximumf>, %187, %cst_136 [1] : vector<8x8xf32> to vector<8xf32>
    %189 = vector.shape_cast %188 : vector<8xf32> to vector<8x1xf32>
    %190 = vector.broadcast %189 : vector<8x1xf32> to vector<8x8xf32>
    %191 = arith.subf %187, %190 : vector<8x8xf32>
    %192 = math.exp %191 : vector<8x8xf32>
    %cst_137 = arith.constant dense<0.000000e+00> : vector<8xf32>
    %193 = vector.multi_reduction <add>, %192, %cst_137 [1] : vector<8x8xf32> to vector<8xf32>
    %194 = vector.shape_cast %193 : vector<8xf32> to vector<8x1xf32>
    %195 = tpu.reciprocal %194 : vector<8x1xf32> -> vector<8x1xf32>
    %196 = vector.broadcast %195 : vector<8x1xf32> to vector<8x8xf32>
    %197 = arith.mulf %192, %196 : vector<8x8xf32>
    %c0_138 = arith.constant 0 : index
    %c3_139 = arith.constant 3 : index
    %c0_140 = arith.constant 0 : index
    %c0_141 = arith.constant 0 : index
    %198 = vector.load %arg7[%c0_138, %c3_139, %c0_140, %c0_141] : memref<1x4x8x8xf32, #tpu.memory_space<vmem>>, vector<1x1x8x8xf32>
    %199 = vector.shape_cast %198 : vector<1x1x8x8xf32> to vector<8x8xf32>
    %200 = vector.shape_cast %197 : vector<8x8xf32> to vector<1x1x8x8xf32>
    tpu.vector_store %arg7[%c0_138, %c3_139, %c0_140, %c0_141], %200 {strides = array<i32>} : memref<1x4x8x8xf32, #tpu.memory_space<vmem>>, vector<1x1x8x8xf32>,
    %cst_142 = arith.constant dense<0.000000e+00> : vector<8x16xf32>
    %201 = tpu.matmul %197, %186, %cst_142 {dimension_numbers = #tpu.dot_dimension_numbers<[1], [0], [0], [1], [0, 0, 1, 1], [], []>} : vector<8x8xf32>, vector<8x16xf32>, vector<8x16xf32> -> vector<8x16xf32>
    %c0_143 = arith.constant 0 : index
    %c0_144 = arith.constant 0 : index
    %c3_145 = arith.constant 3 : index
    %c0_146 = arith.constant 0 : index
    %202 = vector.load %arg6[%c0_143, %c0_144, %c3_145, %c0_146] : memref<1x8x4x16xf32, #tpu.memory_space<vmem>>, vector<1x8x1x16xf32>
    %203 = vector.shape_cast %202 : vector<1x8x1x16xf32> to vector<8x16xf32>
    %204 = vector.shape_cast %201 : vector<8x16xf32> to vector<1x8x1x16xf32>
    tpu.vector_store %arg6[%c0_143, %c0_144, %c3_145, %c0_146], %204 {strides = array<i32>} : memref<1x8x4x16xf32, #tpu.memory_space<vmem>>, vector<1x8x1x16xf32>,
    return
  }
  func.func @transform_0(%arg0: i32) -> (i32, i32, i32, i32, i32) {
    %c0_i32 = arith.constant 0 : i32
    %c0_i32_0 = arith.constant 0 : i32
    %c0_i32_1 = arith.constant 0 : i32
    %c0_i32_2 = arith.constant 0 : i32
    %c0_i32_3 = arith.constant 0 : i32
    return %arg0, %c0_i32, %c0_i32_0, %c0_i32_1, %c0_i32_2 : i32, i32, i32, i32, i32
  }
  func.func @transform_1(%arg0: i32) -> (i32, i32, i32, i32, i32) {
    %c0_i32 = arith.constant 0 : i32
    %c1_i32 = arith.constant 1 : i32
    %c0_i32_0 = arith.constant 0 : i32
    %c0_i32_1 = arith.constant 0 : i32
    %c0_i32_2 = arith.constant 0 : i32
    return %arg0, %c0_i32, %c1_i32, %c0_i32_0, %c0_i32_1 : i32, i32, i32, i32, i32
  }
  func.func @transform_2(%arg0: i32) -> (i32, i32, i32, i32, i32) {
    %c0_i32 = arith.constant 0 : i32
    %c2_i32 = arith.constant 2 : i32
    %c0_i32_0 = arith.constant 0 : i32
    %c0_i32_1 = arith.constant 0 : i32
    %c0_i32_2 = arith.constant 0 : i32
    return %arg0, %c0_i32, %c2_i32, %c0_i32_0, %c0_i32_1 : i32, i32, i32, i32, i32
  }
  func.func @transform_3(%arg0: i32) -> (i32, i32, i32) {
    %c0_i32 = arith.constant 0 : i32
    %c0_i32_0 = arith.constant 0 : i32
    %c0_i32_1 = arith.constant 0 : i32
    return %arg0, %c0_i32, %c0_i32_0 : i32, i32, i32
  }
  func.func @transform_4(%arg0: i32) -> (i32, i32, i32) {
    %c0_i32 = arith.constant 0 : i32
    %c0_i32_0 = arith.constant 0 : i32
    %c0_i32_1 = arith.constant 0 : i32
    return %arg0, %c0_i32, %c0_i32_0 : i32, i32, i32
  }
  func.func @transform_5(%arg0: i32) -> (i32, i32, i32, i32) {
    %c0_i32 = arith.constant 0 : i32
    %c0_i32_0 = arith.constant 0 : i32
    %c0_i32_1 = arith.constant 0 : i32
    %c0_i32_2 = arith.constant 0 : i32
    return %arg0, %c0_i32, %c0_i32_0, %c0_i32_1 : i32, i32, i32, i32
  }
  func.func @transform_6(%arg0: i32) -> (i32, i32, i32, i32) {
    %c0_i32 = arith.constant 0 : i32
    %c0_i32_0 = arith.constant 0 : i32
    %c0_i32_1 = arith.constant 0 : i32
    %c0_i32_2 = arith.constant 0 : i32
    return %arg0, %c0_i32, %c0_i32_0, %c0_i32_1 : i32, i32, i32, i32
  }
}

</mosaic_0001>

<llo_original>
// kernel: self_attention_forward.3
$region0: #{self_attention_forward.3}
  #allocation0 [shape = 'u32[]', space=smem, size = 0x4, offset = 0x4, fixed_abs, tag = 'smem constant byte address 0x4 - core index']
  #allocation1 [shape = 'u32[144,128]{1,0:T(1,128)}', space=vmem, size = 0x12000, scoped, tag = 'internal scratch']
  #allocation2 [shape = 'f32[16,192]{1,0:T(8,128)}', space=vmem, size = 0x4000, scoped, tag = 'scratch operand']
  %s0 = inlined_call_operand.vmem [shape: f32[16,32], index: 0, kind: input, shape index: {}]
  %s1 = inlined_call_operand.vmem [shape: f32[32,192], index: 1, kind: input, shape index: {}]
  %s2 = inlined_call_operand.vmem [shape: f32[16,192], index: 2, kind: output, shape index: {}]
  %s3 = sld [smem:[#allocation0]]
  $region26: #{self_attention_forward.3} parent=0
    _
  %s5 = ssub.s32 1, %s3
  %s6 = scalar_select 0, %s5, %s3
  // Predicated region
  $region2: #{self_attention_forward.3} parent=0 // pred_check
    _
  $region3: #{self_attention_forward.3} parent=0 // pred_check_branch
    %8 = sbr.rel (0) target = $region5
  $region4: #{self_attention_forward.3} parent=0 // pred_region
    _
  $region5: #{self_attention_forward.3} parent=0 // pred_fallthru
    _
  // Predicated region
  $region6: #{self_attention_forward.3} parent=0 // pred_check
    _
  $region7: #{self_attention_forward.3} parent=0 // pred_check_branch
    %10 = sbr.rel (0) target = $region9
  $region8: #{self_attention_forward.3} parent=0 // pred_region
    _
  $region9: #{self_attention_forward.3} parent=0 // pred_fallthru
    _
  %p11 = scmp.eq.s32.totalorder 0, 0
  // Predicated region
  $region10: #{self_attention_forward.3} parent=0 // pred_check
    %p12 = pneg %p11
  $region11: #{self_attention_forward.3} parent=0 // pred_check_branch
    %14 = sbr.rel (%p12) target = $region13
  $region12: #{self_attention_forward.3} parent=0 // pred_region
    %15 = vst [vmem:[#allocation2] sm:$0xff] 0.0
    %vm16 = vcmask 523264
    %17 = vst.msk [vmem:[#allocation2 + $0x8] sm:$0xff] %vm16, 0.0
    %18 = vst [vmem:[#allocation2 + $0x10] sm:$0xff] 0.0
    %19 = vst.msk [vmem:[#allocation2 + $0x18] sm:$0xff] %vm16, 0.0
  $region13: #{self_attention_forward.3} parent=0 // pred_fallthru
    _
  %v20 = vld [vmem:[#allocation2] sm:$0xff]
  %v21 = vld [vmem:[#allocation2 + $0x8] sm:$0xff]
  %v22 = vld [vmem:[#allocation2 + $0x10] sm:$0xff]
  %v23 = vld [vmem:[#allocation2 + $0x18] sm:$0xff]
  %v24 = vld [vmem:[%s0] sm:$0xff]
  %v25 = vld [vmem:[%s0 + $0x8] sm:$0xff]
  %v26 = vld [vmem:[%s1] sm:$0xff]
  %v27 = vld [vmem:[%s1 + $0x8] sm:$0xff]
  %v28 = vld [vmem:[%s1 + $0x10] sm:$0xff]
  %v29 = vld [vmem:[%s1 + $0x18] sm:$0xff]
  %v30 = vld [vmem:[%s1 + $0x20] sm:$0xff]
  %v31 = vld [vmem:[%s1 + $0x28] sm:$0xff]
  %v32 = vld [vmem:[%s1 + $0x30] sm:$0xff]
  %v33 = vld [vmem:[%s1 + $0x38] sm:$0xff]
  %vm34 = vcmask 261120
  %v36 = vsel %vm34, %v24, 0
  %v39 = vsel %vm34, %v25, 0
  %41 = vmatprep.subr.mxu0 0.0
  %42 = vmatpush1.msra.mxu0 0.0
  %43 = vmatprep.subr.mxu0 0.0
  %44 = vmatpush1.msra.mxu0 0.0
  %45 = vmatprep.subr.mxu0 0.0
  %46 = vmatpush1.msra.mxu0 0.0
  %47 = vmatprep.subr.mxu0 0.0
  %48 = vmatpush1.msra.mxu0 0.0
  %49 = vmatprep.subr.mxu0 0.0
  %50 = vmatpush1.msra.mxu0 0.0
  %51 = vmatprep.subr.mxu0 0.0
  %52 = vmatpush1.msra.mxu0 0.0
  %53 = vmatprep.subr.mxu0 0.0
  %54 = vmatpush1.msra.mxu0 0.0
  %55 = vmatprep.subr.mxu0 0.0
  %56 = vmatpush1.msra.mxu0 0.0
  %57 = vmatprep.subr.mxu0 0.0
  %58 = vmatpush1.msra.mxu0 0.0
  %59 = vmatprep.subr.mxu0 0.0
  %60 = vmatpush1.msra.mxu0 0.0
  %61 = vmatprep.subr.mxu0 0.0
  %62 = vmatpush1.msra.mxu0 0.0
  %63 = vmatprep.subr.mxu0 0.0
  %64 = vmatpush1.msra.mxu0 0.0
  %65 = vmatprep.subr.mxu0 %v33
  %66 = vmatpush1.msra.mxu0 %v32
  %67 = vmatprep.subr.mxu0 %v31
  %68 = vmatpush1.msra.mxu0 %v30
  %69 = vmatprep.subr.mxu0 %v29
  %70 = vmatpush1.msra.mxu0 %v28
  %71 = vmatprep.subr.mxu0 %v27
  %72 = vmatpush1.msra.mxu0 %v26
  %73 = vmatprep.subr.mxu0 0.0
  %74 = vmatpush2.msra.mxu0 0.0
  %75 = vmatprep.subr.mxu0 0.0
  %76 = vmatpush2.msra.mxu0 0.0
  %77 = vmatprep.subr.mxu0 0.0
  %78 = vmatpush2.msra.mxu0 0.0
  %79 = vmatprep.subr.mxu0 0.0
  %80 = vmatpush2.msra.mxu0 0.0
  %81 = vmatprep.subr.mxu0 0.0
  %82 = vmatpush2.msra.mxu0 0.0
  %83 = vmatprep.subr.mxu0 0.0
  %84 = vmatpush2.msra.mxu0 0.0
  %85 = vmatprep.subr.mxu0 0.0
  %86 = vmatpush2.msra.mxu0 0.0
  %87 = vmatprep.subr.mxu0 0.0
  %88 = vmatpush2.msra.mxu0 0.0
  %89 = vmatprep.subr.mxu0 0.0
  %90 = vmatpush2.msra.mxu0 0.0
  %91 = vmatprep.subr.mxu0 0.0
  %92 = vmatpush2.msra.mxu0 0.0
  %93 = vmatprep.subr.mxu0 0.0
  %94 = vmatpush2.msra.mxu0 0.0
  %95 = vmatprep.subr.mxu0 0.0
  %96 = vmatpush2.msra.mxu0 0.0
  %97 = vmatprep.subr.mxu0 0.0
  %98 = vmatpush2.msra.mxu0 0.0
  %99 = vmatprep.subr.mxu0 0.0
  %100 = vmatpush2.msra.mxu0 0.0
  %101 = vmatprep.subr.mxu0 0.0
  %102 = vmatpush2.msra.mxu0 0.0
  %103 = vmatprep.subr.mxu0 0.0
  %104 = vmatpush2.msra.mxu0 0.0
  %105 = vmatprep.mubr.f32.mxu0 0.0
  %106 = vmatmul.mubr.f32.gmra.mxu0 %v36
  %v107 = vpop.f32.mrf.mxu0
  %v108 = vadd.f32 0.0, %v107
  %v109 = vpop.f32.mrf.mxu0
  %v110 = vadd.f32 0.0, %v109
  %111 = vmatprep.mubr.f32.mxu0 0.0
  %112 = vmatmul.mubr.f32.gmra.mxu0 %v39
  %v113 = vpop.f32.mrf.mxu0
  %v114 = vadd.f32 0.0, %v113
  %v115 = vpop.f32.mrf.mxu0
  %v116 = vadd.f32 0.0, %v115
  %117 = vdwg.mxu0
  %v118 = vadd.f32 %v20, %v108
  %v119 = vadd.f32 %v21, %v110
  %v120 = vadd.f32 %v22, %v114
  %v121 = vadd.f32 %v23, %v116
  %122 = vst [vmem:[#allocation2] sm:$0xff] %v118
  %vm123 = vcmask 523264
  %124 = vst.msk [vmem:[#allocation2 + $0x8] sm:$0xff] %vm123, %v119
  %125 = vst [vmem:[#allocation2 + $0x10] sm:$0xff] %v120
  %126 = vst.msk [vmem:[#allocation2 + $0x18] sm:$0xff] %vm123, %v121
  // Predicated region
  $region14: #{self_attention_forward.3} parent=0 // pred_check
    %p127 = pneg %p11
  $region15: #{self_attention_forward.3} parent=0 // pred_check_branch
    %129 = sbr.rel (%p127) target = $region17
  $region16: #{self_attention_forward.3} parent=0 // pred_region
    %v130 = vld [vmem:[#allocation2] sm:$0xff]
    %v131 = vld [vmem:[#allocation2 + $0x8] sm:$0xff]
    %v132 = vld [vmem:[#allocation2 + $0x10] sm:$0xff]
    %v133 = vld [vmem:[#allocation2 + $0x18] sm:$0xff]
    %134 = vst [vmem:[%s2] sm:$0xff] %v130
    %135 = vst.msk [vmem:[%s2 + $0x8] sm:$0xff] %vm123, %v131
    %136 = vst [vmem:[%s2 + $0x10] sm:$0xff] %v132
    %137 = vst.msk [vmem:[%s2 + $0x18] sm:$0xff] %vm123, %v133
  $region17: #{self_attention_forward.3} parent=0 // pred_fallthru
    _
  // Predicated region
  $region18: #{self_attention_forward.3} parent=0 // pred_check
    _
  $region19: #{self_attention_forward.3} parent=0 // pred_check_branch
    %139 = sbr.rel (0) target = $region21
  $region20: #{self_attention_forward.3} parent=0 // pred_region
    _
  $region21: #{self_attention_forward.3} parent=0 // pred_fallthru
    _
  // Predicated region
  $region22: #{self_attention_forward.3} parent=0 // pred_check
    _
  $region23: #{self_attention_forward.3} parent=0 // pred_check_branch
    %141 = sbr.rel (0) target = $region25
  $region24: #{self_attention_forward.3} parent=0 // pred_region
    _
  $region25: #{self_attention_forward.3} parent=0 // pred_fallthru
    _

// kernel: self_attention_forward.5
$region0: #{self_attention_forward.5}
  #allocation0 [shape = 'u32[]', space=smem, size = 0x4, offset = 0x4, fixed_abs, tag = 'smem constant byte address 0x4 - core index']
  #allocation1 [shape = 'u32[144,128]{1,0:T(1,128)}', space=vmem, size = 0x12000, scoped, tag = 'internal scratch']
  #allocation2 [shape = 'f32[16,32]{1,0:T(8,128)}', space=vmem, size = 0x2000, scoped, tag = 'scratch operand']
  %s0 = inlined_call_operand.vmem [shape: f32[16,64], index: 0, kind: input, shape index: {}]
  %s1 = inlined_call_operand.vmem [shape: f32[64,32], index: 1, kind: input, shape index: {}]
  %s2 = inlined_call_operand.vmem [shape: f32[1,32], index: 2, kind: input, shape index: {}]
  %s3 = inlined_call_operand.hbm [shape: f32[16,32], index: 3, kind: output, shape index: {}]
  %s4 = sld [smem:[#allocation0]]
  $region30: #{self_attention_forward.5} parent=0
    _
  %s6 = ssub.s32 1, %s4
  %s7 = scalar_select 0, %s6, %s4
  $region1: #{self_attention_forward.5} parent=0
    #allocation3 [shape = 'u8[8192]{0}', space=vmem, size = 0x2000, scoped, tag = 'output window, operand 0, single buffered']
    #allocation4 [shape = 's32[1]{0}', space=sflag, size = 0x4, scoped, tag = 'scoped memory for self_attention_forward.5']
    %8 = vsyncpa [#allocation4], 0
    // Predicated region
    $region2: #{self_attention_forward.5} parent=1 // pred_check
      _
    $region3: #{self_attention_forward.5} parent=1 // pred_check_branch
      %10 = sbr.rel (0) target = $region5
    $region4: #{self_attention_forward.5} parent=1 // pred_region
      _
    $region5: #{self_attention_forward.5} parent=1 // pred_fallthru
      _
    // Predicated region
    $region6: #{self_attention_forward.5} parent=1 // pred_check
      _
    $region7: #{self_attention_forward.5} parent=1 // pred_check_branch
      %12 = sbr.rel (0) target = $region9
    $region8: #{self_attention_forward.5} parent=1 // pred_region
      _
    $region9: #{self_attention_forward.5} parent=1 // pred_fallthru
      _
    // Predicated region
    $region10: #{self_attention_forward.5} parent=1 // pred_check
      _
    $region11: #{self_attention_forward.5} parent=1 // pred_check_branch
      %14 = sbr.rel (0) target = $region13
    $region12: #{self_attention_forward.5} parent=1 // pred_region
      _
    $region13: #{self_attention_forward.5} parent=1 // pred_fallthru
      _
    %p15 = scmp.eq.s32.totalorder 0, 0
    // Predicated region
    $region14: #{self_attention_forward.5} parent=1 // pred_check
      %p16 = pneg %p15
    $region15: #{self_attention_forward.5} parent=1 // pred_check_branch
      %18 = sbr.rel (%p16) target = $region17
    $region16: #{self_attention_forward.5} parent=1 // pred_region
      %vm19 = vcmask 261120
      %20 = vst.msk [vmem:[#allocation2] sm:$0xff] %vm19, 0.0
      %21 = vst.msk [vmem:[#allocation2 + $0x8] sm:$0xff] %vm19, 0.0
    $region17: #{self_attention_forward.5} parent=1 // pred_fallthru
      _
    %v22 = vld [vmem:[#allocation2] sm:$0xff]
    %v23 = vld [vmem:[#allocation2 + $0x8] sm:$0xff]
    %v24 = vld [vmem:[%s0] sm:$0xff]
    %v25 = vld [vmem:[%s0 + $0x8] sm:$0xff]
    %v26 = vld [vmem:[%s1] sm:$0xff]
    %v27 = vld [vmem:[%s1 + $0x8] sm:$0xff]
    %v28 = vld [vmem:[%s1 + $0x10] sm:$0xff]
    %v29 = vld [vmem:[%s1 + $0x18] sm:$0xff]
    %v30 = vld [vmem:[%s1 + $0x20] sm:$0xff]
    %v31 = vld [vmem:[%s1 + $0x28] sm:$0xff]
    %v32 = vld [vmem:[%s1 + $0x30] sm:$0xff]
    %v33 = vld [vmem:[%s1 + $0x38] sm:$0xff]
    %vm34 = vcmask 523264
    %v36 = vsel %vm34, %v24, 0
    %v39 = vsel %vm34, %v25, 0
    %41 = vmatprep.subr.mxu0 0.0
    %42 = vmatpush1.msra.mxu0 0.0
    %43 = vmatprep.subr.mxu0 0.0
    %44 = vmatpush1.msra.mxu0 0.0
    %45 = vmatprep.subr.mxu0 0.0
    %46 = vmatpush1.msra.mxu0 0.0
    %47 = vmatprep.subr.mxu0 0.0
    %48 = vmatpush1.msra.mxu0 0.0
    %49 = vmatprep.subr.mxu0 0.0
    %50 = vmatpush1.msra.mxu0 0.0
    %51 = vmatprep.subr.mxu0 0.0
    %52 = vmatpush1.msra.mxu0 0.0
    %53 = vmatprep.subr.mxu0 0.0
    %54 = vmatpush1.msra.mxu0 0.0
    %55 = vmatprep.subr.mxu0 0.0
    %56 = vmatpush1.msra.mxu0 0.0
    %57 = vmatprep.subr.mxu0 0.0
    %58 = vmatpush1.msra.mxu0 %v33
    %59 = vmatprep.subr.mxu0 0.0
    %60 = vmatpush1.msra.mxu0 %v32
    %61 = vmatprep.subr.mxu0 0.0
    %62 = vmatpush1.msra.mxu0 %v31
    %63 = vmatprep.subr.mxu0 0.0
    %64 = vmatpush1.msra.mxu0 %v30
    %65 = vmatprep.subr.mxu0 0.0
    %66 = vmatpush1.msra.mxu0 %v29
    %67 = vmatprep.subr.mxu0 0.0
    %68 = vmatpush1.msra.mxu0 %v28
    %69 = vmatprep.subr.mxu0 0.0
    %70 = vmatpush1.msra.mxu0 %v27
    %71 = vmatprep.subr.mxu0 0.0
    %72 = vmatpush1.msra.mxu0 %v26
    %73 = vmatprep.subr.mxu0 0.0
    %74 = vmatpush2.msra.mxu0 0.0
    %75 = vmatprep.subr.mxu0 0.0
    %76 = vmatpush2.msra.mxu0 0.0
    %77 = vmatprep.subr.mxu0 0.0
    %78 = vmatpush2.msra.mxu0 0.0
    %79 = vmatprep.subr.mxu0 0.0
    %80 = vmatpush2.msra.mxu0 0.0
    %81 = vmatprep.subr.mxu0 0.0
    %82 = vmatpush2.msra.mxu0 0.0
    %83 = vmatprep.subr.mxu0 0.0
    %84 = vmatpush2.msra.mxu0 0.0
    %85 = vmatprep.subr.mxu0 0.0
    %86 = vmatpush2.msra.mxu0 0.0
    %87 = vmatprep.subr.mxu0 0.0
    %88 = vmatpush2.msra.mxu0 0.0
    %89 = vmatprep.subr.mxu0 0.0
    %90 = vmatpush2.msra.mxu0 0.0
    %91 = vmatprep.subr.mxu0 0.0
    %92 = vmatpush2.msra.mxu0 0.0
    %93 = vmatprep.subr.mxu0 0.0
    %94 = vmatpush2.msra.mxu0 0.0
    %95 = vmatprep.subr.mxu0 0.0
    %96 = vmatpush2.msra.mxu0 0.0
    %97 = vmatprep.subr.mxu0 0.0
    %98 = vmatpush2.msra.mxu0 0.0
    %99 = vmatprep.subr.mxu0 0.0
    %100 = vmatpush2.msra.mxu0 0.0
    %101 = vmatprep.subr.mxu0 0.0
    %102 = vmatpush2.msra.mxu0 0.0
    %103 = vmatprep.subr.mxu0 0.0
    %104 = vmatpush2.msra.mxu0 0.0
    %105 = vmatprep.mubr.f32.mxu0 0.0
    %106 = vmatmul.mubr.f32.gmra.mxu0 %v36
    %v107 = vpop.f32.mrf.mxu0
    %v108 = vadd.f32 0.0, %v107
    %v109 = vpop.f32.mrf.mxu0
    %110 = vmatprep.mubr.f32.mxu0 0.0
    %111 = vmatmul.mubr.f32.gmra.mxu0 %v39
    %v112 = vpop.f32.mrf.mxu0
    %v113 = vadd.f32 0.0, %v112
    %v114 = vpop.f32.mrf.mxu0
    %115 = vdwg.mxu0
    %v116 = vadd.f32 %v22, %v108
    %v117 = vadd.f32 %v23, %v113
    %vm118 = vcmask 261120
    %119 = vst.msk [vmem:[#allocation2] sm:$0xff] %vm118, %v116
    %120 = vst.msk [vmem:[#allocation2 + $0x8] sm:$0xff] %vm118, %v117
    // Predicated region
    $region18: #{self_attention_forward.5} parent=1 // pred_check
      %p121 = pneg %p15
    $region19: #{self_attention_forward.5} parent=1 // pred_check_branch
      %123 = sbr.rel (%p121) target = $region21
    $region20: #{self_attention_forward.5} parent=1 // pred_region
      %v124 = vld [vmem:[#allocation2] sm:$0xff]
      %v125 = vld [vmem:[#allocation2 + $0x8] sm:$0xff]
      %v126 = vld [vmem:[%s2] sm:$0x1]
      %v128 = vlaneseq
      %v129 = vshrl.u32 %v128, 7
      %v130 = vsub.s32 0, %v129
      %v131 = vrot.slane %v126, %v130
      %v133 = vadd.f32 %v124, %v131
      %v134 = vadd.f32 %v125, %v131
      %135 = vst.msk [vmem:[#allocation3] sm:$0xff] %vm118, %v133
      %136 = vst.msk [vmem:[#allocation3 + $0x8] sm:$0xff] %vm118, %v134
    $region21: #{self_attention_forward.5} parent=1 // pred_fallthru
      _
    // Predicated region
    $region22: #{self_attention_forward.5} parent=1 // pred_check
      _
    $region23: #{self_attention_forward.5} parent=1 // pred_check_branch
      %138 = sbr.rel (0) target = $region25
    $region24: #{self_attention_forward.5} parent=1 // pred_region
      %s140 = ssub.s32 256, 256
      %141 = vsyncadd [#allocation4], %s140
      %s142 = sshll.u32 [#allocation3], 4
      %s143 = int_to_ptr.vmem [resolvable:$true] %s142
      %148 = dma.vmem_to_hbm [thread:$0]  %s143, 256, %s3, [#allocation4], 128, 128, 8
    $region25: #{self_attention_forward.5} parent=1 // pred_fallthru
      _
    // Predicated region
    $region26: #{self_attention_forward.5} parent=1 // pred_check
      _
    $region27: #{self_attention_forward.5} parent=1 // pred_check_branch
      %150 = sbr.rel (0) target = $region29
    $region28: #{self_attention_forward.5} parent=1 // pred_region
      %151 = dma.done [#allocation4], 256
    $region29: #{self_attention_forward.5} parent=1 // pred_fallthru
      _
    %152 = vsyncpa [#allocation4], 1

// kernel: self_attention_forward.4
$region0: #{self_attention_forward.4}
  #allocation0 [shape = 'u32[]', space=smem, size = 0x4, offset = 0x4, fixed_abs, tag = 'smem constant byte address 0x4 - core index']
  #allocation1 [shape = 'u32[144,128]{1,0:T(1,128)}', space=vmem, size = 0x12000, scoped, tag = 'internal scratch']
  %s0 = inlined_call_operand.vmem [shape: f32[2,8,3,4,16], index: 0, kind: input, shape index: {}, may-alias: {0,1,2}]
  %s1 = inlined_call_operand.vmem [shape: f32[2,8,3,4,16], index: 1, kind: input, shape index: {}, may-alias: {0,1,2}]
  %s2 = inlined_call_operand.vmem [shape: f32[2,8,3,4,16], index: 2, kind: input, shape index: {}, may-alias: {0,1,2}]
  %s3 = inlined_call_operand.vmem [shape: f32[2,8,16], index: 3, kind: input, shape index: {}]
  %s4 = inlined_call_operand.vmem [shape: f32[2,8,16], index: 4, kind: input, shape index: {}]
  %s5 = inlined_call_operand.vmem [shape: f32[2,8,4,16], index: 5, kind: output, shape index: {0}]
  %s6 = inlined_call_operand.hbm [shape: f32[2,4,8,8], index: 6, kind: output, shape index: {1}]
  %7 = xla_tuple %s5, %s6
  %s8 = sld [smem:[#allocation0]]
  $region184: #{self_attention_forward.4} parent=0
    _
  %s10 = ssub.s32 1, %s8
  %s11 = scalar_select 0, %s10, %s8
  $region1: #{self_attention_forward.4} parent=0
    #allocation2 [shape = 'u8[32768]{0}', space=vmem, size = 0x8000, scoped, tag = 'input window, operand 0']
    #allocation3 [shape = 'u8[32768]{0}', space=vmem, size = 0x8000, scoped, tag = 'input window, operand 1']
    #allocation4 [shape = 'u8[32768]{0}', space=vmem, size = 0x8000, scoped, tag = 'input window, operand 2']
    #allocation5 [shape = 'u8[32768]{0}', space=vmem, size = 0x8000, scoped, tag = 'output window, operand 1']
    #allocation6 [shape = 's32[2]{0}', space=sflag, size = 0x8, scoped, tag = 'scoped memory for self_attention_forward.4']
    %12 = vsyncpa [#allocation6], 0
    %s13 = scalar_lea.sflag [#allocation6], 1
    %14 = vsyncpa %s13, 0
    loop: start=0, step=1, limit=4
    $region2: #{self_attention_forward.4} parent=1 // loop_pre_header
      _
    $region3: #{self_attention_forward.4} parent=1 // loop_header
      %s16 = sphi 0, %s20
      %p17 = scmp.ge.s32.totalorder %s16, 4
      %s26 = sphi 0, %s28
      %s29 = sphi 0, %s26
      %s30 = sphi 0, %s29
      %s46 = sphi 0, %s30
      %s52 = sphi 0, %s54
      %s55 = sphi 0, %s52
      %s56 = sphi 0, %s55
      %s72 = sphi 0, %s56
      %s78 = sphi 0, %s80
      %s81 = sphi 0, %s78
      %s82 = sphi 0, %s81
      %s98 = sphi 0, %s82
      %s104 = sphi 0, %s106
      %s107 = sphi 0, %s104
      %s108 = sphi 0, %s107
      %s124 = sphi 0, %s108
      %s130 = sphi 0, %s132
      %s133 = sphi 0, %s130
      %s134 = sphi 0, %s133
      %s150 = sphi 0, %s134
      %s156 = sphi 0, %s158
      %s159 = sphi 0, %s156
      %s160 = sphi 0, %s159
      %s176 = sphi 0, %s160
      %s182 = sphi 0, %s184
      %s185 = sphi 0, %s182
      %s186 = sphi 0, %s185
      %s202 = sphi 0, %s186
    $region4: #{self_attention_forward.4} parent=1 // loop_header_branch
      %19 = sbr.rel (%p17) target = $region8
    $region5: #{self_attention_forward.4} parent=1 // loop_body
      %s21 = ssub.s32 %s16, 1
      %s22 = ssub.s32 %s16, 2
      %s23 = sadd.s32 %s16, 1
      %s24 = ssub.s32 %s16, %s23
      %p25 = scmp.eq.s32.totalorder %s24, 0
      %s27 = sadd.s32 %s26, 1
      %s28 = scalar_select %p25, %s26, %s27
      %p31 = pneg %p25
      %p32 = scmp.eq.s32.totalorder %s16, 1
      %p33 = por %p31, %p32
      %p34 = scmp.ne.s32.totalorder %s26, %s29
      %p35 = scmp.eq.s32.totalorder %s16, 0
      %p36 = por %p34, %p35
      %p37 = scmp.ne.s32.totalorder %s26, %s29
      %p38 = scmp.eq.s32.totalorder %s21, 1
      %p39 = por %p37, %p38
      %p40 = scmp.ne.s32.totalorder %s29, %s30
      %p41 = scmp.eq.s32.totalorder %s21, 0
      %p42 = por %p40, %p41
      %p43 = scmp.ne.s32.totalorder %s29, %s30
      %p44 = scmp.eq.s32.totalorder %s22, 1
      %p45 = por %p43, %p44
      %p47 = scmp.ne.s32.totalorder %s30, %s46
      %p48 = scmp.eq.s32.totalorder %s22, 0
      %p49 = por %p47, %p48
      %s50 = ssub.s32 %s16, %s23
      %p51 = scmp.eq.s32.totalorder %s50, 0
      %s53 = sadd.s32 %s52, 1
      %s54 = scalar_select %p51, %s52, %s53
      %p57 = pneg %p51
      %p58 = scmp.eq.s32.totalorder %s16, 1
      %p59 = por %p57, %p58
      %p60 = scmp.ne.s32.totalorder %s52, %s55
      %p61 = scmp.eq.s32.totalorder %s16, 0
      %p62 = por %p60, %p61
      %p63 = scmp.ne.s32.totalorder %s52, %s55
      %p64 = scmp.eq.s32.totalorder %s21, 1
      %p65 = por %p63, %p64
      %p66 = scmp.ne.s32.totalorder %s55, %s56
      %p67 = scmp.eq.s32.totalorder %s21, 0
      %p68 = por %p66, %p67
      %p69 = scmp.ne.s32.totalorder %s55, %s56
      %p70 = scmp.eq.s32.totalorder %s22, 1
      %p71 = por %p69, %p70
      %p73 = scmp.ne.s32.totalorder %s56, %s72
      %p74 = scmp.eq.s32.totalorder %s22, 0
      %p75 = por %p73, %p74
      %s76 = ssub.s32 %s16, %s23
      %p77 = scmp.eq.s32.totalorder %s76, 0
      %s79 = sadd.s32 %s78, 1
      %s80 = scalar_select %p77, %s78, %s79
      %p83 = pneg %p77
      %p84 = scmp.eq.s32.totalorder %s16, 1
      %p85 = por %p83, %p84
      %p86 = scmp.ne.s32.totalorder %s78, %s81
      %p87 = scmp.eq.s32.totalorder %s16, 0
      %p88 = por %p86, %p87
      %p89 = scmp.ne.s32.totalorder %s78, %s81
      %p90 = scmp.eq.s32.totalorder %s21, 1
      %p91 = por %p89, %p90
      %p92 = scmp.ne.s32.totalorder %s81, %s82
      %p93 = scmp.eq.s32.totalorder %s21, 0
      %p94 = por %p92, %p93
      %p95 = scmp.ne.s32.totalorder %s81, %s82
      %p96 = scmp.eq.s32.totalorder %s22, 1
      %p97 = por %p95, %p96
      %p99 = scmp.ne.s32.totalorder %s82, %s98
      %p100 = scmp.eq.s32.totalorder %s22, 0
      %p101 = por %p99, %p100
      %s102 = ssub.s32 %s16, %s23
      %p103 = scmp.eq.s32.totalorder %s102, 0
      %s105 = sadd.s32 %s104, 1
      %s106 = scalar_select %p103, %s104, %s105
      %p109 = pneg %p103
      %p110 = scmp.eq.s32.totalorder %s16, 1
      %p111 = por %p109, %p110
      %p112 = scmp.ne.s32.totalorder %s104, %s107
      %p113 = scmp.eq.s32.totalorder %s16, 0
      %p114 = por %p112, %p113
      %p115 = scmp.ne.s32.totalorder %s104, %s107
      %p116 = scmp.eq.s32.totalorder %s21, 1
      %p117 = por %p115, %p116
      %p118 = scmp.ne.s32.totalorder %s107, %s108
      %p119 = scmp.eq.s32.totalorder %s21, 0
      %p120 = por %p118, %p119
      %p121 = scmp.ne.s32.totalorder %s107, %s108
      %p122 = scmp.eq.s32.totalorder %s22, 1
      %p123 = por %p121, %p122
      %p125 = scmp.ne.s32.totalorder %s108, %s124
      %p126 = scmp.eq.s32.totalorder %s22, 0
      %p127 = por %p125, %p126
      %s128 = ssub.s32 %s16, %s23
      %p129 = scmp.eq.s32.totalorder %s128, 0
      %s131 = sadd.s32 %s130, 1
      %s132 = scalar_select %p129, %s130, %s131
      %p135 = pneg %p129
      %p136 = scmp.eq.s32.totalorder %s16, 1
      %p137 = por %p135, %p136
      %p138 = scmp.ne.s32.totalorder %s130, %s133
      %p139 = scmp.eq.s32.totalorder %s16, 0
      %p140 = por %p138, %p139
      %p141 = scmp.ne.s32.totalorder %s130, %s133
      %p142 = scmp.eq.s32.totalorder %s21, 1
      %p143 = por %p141, %p142
      %p144 = scmp.ne.s32.totalorder %s133, %s134
      %p145 = scmp.eq.s32.totalorder %s21, 0
      %p146 = por %p144, %p145
      %p147 = scmp.ne.s32.totalorder %s133, %s134
      %p148 = scmp.eq.s32.totalorder %s22, 1
      %p149 = por %p147, %p148
      %p151 = scmp.ne.s32.totalorder %s134, %s150
      %p152 = scmp.eq.s32.totalorder %s22, 0
      %p153 = por %p151, %p152
      %s154 = ssub.s32 %s16, %s23
      %p155 = scmp.eq.s32.totalorder %s154, 0
      %s157 = sadd.s32 %s156, 1
      %s158 = scalar_select %p155, %s156, %s157
      %p161 = pneg %p155
      %p162 = scmp.eq.s32.totalorder %s16, 1
      %p163 = por %p161, %p162
      %p164 = scmp.ne.s32.totalorder %s156, %s159
      %p165 = scmp.eq.s32.totalorder %s16, 0
      %p166 = por %p164, %p165
      %p167 = scmp.ne.s32.totalorder %s156, %s159
      %p168 = scmp.eq.s32.totalorder %s21, 1
      %p169 = por %p167, %p168
      %p170 = scmp.ne.s32.totalorder %s159, %s160
      %p171 = scmp.eq.s32.totalorder %s21, 0
      %p172 = por %p170, %p171
      %p173 = scmp.ne.s32.totalorder %s159, %s160
      %p174 = scmp.eq.s32.totalorder %s22, 1
      %p175 = por %p173, %p174
      %p177 = scmp.ne.s32.totalorder %s160, %s176
      %p178 = scmp.eq.s32.totalorder %s22, 0
      %p179 = por %p177, %p178
      %s180 = ssub.s32 %s16, %s23
      %p181 = scmp.eq.s32.totalorder %s180, 0
      %s183 = sadd.s32 %s182, 1
      %s184 = scalar_select %p181, %s182, %s183
      %p187 = pneg %p181
      %p188 = scmp.eq.s32.totalorder %s16, 1
      %p189 = por %p187, %p188
      %p190 = scmp.ne.s32.totalorder %s182, %s185
      %p191 = scmp.eq.s32.totalorder %s16, 0
      %p192 = por %p190, %p191
      %p193 = scmp.ne.s32.totalorder %s182, %s185
      %p194 = scmp.eq.s32.totalorder %s21, 1
      %p195 = por %p193, %p194
      %p196 = scmp.ne.s32.totalorder %s185, %s186
      %p197 = scmp.eq.s32.totalorder %s21, 0
      %p198 = por %p196, %p197
      %p199 = scmp.ne.s32.totalorder %s185, %s186
      %p200 = scmp.eq.s32.totalorder %s22, 1
      %p201 = por %p199, %p200
      %p203 = scmp.ne.s32.totalorder %s186, %s202
      %p204 = scmp.eq.s32.totalorder %s22, 0
      %p205 = por %p203, %p204
      %p206 = scmp.le.s32.totalorder 1, %s16
      %p207 = scmp.lt.s32.totalorder %s16, 3
      %p208 = pnand %p206, %p207
      %p209 = pneg %p208
      // Predicated region
      $region9: #{self_attention_forward.4} parent=5 // pred_check
        _
      $region10: #{self_attention_forward.4} parent=5 // pred_check_branch
        %211 = sbr.rel (%p208) target = $region12
      $region11: #{self_attention_forward.4} parent=5 // pred_region
        %s212 = ssub.s32 %s16, 1
      $region12: #{self_attention_forward.4} parent=5 // pred_fallthru
        _
      %p213 = scmp.lt.s32.totalorder %s16, 2
      // Predicated region
      $region13: #{self_attention_forward.4} parent=5 // pred_check
        %p214 = pneg %p213
      $region14: #{self_attention_forward.4} parent=5 // pred_check_branch
        %216 = sbr.rel (%p214) target = $region16
      $region15: #{self_attention_forward.4} parent=5 // pred_region
        // Predicated region
        $region17: #{self_attention_forward.4} parent=15 // pred_check
          %p217 = pneg %p36
        $region18: #{self_attention_forward.4} parent=15 // pred_check_branch
          %219 = sbr.rel (%p217) target = $region20
        $region19: #{self_attention_forward.4} parent=15 // pred_region
          %s220 = sand.u32 %s26, 1
          %s221 = sand.u32 %s26, 1
          %s222 = smul.addr %s221, 32
          %s223 = scalar_lea.vmem [#allocation2], %s222
          %s224 = smul.addr %s16, 24
          %s225 = smul.addr %s224, 4
          %s226 = scalar_lea.vmem %s0, %s225
          // Predicated region
          $region21: #{self_attention_forward.4} parent=19 // pred_check
            _
          $region22: #{self_attention_forward.4} parent=19 // pred_check_branch
            %228 = sbr.rel (0) target = $region24
          $region23: #{self_attention_forward.4} parent=19 // pred_region
            // Predicated region
            $region25: #{self_attention_forward.4} parent=23 // pred_check
              _
            $region26: #{self_attention_forward.4} parent=23 // pred_check_branch
              %230 = sbr.rel target = $region28
            $region27: #{self_attention_forward.4} parent=23 // pred_region
              // Predicated region
              $region40: #{self_attention_forward.4} parent=27 // pred_check
                _
              $region41: #{self_attention_forward.4} parent=27 // pred_check_branch
                %260 = sbr.rel (0) target = $region43
              $region42: #{self_attention_forward.4} parent=27 // pred_region
                loop: start=0, step=1, limit=1
                $region44: #{self_attention_forward.4} parent=42 // loop_pre_header
                  _
                $region45: #{self_attention_forward.4} parent=42 // loop_header
                  %s262 = sphi 0, %s266
                  %p263 = scmp.ge.s32.totalorder %s262, 1
                  %s267 = sphi %s226, %s226
                  %s268 = sphi %s223, %s223
                $region46: #{self_attention_forward.4} parent=42 // loop_header_branch
                  %265 = sbr.rel (%p263) target = $region50
                $region47: #{self_attention_forward.4} parent=42 // loop_body
                  _
                $region48: #{self_attention_forward.4} parent=42 // loop_footer
                  %s266 = sadd.s32 1, %s262
                $region49: #{self_attention_forward.4} parent=42 // loop_footer_branch
                  %261 = sbr.rel target = $region45
                $region50: #{self_attention_forward.4} parent=42 // loop_exit
                  _
                %s270 = ssub.s32 16, 1
                loop: start=0, step=1, limit=1
                $region51: #{self_attention_forward.4} parent=42 // loop_pre_header
                  _
                $region52: #{self_attention_forward.4} parent=42 // loop_header
                  %s272 = sphi 0, %s276
                  %p273 = scmp.ge.s32.totalorder %s272, 1
                  %s277 = sphi %s226, %s226
                  %s278 = sphi %s223, %s223
                $region53: #{self_attention_forward.4} parent=42 // loop_header_branch
                  %275 = sbr.rel (%p273) target = $region57
                $region54: #{self_attention_forward.4} parent=42 // loop_body
                  %v279 = vld [vmem:[%s277] sm:%s270]
                  %280 = vst [vmem:[%s278] sm:%s270] %v279
                  %v281 = vld [vmem:[%s277 + $0xc] sm:%s270]
                  %282 = vst [vmem:[%s278 + $0x4] sm:%s270] %v281
                  %v283 = vld [vmem:[%s277 + $0x18] sm:%s270]
                  %284 = vst [vmem:[%s278 + $0x8] sm:%s270] %v283
                  %v285 = vld [vmem:[%s277 + $0x24] sm:%s270]
                  %286 = vst [vmem:[%s278 + $0xc] sm:%s270] %v285
                  %v287 = vld [vmem:[%s277 + $0x30] sm:%s270]
                  %288 = vst [vmem:[%s278 + $0x10] sm:%s270] %v287
                  %v289 = vld [vmem:[%s277 + $0x3c] sm:%s270]
                  %290 = vst [vmem:[%s278 + $0x14] sm:%s270] %v289
                  %v291 = vld [vmem:[%s277 + $0x48] sm:%s270]
                  %292 = vst [vmem:[%s278 + $0x18] sm:%s270] %v291
                  %v293 = vld [vmem:[%s277 + $0x54] sm:%s270]
                  %294 = vst [vmem:[%s278 + $0x1c] sm:%s270] %v293
                $region55: #{self_attention_forward.4} parent=42 // loop_footer
                  %s276 = sadd.s32 1, %s272
                $region56: #{self_attention_forward.4} parent=42 // loop_footer_branch
                  %271 = sbr.rel target = $region52
                $region57: #{self_attention_forward.4} parent=42 // loop_exit
                  _
              $region43: #{self_attention_forward.4} parent=27 // pred_fallthru
                _
            $region28: #{self_attention_forward.4} parent=23 // pred_fallthru
              _
            // Predicated region
            $region29: #{self_attention_forward.4} parent=23 // pred_check
              _
            $region30: #{self_attention_forward.4} parent=23 // pred_check_branch
              %232 = sbr.rel (0) target = $region32
            $region31: #{self_attention_forward.4} parent=23 // pred_region
              %s234 = ssub.s32 16, 1
              loop: start=0, step=1, limit=1
              $region33: #{self_attention_forward.4} parent=31 // loop_pre_header
                _
              $region34: #{self_attention_forward.4} parent=31 // loop_header
                %s236 = sphi 0, %s240
                %p237 = scmp.ge.s32.totalorder %s236, 1
                %s241 = sphi %s226, %s226
                %s242 = sphi %s223, %s223
              $region35: #{self_attention_forward.4} parent=31 // loop_header_branch
                %239 = sbr.rel (%p237) target = $region39
              $region36: #{self_attention_forward.4} parent=31 // loop_body
                %v243 = vld [vmem:[%s241] sm:%s234]
                %244 = vst [vmem:[%s242] sm:%s234] %v243
                %v245 = vld [vmem:[%s241 + $0xc] sm:%s234]
                %246 = vst [vmem:[%s242 + $0x4] sm:%s234] %v245
                %v247 = vld [vmem:[%s241 + $0x18] sm:%s234]
                %248 = vst [vmem:[%s242 + $0x8] sm:%s234] %v247
                %v249 = vld [vmem:[%s241 + $0x24] sm:%s234]
                %250 = vst [vmem:[%s242 + $0xc] sm:%s234] %v249
                %v251 = vld [vmem:[%s241 + $0x30] sm:%s234]
                %252 = vst [vmem:[%s242 + $0x10] sm:%s234] %v251
                %v253 = vld [vmem:[%s241 + $0x3c] sm:%s234]
                %254 = vst [vmem:[%s242 + $0x14] sm:%s234] %v253
                %v255 = vld [vmem:[%s241 + $0x48] sm:%s234]
                %256 = vst [vmem:[%s242 + $0x18] sm:%s234] %v255
                %v257 = vld [vmem:[%s241 + $0x54] sm:%s234]
                %258 = vst [vmem:[%s242 + $0x1c] sm:%s234] %v257
              $region37: #{self_attention_forward.4} parent=31 // loop_footer
                %s240 = sadd.s32 1, %s236
              $region38: #{self_attention_forward.4} parent=31 // loop_footer_branch
                %235 = sbr.rel target = $region34
              $region39: #{self_attention_forward.4} parent=31 // loop_exit
                _
            $region32: #{self_attention_forward.4} parent=23 // pred_fallthru
              _
          $region24: #{self_attention_forward.4} parent=19 // pred_fallthru
            _
          %295 = vnop
        $region20: #{self_attention_forward.4} parent=15 // pred_fallthru
          _
        // Predicated region
        $region58: #{self_attention_forward.4} parent=15 // pred_check
          %p296 = pneg %p62
        $region59: #{self_attention_forward.4} parent=15 // pred_check_branch
          %298 = sbr.rel (%p296) target = $region61
        $region60: #{self_attention_forward.4} parent=15 // pred_region
          %s299 = sand.u32 %s52, 1
          %s300 = sand.u32 %s52, 1
          %s301 = smul.addr %s300, 32
          %s302 = scalar_lea.vmem [#allocation3], %s301
          %s303 = smul.addr %s16, 24
          %s304 = sadd.s32 1, %s303
          %s305 = smul.addr %s304, 4
          %s306 = scalar_lea.vmem %s1, %s305
          // Predicated region
          $region62: #{self_attention_forward.4} parent=60 // pred_check
            _
          $region63: #{self_attention_forward.4} parent=60 // pred_check_branch
            %308 = sbr.rel (0) target = $region65
          $region64: #{self_attention_forward.4} parent=60 // pred_region
            // Predicated region
            $region66: #{self_attention_forward.4} parent=64 // pred_check
              _
            $region67: #{self_attention_forward.4} parent=64 // pred_check_branch
              %310 = sbr.rel target = $region69
            $region68: #{self_attention_forward.4} parent=64 // pred_region
              // Predicated region
              $region81: #{self_attention_forward.4} parent=68 // pred_check
                _
              $region82: #{self_attention_forward.4} parent=68 // pred_check_branch
                %340 = sbr.rel (0) target = $region84
              $region83: #{self_attention_forward.4} parent=68 // pred_region
                loop: start=0, step=1, limit=1
                $region85: #{self_attention_forward.4} parent=83 // loop_pre_header
                  _
                $region86: #{self_attention_forward.4} parent=83 // loop_header
                  %s342 = sphi 0, %s346
                  %p343 = scmp.ge.s32.totalorder %s342, 1
                  %s347 = sphi %s306, %s306
                  %s348 = sphi %s302, %s302
                $region87: #{self_attention_forward.4} parent=83 // loop_header_branch
                  %345 = sbr.rel (%p343) target = $region91
                $region88: #{self_attention_forward.4} parent=83 // loop_body
                  _
                $region89: #{self_attention_forward.4} parent=83 // loop_footer
                  %s346 = sadd.s32 1, %s342
                $region90: #{self_attention_forward.4} parent=83 // loop_footer_branch
                  %341 = sbr.rel target = $region86
                $region91: #{self_attention_forward.4} parent=83 // loop_exit
                  _
                %s350 = ssub.s32 16, 1
                loop: start=0, step=1, limit=1
                $region92: #{self_attention_forward.4} parent=83 // loop_pre_header
                  _
                $region93: #{self_attention_forward.4} parent=83 // loop_header
                  %s352 = sphi 0, %s356
                  %p353 = scmp.ge.s32.totalorder %s352, 1
                  %s357 = sphi %s306, %s306
                  %s358 = sphi %s302, %s302
                $region94: #{self_attention_forward.4} parent=83 // loop_header_branch
                  %355 = sbr.rel (%p353) target = $region98
                $region95: #{self_attention_forward.4} parent=83 // loop_body
                  %v359 = vld [vmem:[%s357] sm:%s350]
                  %360 = vst [vmem:[%s358] sm:%s350] %v359
                  %v361 = vld [vmem:[%s357 + $0xc] sm:%s350]
                  %362 = vst [vmem:[%s358 + $0x4] sm:%s350] %v361
                  %v363 = vld [vmem:[%s357 + $0x18] sm:%s350]
                  %364 = vst [vmem:[%s358 + $0x8] sm:%s350] %v363
                  %v365 = vld [vmem:[%s357 + $0x24] sm:%s350]
                  %366 = vst [vmem:[%s358 + $0xc] sm:%s350] %v365
                  %v367 = vld [vmem:[%s357 + $0x30] sm:%s350]
                  %368 = vst [vmem:[%s358 + $0x10] sm:%s350] %v367
                  %v369 = vld [vmem:[%s357 + $0x3c] sm:%s350]
                  %370 = vst [vmem:[%s358 + $0x14] sm:%s350] %v369
                  %v371 = vld [vmem:[%s357 + $0x48] sm:%s350]
                  %372 = vst [vmem:[%s358 + $0x18] sm:%s350] %v371
                  %v373 = vld [vmem:[%s357 + $0x54] sm:%s350]
                  %374 = vst [vmem:[%s358 + $0x1c] sm:%s350] %v373
                $region96: #{self_attention_forward.4} parent=83 // loop_footer
                  %s356 = sadd.s32 1, %s352
                $region97: #{self_attention_forward.4} parent=83 // loop_footer_branch
                  %351 = sbr.rel target = $region93
                $region98: #{self_attention_forward.4} parent=83 // loop_exit
                  _
              $region84: #{self_attention_forward.4} parent=68 // pred_fallthru
                _
            $region69: #{self_attention_forward.4} parent=64 // pred_fallthru
              _
            // Predicated region
            $region70: #{self_attention_forward.4} parent=64 // pred_check
              _
            $region71: #{self_attention_forward.4} parent=64 // pred_check_branch
              %312 = sbr.rel (0) target = $region73
            $region72: #{self_attention_forward.4} parent=64 // pred_region
              %s314 = ssub.s32 16, 1
              loop: start=0, step=1, limit=1
              $region74: #{self_attention_forward.4} parent=72 // loop_pre_header
                _
              $region75: #{self_attention_forward.4} parent=72 // loop_header
                %s316 = sphi 0, %s320
                %p317 = scmp.ge.s32.totalorder %s316, 1
                %s321 = sphi %s306, %s306
                %s322 = sphi %s302, %s302
              $region76: #{self_attention_forward.4} parent=72 // loop_header_branch
                %319 = sbr.rel (%p317) target = $region80
              $region77: #{self_attention_forward.4} parent=72 // loop_body
                %v323 = vld [vmem:[%s321] sm:%s314]
                %324 = vst [vmem:[%s322] sm:%s314] %v323
                %v325 = vld [vmem:[%s321 + $0xc] sm:%s314]
                %326 = vst [vmem:[%s322 + $0x4] sm:%s314] %v325
                %v327 = vld [vmem:[%s321 + $0x18] sm:%s314]
                %328 = vst [vmem:[%s322 + $0x8] sm:%s314] %v327
                %v329 = vld [vmem:[%s321 + $0x24] sm:%s314]
                %330 = vst [vmem:[%s322 + $0xc] sm:%s314] %v329
                %v331 = vld [vmem:[%s321 + $0x30] sm:%s314]
                %332 = vst [vmem:[%s322 + $0x10] sm:%s314] %v331
                %v333 = vld [vmem:[%s321 + $0x3c] sm:%s314]
                %334 = vst [vmem:[%s322 + $0x14] sm:%s314] %v333
                %v335 = vld [vmem:[%s321 + $0x48] sm:%s314]
                %336 = vst [vmem:[%s322 + $0x18] sm:%s314] %v335
                %v337 = vld [vmem:[%s321 + $0x54] sm:%s314]
                %338 = vst [vmem:[%s322 + $0x1c] sm:%s314] %v337
              $region78: #{self_attention_forward.4} parent=72 // loop_footer
                %s320 = sadd.s32 1, %s316
              $region79: #{self_attention_forward.4} parent=72 // loop_footer_branch
                %315 = sbr.rel target = $region75
              $region80: #{self_attention_forward.4} parent=72 // loop_exit
                _
            $region73: #{self_attention_forward.4} parent=64 // pred_fallthru
              _
          $region65: #{self_attention_forward.4} parent=60 // pred_fallthru
            _
          %375 = vnop
        $region61: #{self_attention_forward.4} parent=15 // pred_fallthru
          _
        // Predicated region
        $region99: #{self_attention_forward.4} parent=15 // pred_check
          %p376 = pneg %p88
        $region100: #{self_attention_forward.4} parent=15 // pred_check_branch
          %378 = sbr.rel (%p376) target = $region102
        $region101: #{self_attention_forward.4} parent=15 // pred_region
          %s379 = sand.u32 %s78, 1
          %s380 = sand.u32 %s78, 1
          %s381 = smul.addr %s380, 32
          %s382 = scalar_lea.vmem [#allocation4], %s381
          %s383 = smul.addr %s16, 24
          %s384 = sadd.s32 2, %s383
          %s385 = smul.addr %s384, 4
          %s386 = scalar_lea.vmem %s2, %s385
          // Predicated region
          $region103: #{self_attention_forward.4} parent=101 // pred_check
            _
          $region104: #{self_attention_forward.4} parent=101 // pred_check_branch
            %388 = sbr.rel (0) target = $region106
          $region105: #{self_attention_forward.4} parent=101 // pred_region
            // Predicated region
            $region107: #{self_attention_forward.4} parent=105 // pred_check
              _
            $region108: #{self_attention_forward.4} parent=105 // pred_check_branch
              %390 = sbr.rel target = $region110
            $region109: #{self_attention_forward.4} parent=105 // pred_region
              // Predicated region
              $region122: #{self_attention_forward.4} parent=109 // pred_check
                _
              $region123: #{self_attention_forward.4} parent=109 // pred_check_branch
                %420 = sbr.rel (0) target = $region125
              $region124: #{self_attention_forward.4} parent=109 // pred_region
                loop: start=0, step=1, limit=1
                $region126: #{self_attention_forward.4} parent=124 // loop_pre_header
                  _
                $region127: #{self_attention_forward.4} parent=124 // loop_header
                  %s422 = sphi 0, %s426
                  %p423 = scmp.ge.s32.totalorder %s422, 1
                  %s427 = sphi %s386, %s386
                  %s428 = sphi %s382, %s382
                $region128: #{self_attention_forward.4} parent=124 // loop_header_branch
                  %425 = sbr.rel (%p423) target = $region132
                $region129: #{self_attention_forward.4} parent=124 // loop_body
                  _
                $region130: #{self_attention_forward.4} parent=124 // loop_footer
                  %s426 = sadd.s32 1, %s422
                $region131: #{self_attention_forward.4} parent=124 // loop_footer_branch
                  %421 = sbr.rel target = $region127
                $region132: #{self_attention_forward.4} parent=124 // loop_exit
                  _
                %s430 = ssub.s32 16, 1
                loop: start=0, step=1, limit=1
                $region133: #{self_attention_forward.4} parent=124 // loop_pre_header
                  _
                $region134: #{self_attention_forward.4} parent=124 // loop_header
                  %s432 = sphi 0, %s436
                  %p433 = scmp.ge.s32.totalorder %s432, 1
                  %s437 = sphi %s386, %s386
                  %s438 = sphi %s382, %s382
                $region135: #{self_attention_forward.4} parent=124 // loop_header_branch
                  %435 = sbr.rel (%p433) target = $region139
                $region136: #{self_attention_forward.4} parent=124 // loop_body
                  %v439 = vld [vmem:[%s437] sm:%s430]
                  %440 = vst [vmem:[%s438] sm:%s430] %v439
                  %v441 = vld [vmem:[%s437 + $0xc] sm:%s430]
                  %442 = vst [vmem:[%s438 + $0x4] sm:%s430] %v441
                  %v443 = vld [vmem:[%s437 + $0x18] sm:%s430]
                  %444 = vst [vmem:[%s438 + $0x8] sm:%s430] %v443
                  %v445 = vld [vmem:[%s437 + $0x24] sm:%s430]
                  %446 = vst [vmem:[%s438 + $0xc] sm:%s430] %v445
                  %v447 = vld [vmem:[%s437 + $0x30] sm:%s430]
                  %448 = vst [vmem:[%s438 + $0x10] sm:%s430] %v447
                  %v449 = vld [vmem:[%s437 + $0x3c] sm:%s430]
                  %450 = vst [vmem:[%s438 + $0x14] sm:%s430] %v449
                  %v451 = vld [vmem:[%s437 + $0x48] sm:%s430]
                  %452 = vst [vmem:[%s438 + $0x18] sm:%s430] %v451
                  %v453 = vld [vmem:[%s437 + $0x54] sm:%s430]
                  %454 = vst [vmem:[%s438 + $0x1c] sm:%s430] %v453
                $region137: #{self_attention_forward.4} parent=124 // loop_footer
                  %s436 = sadd.s32 1, %s432
                $region138: #{self_attention_forward.4} parent=124 // loop_footer_branch
                  %431 = sbr.rel target = $region134
                $region139: #{self_attention_forward.4} parent=124 // loop_exit
                  _
              $region125: #{self_attention_forward.4} parent=109 // pred_fallthru
                _
            $region110: #{self_attention_forward.4} parent=105 // pred_fallthru
              _
            // Predicated region
            $region111: #{self_attention_forward.4} parent=105 // pred_check
              _
            $region112: #{self_attention_forward.4} parent=105 // pred_check_branch
              %392 = sbr.rel (0) target = $region114
            $region113: #{self_attention_forward.4} parent=105 // pred_region
              %s394 = ssub.s32 16, 1
              loop: start=0, step=1, limit=1
              $region115: #{self_attention_forward.4} parent=113 // loop_pre_header
                _
              $region116: #{self_attention_forward.4} parent=113 // loop_header
                %s396 = sphi 0, %s400
                %p397 = scmp.ge.s32.totalorder %s396, 1
                %s401 = sphi %s386, %s386
                %s402 = sphi %s382, %s382
              $region117: #{self_attention_forward.4} parent=113 // loop_header_branch
                %399 = sbr.rel (%p397) target = $region121
              $region118: #{self_attention_forward.4} parent=113 // loop_body
                %v403 = vld [vmem:[%s401] sm:%s394]
                %404 = vst [vmem:[%s402] sm:%s394] %v403
                %v405 = vld [vmem:[%s401 + $0xc] sm:%s394]
                %406 = vst [vmem:[%s402 + $0x4] sm:%s394] %v405
                %v407 = vld [vmem:[%s401 + $0x18] sm:%s394]
                %408 = vst [vmem:[%s402 + $0x8] sm:%s394] %v407
                %v409 = vld [vmem:[%s401 + $0x24] sm:%s394]
                %410 = vst [vmem:[%s402 + $0xc] sm:%s394] %v409
                %v411 = vld [vmem:[%s401 + $0x30] sm:%s394]
                %412 = vst [vmem:[%s402 + $0x10] sm:%s394] %v411
                %v413 = vld [vmem:[%s401 + $0x3c] sm:%s394]
                %414 = vst [vmem:[%s402 + $0x14] sm:%s394] %v413
                %v415 = vld [vmem:[%s401 + $0x48] sm:%s394]
                %416 = vst [vmem:[%s402 + $0x18] sm:%s394] %v415
                %v417 = vld [vmem:[%s401 + $0x54] sm:%s394]
                %418 = vst [vmem:[%s402 + $0x1c] sm:%s394] %v417
              $region119: #{self_attention_forward.4} parent=113 // loop_footer
                %s400 = sadd.s32 1, %s396
              $region120: #{self_attention_forward.4} parent=113 // loop_footer_branch
                %395 = sbr.rel target = $region116
              $region121: #{self_attention_forward.4} parent=113 // loop_exit
                _
            $region114: #{self_attention_forward.4} parent=105 // pred_fallthru
              _
          $region106: #{self_attention_forward.4} parent=101 // pred_fallthru
            _
          %455 = vnop
        $region102: #{self_attention_forward.4} parent=15 // pred_fallthru
          _
        // Predicated region
        $region140: #{self_attention_forward.4} parent=15 // pred_check
          %p456 = pneg %p114
        $region141: #{self_attention_forward.4} parent=15 // pred_check_branch
          %458 = sbr.rel (%p456) target = $region143
        $region142: #{self_attention_forward.4} parent=15 // pred_region
          %p459 = scmp.lt.s32.totalorder %s16, 1
          %s460 = scalar_select %p459, %s16, 1
          %s461 = smul.addr %s460, 8
          %s462 = scalar_lea.vmem %s3, %s461
        $region143: #{self_attention_forward.4} parent=15 // pred_fallthru
          _
        // Predicated region
        $region144: #{self_attention_forward.4} parent=15 // pred_check
          %p463 = pneg %p140
        $region145: #{self_attention_forward.4} parent=15 // pred_check_branch
          %465 = sbr.rel (%p463) target = $region147
        $region146: #{self_attention_forward.4} parent=15 // pred_region
          %p466 = scmp.lt.s32.totalorder %s16, 1
          %s467 = scalar_select %p466, %s16, 1
          %s468 = smul.addr %s467, 8
          %s469 = scalar_lea.vmem %s4, %s468
        $region147: #{self_attention_forward.4} parent=15 // pred_fallthru
          _
      $region16: #{self_attention_forward.4} parent=5 // pred_fallthru
        _
      %p470 = scmp.le.s32.totalorder 1, %s16
      %p471 = scmp.lt.s32.totalorder %s16, 3
      %p472 = pnand %p470, %p471
      %p473 = pneg %p472
      // Predicated region
      $region148: #{self_attention_forward.4} parent=5 // pred_check
        _
      $region149: #{self_attention_forward.4} parent=5 // pred_check_branch
        %475 = sbr.rel (%p472) target = $region151
      $region150: #{self_attention_forward.4} parent=5 // pred_region
        %s476 = ssub.s32 %s16, 1
        %s477 = sand.u32 %s29, 1
        %s478 = sand.u32 %s29, 1
        %s479 = smul.addr %s478, 32
        %s480 = scalar_lea.vmem [#allocation2], %s479
        // Predicated region
        $region152: #{self_attention_forward.4} parent=150 // pred_check
          %p481 = pneg %p42
        $region153: #{self_attention_forward.4} parent=150 // pred_check_branch
          %483 = sbr.rel (%p481) target = $region155
        $region154: #{self_attention_forward.4} parent=150 // pred_region
          _
        $region155: #{self_attention_forward.4} parent=150 // pred_fallthru
          _
        %s484 = sand.u32 %s55, 1
        %s485 = sand.u32 %s55, 1
        %s486 = smul.addr %s485, 32
        %s487 = scalar_lea.vmem [#allocation3], %s486
        // Predicated region
        $region156: #{self_attention_forward.4} parent=150 // pred_check
          %p488 = pneg %p68
        $region157: #{self_attention_forward.4} parent=150 // pred_check_branch
          %490 = sbr.rel (%p488) target = $region159
        $region158: #{self_attention_forward.4} parent=150 // pred_region
          _
        $region159: #{self_attention_forward.4} parent=150 // pred_fallthru
          _
        %s491 = sand.u32 %s81, 1
        %s492 = sand.u32 %s81, 1
        %s493 = smul.addr %s492, 32
        %s494 = scalar_lea.vmem [#allocation4], %s493
        // Predicated region
        $region160: #{self_attention_forward.4} parent=150 // pred_check
          %p495 = pneg %p94
        $region161: #{self_attention_forward.4} parent=150 // pred_check_branch
          %497 = sbr.rel (%p495) target = $region163
        $region162: #{self_attention_forward.4} parent=150 // pred_region
          _
        $region163: #{self_attention_forward.4} parent=150 // pred_fallthru
          _
        %s498 = sand.u32 %s29, 1
        %s499 = sand.u32 %s29, 1
        %s500 = smul.addr %s499, 32
        %s501 = scalar_lea.vmem [#allocation2], %s500
        %p502 = pneg %p42
        %p503 = pneg %p39
        %s504 = sand.u32 %s55, 1
        %s505 = sand.u32 %s55, 1
        %s506 = smul.addr %s505, 32
        %s507 = scalar_lea.vmem [#allocation3], %s506
        %p508 = pneg %p68
        %p509 = pneg %p65
        %s510 = sand.u32 %s81, 1
        %s511 = sand.u32 %s81, 1
        %s512 = smul.addr %s511, 32
        %s513 = scalar_lea.vmem [#allocation4], %s512
        %p514 = pneg %p94
        %p515 = pneg %p91
        %p516 = scmp.lt.s32.totalorder %s21, 1
        %s517 = scalar_select %p516, %s21, 1
        %s518 = smul.addr %s517, 8
        %s519 = scalar_lea.vmem %s3, %s518
        %p520 = pneg %p120
        %p521 = pneg %p117
        %p522 = scmp.lt.s32.totalorder %s21, 1
        %s523 = scalar_select %p522, %s21, 1
        %s524 = smul.addr %s523, 8
        %s525 = scalar_lea.vmem %s4, %s524
        %p526 = pneg %p146
        %p527 = pneg %p143
        %p528 = pneg %p172
        %p529 = pneg %p169
        %p530 = scmp.lt.s32.totalorder %s21, 1
        %s531 = scalar_select %p530, %s21, 1
        %s532 = smul.addr %s531, 8
        %s533 = smul.addr %s532, 4
        %s534 = scalar_lea.vmem %s5, %s533
        %p535 = pneg %p198
        %p536 = pneg %p195
        %s537 = sand.u32 %s185, 1
        %s538 = scalar_lea.sflag [#allocation6], %s537
        %s539 = sand.u32 %s185, 1
        %s540 = smul.addr %s539, 32
        %s541 = scalar_lea.vmem [#allocation5], %s540
        %p542 = scmp.lt.s32.totalorder %s21, 1
        %s543 = scalar_select %p542, %s21, 1
        %s544 = smul.addr %s543, 8
        %s545 = scalar_lea.vmem %s3, %s544
        %p546 = scmp.lt.s32.totalorder %s21, 1
        %s547 = scalar_select %p546, %s21, 1
        %s548 = smul.addr %s547, 8
        %s549 = scalar_lea.vmem %s4, %s548
        %p550 = scmp.lt.s32.totalorder %s21, 1
        %s551 = scalar_select %p550, %s21, 1
        %s552 = smul.addr %s551, 8
        %s553 = smul.addr %s552, 4
        %s554 = scalar_lea.vmem %s5, %s553
        %v555 = vld [vmem:[%s545] sm:$0xff]
        %v556 = vld [vmem:[%s549] sm:$0xff]
        %v557 = vlaneseq
        %v558 = vand.u32 %v557, 127
        %vm559 = vcmp.lt.s32.totalorder %v558, 0
        %v560 = vsub.s32 0, %v558
        %v561 = vsel %vm559, %v560, %v558
        %v562 = vshrl.u32 %v561, 1
        %v563 = vand.u32 %v561, 1
        %v564 = vsub.s32 0, %v563
        %v565 = vsel %vm559, %v564, %v563
        %vm566 = vcmp.ne.s32.totalorder %v565, 0
        %vm567 = vcmp.lt.s32.totalorder %v565, 0
        %vm568 = vmand %vm567, %vm566
        %v569 = vadd.s32 %v565, 2
        %v570 = vsel %vm568, %v569, %v565
        %v571 = vld [vmem:[%s480] sm:$0x1]
        %v572 = vld [vmem:[%s480 + $0x4] sm:$0x1]
        %v573 = vld [vmem:[%s480 + $0x8] sm:$0x1]
        %v574 = vld [vmem:[%s480 + $0xc] sm:$0x1]
        %v575 = vld [vmem:[%s480 + $0x10] sm:$0x1]
        %v576 = vld [vmem:[%s480 + $0x14] sm:$0x1]
        %v577 = vld [vmem:[%s480 + $0x18] sm:$0x1]
        %v578 = vld [vmem:[%s480 + $0x1c] sm:$0x1]
        %v587 = vrot.slane %v572, 7
        %vm588 = vcmask 1041409
        %v589 = vsel %vm588, %v587, %v571
        %v590 = vrot.slane %v573, 6
        %vm591 = vcmask 1042434
        %v592 = vsel %vm591, %v590, %v589
        %v593 = vrot.slane %v574, 5
        %vm594 = vcmask 1043459
        %v595 = vsel %vm594, %v593, %v592
        %v596 = vrot.slane %v575, 4
        %vm597 = vcmask 1044484
        %v598 = vsel %vm597, %v596, %v595
        %v599 = vrot.slane %v576, 3
        %vm600 = vcmask 1045509
        %v601 = vsel %vm600, %v599, %v598
        %v602 = vrot.slane %v577, 2
        %vm603 = vcmask 1046534
        %v604 = vsel %vm603, %v602, %v601
        %v605 = vrot.slane %v578, 1
        %vm606 = vcmask 1047559
        %v607 = vsel %vm606, %v605, %v604
        %vm609 = vcmask 1047680
        %610 = vrot.lane.b32.xlu0 %v607, 16
        %v611 = vpop.permute.xlu0 %610
        %v612 = vsel %vm609, %v611, %v607
        %613 = vrot.lane.b32.xlu0 %v612, 16
        %v614 = vpop.permute.xlu0 %613
        %v615 = vsel %vm609, %v614, %v607
        %vm616 = vcmp.eq.s32.totalorder %v570, 0
        %v617 = vsub.f32 0.0, %v615
        %619 = vrot.lane.b32.xlu0 %v617, 127
        %v620 = vpop.permute.xlu0 %619
        %623 = vrot.lane.b32.xlu0 %v615, 113
        %v624 = vpop.permute.xlu0 %623
        %v626 = vsel %vm616, %v620, %v624
        %v628 = vrot.slane %v556, 1
        %v629 = vrot.slane %v556, 2
        %v630 = vrot.slane %v556, 3
        %v631 = vrot.slane %v556, 4
        %v632 = vrot.slane %v556, 5
        %v633 = vrot.slane %v556, 6
        %v634 = vrot.slane %v556, 7
        %v643 = vmul.f32 %v571, %v556
        %v644 = vmul.f32 %v572, %v628
        %v645 = vmul.f32 %v573, %v629
        %v646 = vmul.f32 %v574, %v630
        %v647 = vmul.f32 %v575, %v631
        %v648 = vmul.f32 %v576, %v632
        %v649 = vmul.f32 %v577, %v633
        %v650 = vmul.f32 %v578, %v634
        %v651 = vmul.f32 %v626, %v555
        %v653 = vrot.slane %v651, 1
        %v654 = vrot.slane %v651, 2
        %v655 = vrot.slane %v651, 3
        %v656 = vrot.slane %v651, 4
        %v657 = vrot.slane %v651, 5
        %v658 = vrot.slane %v651, 6
        %v659 = vrot.slane %v651, 7
        %v668 = vadd.f32 %v643, %v651
        %v669 = vadd.f32 %v644, %v653
        %v670 = vadd.f32 %v645, %v654
        %v671 = vadd.f32 %v646, %v655
        %v672 = vadd.f32 %v647, %v656
        %v673 = vadd.f32 %v648, %v657
        %v674 = vadd.f32 %v649, %v658
        %v675 = vadd.f32 %v650, %v659
        %v676 = vmul.f32 %v668, 0.25
        %v677 = vmul.f32 %v669, 0.25
        %v678 = vmul.f32 %v670, 0.25
        %v679 = vmul.f32 %v671, 0.25
        %v680 = vmul.f32 %v672, 0.25
        %v681 = vmul.f32 %v673, 0.25
        %v682 = vmul.f32 %v674, 0.25
        %v683 = vmul.f32 %v675, 0.25
        %v684 = vld [vmem:[%s487] sm:$0x1]
        %v685 = vld [vmem:[%s487 + $0x4] sm:$0x1]
        %v686 = vld [vmem:[%s487 + $0x8] sm:$0x1]
        %v687 = vld [vmem:[%s487 + $0xc] sm:$0x1]
        %v688 = vld [vmem:[%s487 + $0x10] sm:$0x1]
        %v689 = vld [vmem:[%s487 + $0x14] sm:$0x1]
        %v690 = vld [vmem:[%s487 + $0x18] sm:$0x1]
        %v691 = vld [vmem:[%s487 + $0x1c] sm:$0x1]
        %v700 = vrot.slane %v685, 7
        %v701 = vsel %vm588, %v700, %v684
        %v702 = vrot.slane %v686, 6
        %v703 = vsel %vm591, %v702, %v701
        %v704 = vrot.slane %v687, 5
        %v705 = vsel %vm594, %v704, %v703
        %v706 = vrot.slane %v688, 4
        %v707 = vsel %vm597, %v706, %v705
        %v708 = vrot.slane %v689, 3
        %v709 = vsel %vm600, %v708, %v707
        %v710 = vrot.slane %v690, 2
        %v711 = vsel %vm603, %v710, %v709
        %v712 = vrot.slane %v691, 1
        %v713 = vsel %vm606, %v712, %v711
        %715 = vrot.lane.b32.xlu0 %v713, 16
        %v716 = vpop.permute.xlu0 %715
        %v717 = vsel %vm609, %v716, %v713
        %718 = vrot.lane.b32.xlu0 %v717, 16
        %v719 = vpop.permute.xlu0 %718
        %v720 = vsel %vm609, %v719, %v713
        %v721 = vsub.f32 0.0, %v720
        %723 = vrot.lane.b32.xlu0 %v721, 127
        %v724 = vpop.permute.xlu0 %723
        %727 = vrot.lane.b32.xlu0 %v720, 113
        %v728 = vpop.permute.xlu0 %727
        %v730 = vsel %vm616, %v724, %v728
        %v731 = vmul.f32 %v684, %v556
        %v732 = vmul.f32 %v685, %v628
        %v733 = vmul.f32 %v686, %v629
        %v734 = vmul.f32 %v687, %v630
        %v735 = vmul.f32 %v688, %v631
        %v736 = vmul.f32 %v689, %v632
        %v737 = vmul.f32 %v690, %v633
        %v738 = vmul.f32 %v691, %v634
        %v739 = vmul.f32 %v730, %v555
        %v741 = vrot.slane %v739, 1
        %v742 = vrot.slane %v739, 2
        %v743 = vrot.slane %v739, 3
        %v744 = vrot.slane %v739, 4
        %v745 = vrot.slane %v739, 5
        %v746 = vrot.slane %v739, 6
        %v747 = vrot.slane %v739, 7
        %v756 = vadd.f32 %v731, %v739
        %v757 = vadd.f32 %v732, %v741
        %v758 = vadd.f32 %v733, %v742
        %v759 = vadd.f32 %v734, %v743
        %v760 = vadd.f32 %v735, %v744
        %v761 = vadd.f32 %v736, %v745
        %v762 = vadd.f32 %v737, %v746
        %v763 = vadd.f32 %v738, %v747
        %v764 = vld [vmem:[%s494] sm:$0x1]
        %v765 = vld [vmem:[%s494 + $0x4] sm:$0x1]
        %v766 = vld [vmem:[%s494 + $0x8] sm:$0x1]
        %v767 = vld [vmem:[%s494 + $0xc] sm:$0x1]
        %v768 = vld [vmem:[%s494 + $0x10] sm:$0x1]
        %v769 = vld [vmem:[%s494 + $0x14] sm:$0x1]
        %v770 = vld [vmem:[%s494 + $0x18] sm:$0x1]
        %v771 = vld [vmem:[%s494 + $0x1c] sm:$0x1]
        %v780 = vrot.slane %v677, 7
        %v781 = vsel %vm588, %v780, %v676
        %v782 = vrot.slane %v678, 6
        %v783 = vsel %vm591, %v782, %v781
        %v784 = vrot.slane %v679, 5
        %v785 = vsel %vm594, %v784, %v783
        %v786 = vrot.slane %v680, 4
        %v787 = vsel %vm597, %v786, %v785
        %v788 = vrot.slane %v681, 3
        %v789 = vsel %vm600, %v788, %v787
        %v790 = vrot.slane %v682, 2
        %v791 = vsel %vm603, %v790, %v789
        %v792 = vrot.slane %v683, 1
        %v793 = vsel %vm606, %v792, %v791
        %v802 = vrot.slane %v757, 7
        %v803 = vsel %vm588, %v802, %v756
        %v804 = vrot.slane %v758, 6
        %v805 = vsel %vm591, %v804, %v803
        %v806 = vrot.slane %v759, 5
        %v807 = vsel %vm594, %v806, %v805
        %v808 = vrot.slane %v760, 4
        %v809 = vsel %vm597, %v808, %v807
        %v810 = vrot.slane %v761, 3
        %v811 = vsel %vm600, %v810, %v809
        %v812 = vrot.slane %v762, 2
        %v813 = vsel %vm603, %v812, %v811
        %v814 = vrot.slane %v763, 1
        %v815 = vsel %vm606, %v814, %v813
        %vm816 = vcmask 130048
        %v817 = vsel %vm816, %v793, 0
        %v819 = vsel %vm816, %v815, 0
        %821 = vmatprep.subr.mxu0 0.0
        %822 = vmatpush1.xpose.msra.mxu0 0.0
        %823 = vmatprep.subr.mxu0 0.0
        %824 = vmatpush1.xpose.msra.mxu0 0.0
        %825 = vmatprep.subr.mxu0 0.0
        %826 = vmatpush1.xpose.msra.mxu0 0.0
        %827 = vmatprep.subr.mxu0 0.0
        %828 = vmatpush1.xpose.msra.mxu0 0.0
        %829 = vmatprep.subr.mxu0 0.0
        %830 = vmatpush1.xpose.msra.mxu0 0.0
        %831 = vmatprep.subr.mxu0 0.0
        %832 = vmatpush1.xpose.msra.mxu0 0.0
        %833 = vmatprep.subr.mxu0 0.0
        %834 = vmatpush1.xpose.msra.mxu0 0.0
        %835 = vmatprep.subr.mxu0 0.0
        %836 = vmatpush1.xpose.msra.mxu0 0.0
        %837 = vmatprep.subr.mxu0 0.0
        %838 = vmatpush1.xpose.msra.mxu0 0.0
        %839 = vmatprep.subr.mxu0 0.0
        %840 = vmatpush1.xpose.msra.mxu0 0.0
        %841 = vmatprep.subr.mxu0 0.0
        %842 = vmatpush1.xpose.msra.mxu0 0.0
        %843 = vmatprep.subr.mxu0 0.0
        %844 = vmatpush1.xpose.msra.mxu0 0.0
        %845 = vmatprep.subr.mxu0 0.0
        %846 = vmatpush1.xpose.msra.mxu0 0.0
        %847 = vmatprep.subr.mxu0 0.0
        %848 = vmatpush1.xpose.msra.mxu0 0.0
        %849 = vmatprep.subr.mxu0 0.0
        %850 = vmatpush1.xpose.msra.mxu0 0.0
        %851 = vmatprep.subr.mxu0 0.0
        %852 = vmatpush1.xpose.msra.mxu0 %v819
        %853 = vmatprep.subr.mxu0 0.0
        %854 = vmatpush2.xpose.msra.mxu0 0.0
        %855 = vmatprep.subr.mxu0 0.0
        %856 = vmatpush2.xpose.msra.mxu0 0.0
        %857 = vmatprep.subr.mxu0 0.0
        %858 = vmatpush2.xpose.msra.mxu0 0.0
        %859 = vmatprep.subr.mxu0 0.0
        %860 = vmatpush2.xpose.msra.mxu0 0.0
        %861 = vmatprep.subr.mxu0 0.0
        %862 = vmatpush2.xpose.msra.mxu0 0.0
        %863 = vmatprep.subr.mxu0 0.0
        %864 = vmatpush2.xpose.msra.mxu0 0.0
        %865 = vmatprep.subr.mxu0 0.0
        %866 = vmatpush2.xpose.msra.mxu0 0.0
        %867 = vmatprep.subr.mxu0 0.0
        %868 = vmatpush2.xpose.msra.mxu0 0.0
        %869 = vmatprep.subr.mxu0 0.0
        %870 = vmatpush2.xpose.msra.mxu0 0.0
        %871 = vmatprep.subr.mxu0 0.0
        %872 = vmatpush2.xpose.msra.mxu0 0.0
        %873 = vmatprep.subr.mxu0 0.0
        %874 = vmatpush2.xpose.msra.mxu0 0.0
        %875 = vmatprep.subr.mxu0 0.0
        %876 = vmatpush2.xpose.msra.mxu0 0.0
        %877 = vmatprep.subr.mxu0 0.0
        %878 = vmatpush2.xpose.msra.mxu0 0.0
        %879 = vmatprep.subr.mxu0 0.0
        %880 = vmatpush2.xpose.msra.mxu0 0.0
        %881 = vmatprep.subr.mxu0 0.0
        %882 = vmatpush2.xpose.msra.mxu0 0.0
        %883 = vmatprep.subr.mxu0 0.0
        %884 = vmatpush2.xpose.msra.mxu0 0.0
        %885 = vmatprep.mubr.f32.mxu0 0.0
        %886 = vmatmul.mubr.f32.gmra.mxu0 %v817
        %v887 = vpop.f32.mrf.mxu0
        %v888 = vadd.f32 0.0, %v887
        %v889 = vpop.f32.mrf.mxu0
        %890 = vdwg.mxu0
        %vm891 = vcmask 64512
        %v892 = vsel %vm891, %v888, -inf
        %893 = vmax.xlane.f32.xlu0 %v892
        %v894 = vpop.xlane.xlu0 %893
        %v895 = vsub.f32 %v888, %v894
        %v896 = vmul.f32 %v895, 1.442695
        %v897 = vpow.pop %v896
        %v898 = vsel %vm891, %v897, 0.0
        %899 = vadd.xlane.f32.xlu0 %v898
        %v900 = vpop.xlane.xlu0 %899
        %v901 = vrcp.pop %v900
        %v902 = vmul.f32 %v897, %v901
        %903 = vst.msk [vmem:[%s541] sm:$0xff] %vm891, %v902
        %v912 = vrot.slane %v765, 7
        %v913 = vsel %vm588, %v912, %v764
        %v914 = vrot.slane %v766, 6
        %v915 = vsel %vm591, %v914, %v913
        %v916 = vrot.slane %v767, 5
        %v917 = vsel %vm594, %v916, %v915
        %v918 = vrot.slane %v768, 4
        %v919 = vsel %vm597, %v918, %v917
        %v920 = vrot.slane %v769, 3
        %v921 = vsel %vm600, %v920, %v919
        %v922 = vrot.slane %v770, 2
        %v923 = vsel %vm603, %v922, %v921
        %v924 = vrot.slane %v771, 1
        %v925 = vsel %vm606, %v924, %v923
        %v928 = vsel %vm891, %v902, 0
        %930 = vmatprep.subr.mxu0 0.0
        %931 = vmatpush1.msra.mxu0 0.0
        %932 = vmatprep.subr.mxu0 0.0
        %933 = vmatpush1.msra.mxu0 0.0
        %934 = vmatprep.subr.mxu0 0.0
        %935 = vmatpush1.msra.mxu0 0.0
        %936 = vmatprep.subr.mxu0 0.0
        %937 = vmatpush1.msra.mxu0 0.0
        %938 = vmatprep.subr.mxu0 0.0
        %939 = vmatpush1.msra.mxu0 0.0
        %940 = vmatprep.subr.mxu0 0.0
        %941 = vmatpush1.msra.mxu0 0.0
        %942 = vmatprep.subr.mxu0 0.0
        %943 = vmatpush1.msra.mxu0 0.0
        %944 = vmatprep.subr.mxu0 0.0
        %945 = vmatpush1.msra.mxu0 0.0
        %946 = vmatprep.subr.mxu0 0.0
        %947 = vmatpush1.msra.mxu0 0.0
        %948 = vmatprep.subr.mxu0 0.0
        %949 = vmatpush1.msra.mxu0 0.0
        %950 = vmatprep.subr.mxu0 0.0
        %951 = vmatpush1.msra.mxu0 0.0
        %952 = vmatprep.subr.mxu0 0.0
        %953 = vmatpush1.msra.mxu0 0.0
        %954 = vmatprep.subr.mxu0 0.0
        %955 = vmatpush1.msra.mxu0 0.0
        %956 = vmatprep.subr.mxu0 0.0
        %957 = vmatpush1.msra.mxu0 0.0
        %958 = vmatprep.subr.mxu0 0.0
        %959 = vmatpush1.msra.mxu0 0.0
        %960 = vmatprep.subr.mxu0 0.0
        %961 = vmatpush1.msra.mxu0 %v925
        %962 = vmatprep.subr.mxu0 0.0
        %963 = vmatpush2.msra.mxu0 0.0
        %964 = vmatprep.subr.mxu0 0.0
        %965 = vmatpush2.msra.mxu0 0.0
        %966 = vmatprep.subr.mxu0 0.0
        %967 = vmatpush2.msra.mxu0 0.0
        %968 = vmatprep.subr.mxu0 0.0
        %969 = vmatpush2.msra.mxu0 0.0
        %970 = vmatprep.subr.mxu0 0.0
        %971 = vmatpush2.msra.mxu0 0.0
        %972 = vmatprep.subr.mxu0 0.0
        %973 = vmatpush2.msra.mxu0 0.0
        %974 = vmatprep.subr.mxu0 0.0
        %975 = vmatpush2.msra.mxu0 0.0
        %976 = vmatprep.subr.mxu0 0.0
        %977 = vmatpush2.msra.mxu0 0.0
        %978 = vmatprep.subr.mxu0 0.0
        %979 = vmatpush2.msra.mxu0 0.0
        %980 = vmatprep.subr.mxu0 0.0
        %981 = vmatpush2.msra.mxu0 0.0
        %982 = vmatprep.subr.mxu0 0.0
        %983 = vmatpush2.msra.mxu0 0.0
        %984 = vmatprep.subr.mxu0 0.0
        %985 = vmatpush2.msra.mxu0 0.0
        %986 = vmatprep.subr.mxu0 0.0
        %987 = vmatpush2.msra.mxu0 0.0
        %988 = vmatprep.subr.mxu0 0.0
        %989 = vmatpush2.msra.mxu0 0.0
        %990 = vmatprep.subr.mxu0 0.0
        %991 = vmatpush2.msra.mxu0 0.0
        %992 = vmatprep.subr.mxu0 0.0
        %993 = vmatpush2.msra.mxu0 0.0
        %994 = vmatprep.mubr.f32.mxu0 0.0
        %995 = vmatmul.mubr.f32.gmra.mxu0 %v928
        %v996 = vpop.f32.mrf.mxu0
        %v997 = vadd.f32 0.0, %v996
        %v998 = vpop.f32.mrf.mxu0
        %999 = vdwg.mxu0
        %v1001 = vcombine.high %v997, %v997
        %v1003 = vunpack.c.l.s4 1966171168
        %v1004 = vunpack.c.0.s8 %v1003
        %v1005 = vlaneseq
        %v1006 = vshrl.u32 %v1005, 7
        %v1007 = vsub.s32 %v1004, %v1006
        %v1008 = vrot.slane %v997, %v1007
        %v1010 = vunpack.c.l.s4 1966171168
        %v1011 = vunpack.c.0.s8 %v1010
        %v1012 = vlaneseq
        %v1013 = vshrl.u32 %v1012, 7
        %v1014 = vsub.s32 %v1011, %v1013
        %v1015 = vrot.slane %v1001, %v1014
        %v1016 = vcombine.high %v1008, %v1008
        %v1017 = vcombine.high %v1015, %v1015
        %v1019 = vunpack.c.l.s4 1966171168
        %v1020 = vunpack.c.0.s8 %v1019
        %v1021 = vlaneseq
        %v1022 = vshrl.u32 %v1021, 7
        %v1023 = vsub.s32 %v1020, %v1022
        %v1024 = vrot.slane %v1008, %v1023
        %v1026 = vunpack.c.l.s4 1966171168
        %v1027 = vunpack.c.0.s8 %v1026
        %v1028 = vlaneseq
        %v1029 = vshrl.u32 %v1028, 7
        %v1030 = vsub.s32 %v1027, %v1029
        %v1031 = vrot.slane %v1015, %v1030
        %v1033 = vunpack.c.l.s4 1966171168
        %v1034 = vunpack.c.0.s8 %v1033
        %v1035 = vlaneseq
        %v1036 = vshrl.u32 %v1035, 7
        %v1037 = vsub.s32 %v1034, %v1036
        %v1038 = vrot.slane %v1016, %v1037
        %v1040 = vunpack.c.l.s4 1966171168
        %v1041 = vunpack.c.0.s8 %v1040
        %v1042 = vlaneseq
        %v1043 = vshrl.u32 %v1042, 7
        %v1044 = vsub.s32 %v1041, %v1043
        %v1045 = vrot.slane %v1017, %v1044
        %v1046 = vcombine.high %v1024, %v1024
        %v1047 = vcombine.high %v1031, %v1031
        %v1048 = vcombine.high %v1038, %v1038
        %v1049 = vcombine.high %v1045, %v1045
        %vm1058 = vcmask 122880
        %1059 = vst.msk [vmem:[%s554] sm:$0x1] %vm1058, %v1024
        %1060 = vst.msk [vmem:[%s554 + $0x4] sm:$0x1] %vm1058, %v1038
        %1061 = vst.msk [vmem:[%s554 + $0x8] sm:$0x1] %vm1058, %v1046
        %1062 = vst.msk [vmem:[%s554 + $0xc] sm:$0x1] %vm1058, %v1048
        %1063 = vst.msk [vmem:[%s554 + $0x10] sm:$0x1] %vm1058, %v1031
        %1064 = vst.msk [vmem:[%s554 + $0x14] sm:$0x1] %vm1058, %v1045
        %1065 = vst.msk [vmem:[%s554 + $0x18] sm:$0x1] %vm1058, %v1047
        %1066 = vst.msk [vmem:[%s554 + $0x1c] sm:$0x1] %vm1058, %v1049
        %v1067 = vld [vmem:[%s480 + $0x1] sm:$0x1]
        %v1068 = vld [vmem:[%s480 + $0x5] sm:$0x1]
        %v1069 = vld [vmem:[%s480 + $0x9] sm:$0x1]
        %v1070 = vld [vmem:[%s480 + $0xd] sm:$0x1]
        %v1071 = vld [vmem:[%s480 + $0x11] sm:$0x1]
        %v1072 = vld [vmem:[%s480 + $0x15] sm:$0x1]
        %v1073 = vld [vmem:[%s480 + $0x19] sm:$0x1]
        %v1074 = vld [vmem:[%s480 + $0x1d] sm:$0x1]
        %v1083 = vrot.slane %v1068, 7
        %v1084 = vsel %vm588, %v1083, %v1067
        %v1085 = vrot.slane %v1069, 6
        %v1086 = vsel %vm591, %v1085, %v1084
        %v1087 = vrot.slane %v1070, 5
        %v1088 = vsel %vm594, %v1087, %v1086
        %v1089 = vrot.slane %v1071, 4
        %v1090 = vsel %vm597, %v1089, %v1088
        %v1091 = vrot.slane %v1072, 3
        %v1092 = vsel %vm600, %v1091, %v1090
        %v1093 = vrot.slane %v1073, 2
        %v1094 = vsel %vm603, %v1093, %v1092
        %v1095 = vrot.slane %v1074, 1
        %v1096 = vsel %vm606, %v1095, %v1094
        %1098 = vrot.lane.b32.xlu0 %v1096, 16
        %v1099 = vpop.permute.xlu0 %1098
        %v1100 = vsel %vm609, %v1099, %v1096
        %1101 = vrot.lane.b32.xlu0 %v1100, 16
        %v1102 = vpop.permute.xlu0 %1101
        %v1103 = vsel %vm609, %v1102, %v1096
        %v1104 = vsub.f32 0.0, %v1103
        %1106 = vrot.lane.b32.xlu0 %v1104, 127
        %v1107 = vpop.permute.xlu0 %1106
        %1110 = vrot.lane.b32.xlu0 %v1103, 113
        %v1111 = vpop.permute.xlu0 %1110
        %v1113 = vsel %vm616, %v1107, %v1111
        %v1114 = vmul.f32 %v1067, %v556
        %v1115 = vmul.f32 %v1068, %v628
        %v1116 = vmul.f32 %v1069, %v629
        %v1117 = vmul.f32 %v1070, %v630
        %v1118 = vmul.f32 %v1071, %v631
        %v1119 = vmul.f32 %v1072, %v632
        %v1120 = vmul.f32 %v1073, %v633
        %v1121 = vmul.f32 %v1074, %v634
        %v1122 = vmul.f32 %v1113, %v555
        %v1124 = vrot.slane %v1122, 1
        %v1125 = vrot.slane %v1122, 2
        %v1126 = vrot.slane %v1122, 3
        %v1127 = vrot.slane %v1122, 4
        %v1128 = vrot.slane %v1122, 5
        %v1129 = vrot.slane %v1122, 6
        %v1130 = vrot.slane %v1122, 7
        %v1139 = vadd.f32 %v1114, %v1122
        %v1140 = vadd.f32 %v1115, %v1124
        %v1141 = vadd.f32 %v1116, %v1125
        %v1142 = vadd.f32 %v1117, %v1126
        %v1143 = vadd.f32 %v1118, %v1127
        %v1144 = vadd.f32 %v1119, %v1128
        %v1145 = vadd.f32 %v1120, %v1129
        %v1146 = vadd.f32 %v1121, %v1130
        %v1147 = vmul.f32 %v1139, 0.25
        %v1148 = vmul.f32 %v1140, 0.25
        %v1149 = vmul.f32 %v1141, 0.25
        %v1150 = vmul.f32 %v1142, 0.25
        %v1151 = vmul.f32 %v1143, 0.25
        %v1152 = vmul.f32 %v1144, 0.25
        %v1153 = vmul.f32 %v1145, 0.25
        %v1154 = vmul.f32 %v1146, 0.25
        %v1155 = vld [vmem:[%s487 + $0x1] sm:$0x1]
        %v1156 = vld [vmem:[%s487 + $0x5] sm:$0x1]
        %v1157 = vld [vmem:[%s487 + $0x9] sm:$0x1]
        %v1158 = vld [vmem:[%s487 + $0xd] sm:$0x1]
        %v1159 = vld [vmem:[%s487 + $0x11] sm:$0x1]
        %v1160 = vld [vmem:[%s487 + $0x15] sm:$0x1]
        %v1161 = vld [vmem:[%s487 + $0x19] sm:$0x1]
        %v1162 = vld [vmem:[%s487 + $0x1d] sm:$0x1]
        %v1171 = vrot.slane %v1156, 7
        %v1172 = vsel %vm588, %v1171, %v1155
        %v1173 = vrot.slane %v1157, 6
        %v1174 = vsel %vm591, %v1173, %v1172
        %v1175 = vrot.slane %v1158, 5
        %v1176 = vsel %vm594, %v1175, %v1174
        %v1177 = vrot.slane %v1159, 4
        %v1178 = vsel %vm597, %v1177, %v1176
        %v1179 = vrot.slane %v1160, 3
        %v1180 = vsel %vm600, %v1179, %v1178
        %v1181 = vrot.slane %v1161, 2
        %v1182 = vsel %vm603, %v1181, %v1180
        %v1183 = vrot.slane %v1162, 1
        %v1184 = vsel %vm606, %v1183, %v1182
        %1186 = vrot.lane.b32.xlu0 %v1184, 16
        %v1187 = vpop.permute.xlu0 %1186
        %v1188 = vsel %vm609, %v1187, %v1184
        %1189 = vrot.lane.b32.xlu0 %v1188, 16
        %v1190 = vpop.permute.xlu0 %1189
        %v1191 = vsel %vm609, %v1190, %v1184
        %v1192 = vsub.f32 0.0, %v1191
        %1194 = vrot.lane.b32.xlu0 %v1192, 127
        %v1195 = vpop.permute.xlu0 %1194
        %1198 = vrot.lane.b32.xlu0 %v1191, 113
        %v1199 = vpop.permute.xlu0 %1198
        %v1201 = vsel %vm616, %v1195, %v1199
        %v1202 = vmul.f32 %v1155, %v556
        %v1203 = vmul.f32 %v1156, %v628
        %v1204 = vmul.f32 %v1157, %v629
        %v1205 = vmul.f32 %v1158, %v630
        %v1206 = vmul.f32 %v1159, %v631
        %v1207 = vmul.f32 %v1160, %v632
        %v1208 = vmul.f32 %v1161, %v633
        %v1209 = vmul.f32 %v1162, %v634
        %v1210 = vmul.f32 %v1201, %v555
        %v1212 = vrot.slane %v1210, 1
        %v1213 = vrot.slane %v1210, 2
        %v1214 = vrot.slane %v1210, 3
        %v1215 = vrot.slane %v1210, 4
        %v1216 = vrot.slane %v1210, 5
        %v1217 = vrot.slane %v1210, 6
        %v1218 = vrot.slane %v1210, 7
        %v1227 = vadd.f32 %v1202, %v1210
        %v1228 = vadd.f32 %v1203, %v1212
        %v1229 = vadd.f32 %v1204, %v1213
        %v1230 = vadd.f32 %v1205, %v1214
        %v1231 = vadd.f32 %v1206, %v1215
        %v1232 = vadd.f32 %v1207, %v1216
        %v1233 = vadd.f32 %v1208, %v1217
        %v1234 = vadd.f32 %v1209, %v1218
        %v1235 = vld [vmem:[%s494 + $0x1] sm:$0x1]
        %v1236 = vld [vmem:[%s494 + $0x5] sm:$0x1]
        %v1237 = vld [vmem:[%s494 + $0x9] sm:$0x1]
        %v1238 = vld [vmem:[%s494 + $0xd] sm:$0x1]
        %v1239 = vld [vmem:[%s494 + $0x11] sm:$0x1]
        %v1240 = vld [vmem:[%s494 + $0x15] sm:$0x1]
        %v1241 = vld [vmem:[%s494 + $0x19] sm:$0x1]
        %v1242 = vld [vmem:[%s494 + $0x1d] sm:$0x1]
        %v1251 = vrot.slane %v1148, 7
        %v1252 = vsel %vm588, %v1251, %v1147
        %v1253 = vrot.slane %v1149, 6
        %v1254 = vsel %vm591, %v1253, %v1252
        %v1255 = vrot.slane %v1150, 5
        %v1256 = vsel %vm594, %v1255, %v1254
        %v1257 = vrot.slane %v1151, 4
        %v1258 = vsel %vm597, %v1257, %v1256
        %v1259 = vrot.slane %v1152, 3
        %v1260 = vsel %vm600, %v1259, %v1258
        %v1261 = vrot.slane %v1153, 2
        %v1262 = vsel %vm603, %v1261, %v1260
        %v1263 = vrot.slane %v1154, 1
        %v1264 = vsel %vm606, %v1263, %v1262
        %v1273 = vrot.slane %v1228, 7
        %v1274 = vsel %vm588, %v1273, %v1227
        %v1275 = vrot.slane %v1229, 6
        %v1276 = vsel %vm591, %v1275, %v1274
        %v1277 = vrot.slane %v1230, 5
        %v1278 = vsel %vm594, %v1277, %v1276
        %v1279 = vrot.slane %v1231, 4
        %v1280 = vsel %vm597, %v1279, %v1278
        %v1281 = vrot.slane %v1232, 3
        %v1282 = vsel %vm600, %v1281, %v1280
        %v1283 = vrot.slane %v1233, 2
        %v1284 = vsel %vm603, %v1283, %v1282
        %v1285 = vrot.slane %v1234, 1
        %v1286 = vsel %vm606, %v1285, %v1284
        %v1287 = vsel %vm816, %v1264, 0
        %v1289 = vsel %vm816, %v1286, 0
        %1291 = vmatprep.subr.mxu0 0.0
        %1292 = vmatpush1.xpose.msra.mxu0 0.0
        %1293 = vmatprep.subr.mxu0 0.0
        %1294 = vmatpush1.xpose.msra.mxu0 0.0
        %1295 = vmatprep.subr.mxu0 0.0
        %1296 = vmatpush1.xpose.msra.mxu0 0.0
        %1297 = vmatprep.subr.mxu0 0.0
        %1298 = vmatpush1.xpose.msra.mxu0 0.0
        %1299 = vmatprep.subr.mxu0 0.0
        %1300 = vmatpush1.xpose.msra.mxu0 0.0
        %1301 = vmatprep.subr.mxu0 0.0
        %1302 = vmatpush1.xpose.msra.mxu0 0.0
        %1303 = vmatprep.subr.mxu0 0.0
        %1304 = vmatpush1.xpose.msra.mxu0 0.0
        %1305 = vmatprep.subr.mxu0 0.0
        %1306 = vmatpush1.xpose.msra.mxu0 0.0
        %1307 = vmatprep.subr.mxu0 0.0
        %1308 = vmatpush1.xpose.msra.mxu0 0.0
        %1309 = vmatprep.subr.mxu0 0.0
        %1310 = vmatpush1.xpose.msra.mxu0 0.0
        %1311 = vmatprep.subr.mxu0 0.0
        %1312 = vmatpush1.xpose.msra.mxu0 0.0
        %1313 = vmatprep.subr.mxu0 0.0
        %1314 = vmatpush1.xpose.msra.mxu0 0.0
        %1315 = vmatprep.subr.mxu0 0.0
        %1316 = vmatpush1.xpose.msra.mxu0 0.0
        %1317 = vmatprep.subr.mxu0 0.0
        %1318 = vmatpush1.xpose.msra.mxu0 0.0
        %1319 = vmatprep.subr.mxu0 0.0
        %1320 = vmatpush1.xpose.msra.mxu0 0.0
        %1321 = vmatprep.subr.mxu0 0.0
        %1322 = vmatpush1.xpose.msra.mxu0 %v1289
        %1323 = vmatprep.subr.mxu0 0.0
        %1324 = vmatpush2.xpose.msra.mxu0 0.0
        %1325 = vmatprep.subr.mxu0 0.0
        %1326 = vmatpush2.xpose.msra.mxu0 0.0
        %1327 = vmatprep.subr.mxu0 0.0
        %1328 = vmatpush2.xpose.msra.mxu0 0.0
        %1329 = vmatprep.subr.mxu0 0.0
        %1330 = vmatpush2.xpose.msra.mxu0 0.0
        %1331 = vmatprep.subr.mxu0 0.0
        %1332 = vmatpush2.xpose.msra.mxu0 0.0
        %1333 = vmatprep.subr.mxu0 0.0
        %1334 = vmatpush2.xpose.msra.mxu0 0.0
        %1335 = vmatprep.subr.mxu0 0.0
        %1336 = vmatpush2.xpose.msra.mxu0 0.0
        %1337 = vmatprep.subr.mxu0 0.0
        %1338 = vmatpush2.xpose.msra.mxu0 0.0
        %1339 = vmatprep.subr.mxu0 0.0
        %1340 = vmatpush2.xpose.msra.mxu0 0.0
        %1341 = vmatprep.subr.mxu0 0.0
        %1342 = vmatpush2.xpose.msra.mxu0 0.0
        %1343 = vmatprep.subr.mxu0 0.0
        %1344 = vmatpush2.xpose.msra.mxu0 0.0
        %1345 = vmatprep.subr.mxu0 0.0
        %1346 = vmatpush2.xpose.msra.mxu0 0.0
        %1347 = vmatprep.subr.mxu0 0.0
        %1348 = vmatpush2.xpose.msra.mxu0 0.0
        %1349 = vmatprep.subr.mxu0 0.0
        %1350 = vmatpush2.xpose.msra.mxu0 0.0
        %1351 = vmatprep.subr.mxu0 0.0
        %1352 = vmatpush2.xpose.msra.mxu0 0.0
        %1353 = vmatprep.subr.mxu0 0.0
        %1354 = vmatpush2.xpose.msra.mxu0 0.0
        %1355 = vmatprep.mubr.f32.mxu0 0.0
        %1356 = vmatmul.mubr.f32.gmra.mxu0 %v1287
        %v1357 = vpop.f32.mrf.mxu0
        %v1358 = vadd.f32 0.0, %v1357
        %v1359 = vpop.f32.mrf.mxu0
        %1360 = vdwg.mxu0
        %v1361 = vsel %vm891, %v1358, -inf
        %1362 = vmax.xlane.f32.xlu0 %v1361
        %v1363 = vpop.xlane.xlu0 %1362
        %v1364 = vsub.f32 %v1358, %v1363
        %v1365 = vmul.f32 %v1364, 1.442695
        %v1366 = vpow.pop %v1365
        %v1367 = vsel %vm891, %v1366, 0.0
        %1368 = vadd.xlane.f32.xlu0 %v1367
        %v1369 = vpop.xlane.xlu0 %1368
        %v1370 = vrcp.pop %v1369
        %v1371 = vmul.f32 %v1366, %v1370
        %s1372 = scalar_lea.vmem %s541, 8 [#allocation5]
        %1373 = vst.msk [vmem:[%s1372] sm:$0xff] %vm891, %v1371
        %v1382 = vrot.slane %v1236, 7
        %v1383 = vsel %vm588, %v1382, %v1235
        %v1384 = vrot.slane %v1237, 6
        %v1385 = vsel %vm591, %v1384, %v1383
        %v1386 = vrot.slane %v1238, 5
        %v1387 = vsel %vm594, %v1386, %v1385
        %v1388 = vrot.slane %v1239, 4
        %v1389 = vsel %vm597, %v1388, %v1387
        %v1390 = vrot.slane %v1240, 3
        %v1391 = vsel %vm600, %v1390, %v1389
        %v1392 = vrot.slane %v1241, 2
        %v1393 = vsel %vm603, %v1392, %v1391
        %v1394 = vrot.slane %v1242, 1
        %v1395 = vsel %vm606, %v1394, %v1393
        %v1398 = vsel %vm891, %v1371, 0
        %1400 = vmatprep.subr.mxu0 0.0
        %1401 = vmatpush1.msra.mxu0 0.0
        %1402 = vmatprep.subr.mxu0 0.0
        %1403 = vmatpush1.msra.mxu0 0.0
        %1404 = vmatprep.subr.mxu0 0.0
        %1405 = vmatpush1.msra.mxu0 0.0
        %1406 = vmatprep.subr.mxu0 0.0
        %1407 = vmatpush1.msra.mxu0 0.0
        %1408 = vmatprep.subr.mxu0 0.0
        %1409 = vmatpush1.msra.mxu0 0.0
        %1410 = vmatprep.subr.mxu0 0.0
        %1411 = vmatpush1.msra.mxu0 0.0
        %1412 = vmatprep.subr.mxu0 0.0
        %1413 = vmatpush1.msra.mxu0 0.0
        %1414 = vmatprep.subr.mxu0 0.0
        %1415 = vmatpush1.msra.mxu0 0.0
        %1416 = vmatprep.subr.mxu0 0.0
        %1417 = vmatpush1.msra.mxu0 0.0
        %1418 = vmatprep.subr.mxu0 0.0
        %1419 = vmatpush1.msra.mxu0 0.0
        %1420 = vmatprep.subr.mxu0 0.0
        %1421 = vmatpush1.msra.mxu0 0.0
        %1422 = vmatprep.subr.mxu0 0.0
        %1423 = vmatpush1.msra.mxu0 0.0
        %1424 = vmatprep.subr.mxu0 0.0
        %1425 = vmatpush1.msra.mxu0 0.0
        %1426 = vmatprep.subr.mxu0 0.0
        %1427 = vmatpush1.msra.mxu0 0.0
        %1428 = vmatprep.subr.mxu0 0.0
        %1429 = vmatpush1.msra.mxu0 0.0
        %1430 = vmatprep.subr.mxu0 0.0
        %1431 = vmatpush1.msra.mxu0 %v1395
        %1432 = vmatprep.subr.mxu0 0.0
        %1433 = vmatpush2.msra.mxu0 0.0
        %1434 = vmatprep.subr.mxu0 0.0
        %1435 = vmatpush2.msra.mxu0 0.0
        %1436 = vmatprep.subr.mxu0 0.0
        %1437 = vmatpush2.msra.mxu0 0.0
        %1438 = vmatprep.subr.mxu0 0.0
        %1439 = vmatpush2.msra.mxu0 0.0
        %1440 = vmatprep.subr.mxu0 0.0
        %1441 = vmatpush2.msra.mxu0 0.0
        %1442 = vmatprep.subr.mxu0 0.0
        %1443 = vmatpush2.msra.mxu0 0.0
        %1444 = vmatprep.subr.mxu0 0.0
        %1445 = vmatpush2.msra.mxu0 0.0
        %1446 = vmatprep.subr.mxu0 0.0
        %1447 = vmatpush2.msra.mxu0 0.0
        %1448 = vmatprep.subr.mxu0 0.0
        %1449 = vmatpush2.msra.mxu0 0.0
        %1450 = vmatprep.subr.mxu0 0.0
        %1451 = vmatpush2.msra.mxu0 0.0
        %1452 = vmatprep.subr.mxu0 0.0
        %1453 = vmatpush2.msra.mxu0 0.0
        %1454 = vmatprep.subr.mxu0 0.0
        %1455 = vmatpush2.msra.mxu0 0.0
        %1456 = vmatprep.subr.mxu0 0.0
        %1457 = vmatpush2.msra.mxu0 0.0
        %1458 = vmatprep.subr.mxu0 0.0
        %1459 = vmatpush2.msra.mxu0 0.0
        %1460 = vmatprep.subr.mxu0 0.0
        %1461 = vmatpush2.msra.mxu0 0.0
        %1462 = vmatprep.subr.mxu0 0.0
        %1463 = vmatpush2.msra.mxu0 0.0
        %1464 = vmatprep.mubr.f32.mxu0 0.0
        %1465 = vmatmul.mubr.f32.gmra.mxu0 %v1398
        %v1466 = vpop.f32.mrf.mxu0
        %v1467 = vadd.f32 0.0, %v1466
        %v1468 = vpop.f32.mrf.mxu0
        %1469 = vdwg.mxu0
        %v1471 = vcombine.high %v1467, %v1467
        %v1473 = vunpack.c.l.s4 1966171168
        %v1474 = vunpack.c.0.s8 %v1473
        %v1475 = vlaneseq
        %v1476 = vshrl.u32 %v1475, 7
        %v1477 = vsub.s32 %v1474, %v1476
        %v1478 = vrot.slane %v1467, %v1477
        %v1480 = vunpack.c.l.s4 1966171168
        %v1481 = vunpack.c.0.s8 %v1480
        %v1482 = vlaneseq
        %v1483 = vshrl.u32 %v1482, 7
        %v1484 = vsub.s32 %v1481, %v1483
        %v1485 = vrot.slane %v1471, %v1484
        %v1486 = vcombine.high %v1478, %v1478
        %v1487 = vcombine.high %v1485, %v1485
        %v1489 = vunpack.c.l.s4 1966171168
        %v1490 = vunpack.c.0.s8 %v1489
        %v1491 = vlaneseq
        %v1492 = vshrl.u32 %v1491, 7
        %v1493 = vsub.s32 %v1490, %v1492
        %v1494 = vrot.slane %v1478, %v1493
        %v1496 = vunpack.c.l.s4 1966171168
        %v1497 = vunpack.c.0.s8 %v1496
        %v1498 = vlaneseq
        %v1499 = vshrl.u32 %v1498, 7
        %v1500 = vsub.s32 %v1497, %v1499
        %v1501 = vrot.slane %v1485, %v1500
        %v1503 = vunpack.c.l.s4 1966171168
        %v1504 = vunpack.c.0.s8 %v1503
        %v1505 = vlaneseq
        %v1506 = vshrl.u32 %v1505, 7
        %v1507 = vsub.s32 %v1504, %v1506
        %v1508 = vrot.slane %v1486, %v1507
        %v1510 = vunpack.c.l.s4 1966171168
        %v1511 = vunpack.c.0.s8 %v1510
        %v1512 = vlaneseq
        %v1513 = vshrl.u32 %v1512, 7
        %v1514 = vsub.s32 %v1511, %v1513
        %v1515 = vrot.slane %v1487, %v1514
        %v1516 = vcombine.high %v1494, %v1494
        %v1517 = vcombine.high %v1501, %v1501
        %v1518 = vcombine.high %v1508, %v1508
        %v1519 = vcombine.high %v1515, %v1515
        %1528 = vst.msk [vmem:[%s554 + $0x1] sm:$0x1] %vm1058, %v1494
        %1529 = vst.msk [vmem:[%s554 + $0x5] sm:$0x1] %vm1058, %v1508
        %1530 = vst.msk [vmem:[%s554 + $0x9] sm:$0x1] %vm1058, %v1516
        %1531 = vst.msk [vmem:[%s554 + $0xd] sm:$0x1] %vm1058, %v1518
        %1532 = vst.msk [vmem:[%s554 + $0x11] sm:$0x1] %vm1058, %v1501
        %1533 = vst.msk [vmem:[%s554 + $0x15] sm:$0x1] %vm1058, %v1515
        %1534 = vst.msk [vmem:[%s554 + $0x19] sm:$0x1] %vm1058, %v1517
        %1535 = vst.msk [vmem:[%s554 + $0x1d] sm:$0x1] %vm1058, %v1519
        %v1536 = vld [vmem:[%s480 + $0x2] sm:$0x1]
        %v1537 = vld [vmem:[%s480 + $0x6] sm:$0x1]
        %v1538 = vld [vmem:[%s480 + $0xa] sm:$0x1]
        %v1539 = vld [vmem:[%s480 + $0xe] sm:$0x1]
        %v1540 = vld [vmem:[%s480 + $0x12] sm:$0x1]
        %v1541 = vld [vmem:[%s480 + $0x16] sm:$0x1]
        %v1542 = vld [vmem:[%s480 + $0x1a] sm:$0x1]
        %v1543 = vld [vmem:[%s480 + $0x1e] sm:$0x1]
        %v1552 = vrot.slane %v1537, 7
        %v1553 = vsel %vm588, %v1552, %v1536
        %v1554 = vrot.slane %v1538, 6
        %v1555 = vsel %vm591, %v1554, %v1553
        %v1556 = vrot.slane %v1539, 5
        %v1557 = vsel %vm594, %v1556, %v1555
        %v1558 = vrot.slane %v1540, 4
        %v1559 = vsel %vm597, %v1558, %v1557
        %v1560 = vrot.slane %v1541, 3
        %v1561 = vsel %vm600, %v1560, %v1559
        %v1562 = vrot.slane %v1542, 2
        %v1563 = vsel %vm603, %v1562, %v1561
        %v1564 = vrot.slane %v1543, 1
        %v1565 = vsel %vm606, %v1564, %v1563
        %1567 = vrot.lane.b32.xlu0 %v1565, 16
        %v1568 = vpop.permute.xlu0 %1567
        %v1569 = vsel %vm609, %v1568, %v1565
        %1570 = vrot.lane.b32.xlu0 %v1569, 16
        %v1571 = vpop.permute.xlu0 %1570
        %v1572 = vsel %vm609, %v1571, %v1565
        %v1573 = vsub.f32 0.0, %v1572
        %1575 = vrot.lane.b32.xlu0 %v1573, 127
        %v1576 = vpop.permute.xlu0 %1575
        %1579 = vrot.lane.b32.xlu0 %v1572, 113
        %v1580 = vpop.permute.xlu0 %1579
        %v1582 = vsel %vm616, %v1576, %v1580
        %v1583 = vmul.f32 %v1536, %v556
        %v1584 = vmul.f32 %v1537, %v628
        %v1585 = vmul.f32 %v1538, %v629
        %v1586 = vmul.f32 %v1539, %v630
        %v1587 = vmul.f32 %v1540, %v631
        %v1588 = vmul.f32 %v1541, %v632
        %v1589 = vmul.f32 %v1542, %v633
        %v1590 = vmul.f32 %v1543, %v634
        %v1591 = vmul.f32 %v1582, %v555
        %v1593 = vrot.slane %v1591, 1
        %v1594 = vrot.slane %v1591, 2
        %v1595 = vrot.slane %v1591, 3
        %v1596 = vrot.slane %v1591, 4
        %v1597 = vrot.slane %v1591, 5
        %v1598 = vrot.slane %v1591, 6
        %v1599 = vrot.slane %v1591, 7
        %v1608 = vadd.f32 %v1583, %v1591
        %v1609 = vadd.f32 %v1584, %v1593
        %v1610 = vadd.f32 %v1585, %v1594
        %v1611 = vadd.f32 %v1586, %v1595
        %v1612 = vadd.f32 %v1587, %v1596
        %v1613 = vadd.f32 %v1588, %v1597
        %v1614 = vadd.f32 %v1589, %v1598
        %v1615 = vadd.f32 %v1590, %v1599
        %v1616 = vmul.f32 %v1608, 0.25
        %v1617 = vmul.f32 %v1609, 0.25
        %v1618 = vmul.f32 %v1610, 0.25
        %v1619 = vmul.f32 %v1611, 0.25
        %v1620 = vmul.f32 %v1612, 0.25
        %v1621 = vmul.f32 %v1613, 0.25
        %v1622 = vmul.f32 %v1614, 0.25
        %v1623 = vmul.f32 %v1615, 0.25
        %v1624 = vld [vmem:[%s487 + $0x2] sm:$0x1]
        %v1625 = vld [vmem:[%s487 + $0x6] sm:$0x1]
        %v1626 = vld [vmem:[%s487 + $0xa] sm:$0x1]
        %v1627 = vld [vmem:[%s487 + $0xe] sm:$0x1]
        %v1628 = vld [vmem:[%s487 + $0x12] sm:$0x1]
        %v1629 = vld [vmem:[%s487 + $0x16] sm:$0x1]
        %v1630 = vld [vmem:[%s487 + $0x1a] sm:$0x1]
        %v1631 = vld [vmem:[%s487 + $0x1e] sm:$0x1]
        %v1640 = vrot.slane %v1625, 7
        %v1641 = vsel %vm588, %v1640, %v1624
        %v1642 = vrot.slane %v1626, 6
        %v1643 = vsel %vm591, %v1642, %v1641
        %v1644 = vrot.slane %v1627, 5
        %v1645 = vsel %vm594, %v1644, %v1643
        %v1646 = vrot.slane %v1628, 4
        %v1647 = vsel %vm597, %v1646, %v1645
        %v1648 = vrot.slane %v1629, 3
        %v1649 = vsel %vm600, %v1648, %v1647
        %v1650 = vrot.slane %v1630, 2
        %v1651 = vsel %vm603, %v1650, %v1649
        %v1652 = vrot.slane %v1631, 1
        %v1653 = vsel %vm606, %v1652, %v1651
        %1655 = vrot.lane.b32.xlu0 %v1653, 16
        %v1656 = vpop.permute.xlu0 %1655
        %v1657 = vsel %vm609, %v1656, %v1653
        %1658 = vrot.lane.b32.xlu0 %v1657, 16
        %v1659 = vpop.permute.xlu0 %1658
        %v1660 = vsel %vm609, %v1659, %v1653
        %v1661 = vsub.f32 0.0, %v1660
        %1663 = vrot.lane.b32.xlu0 %v1661, 127
        %v1664 = vpop.permute.xlu0 %1663
        %1667 = vrot.lane.b32.xlu0 %v1660, 113
        %v1668 = vpop.permute.xlu0 %1667
        %v1670 = vsel %vm616, %v1664, %v1668
        %v1671 = vmul.f32 %v1624, %v556
        %v1672 = vmul.f32 %v1625, %v628
        %v1673 = vmul.f32 %v1626, %v629
        %v1674 = vmul.f32 %v1627, %v630
        %v1675 = vmul.f32 %v1628, %v631
        %v1676 = vmul.f32 %v1629, %v632
        %v1677 = vmul.f32 %v1630, %v633
        %v1678 = vmul.f32 %v1631, %v634
        %v1679 = vmul.f32 %v1670, %v555
        %v1681 = vrot.slane %v1679, 1
        %v1682 = vrot.slane %v1679, 2
        %v1683 = vrot.slane %v1679, 3
        %v1684 = vrot.slane %v1679, 4
        %v1685 = vrot.slane %v1679, 5
        %v1686 = vrot.slane %v1679, 6
        %v1687 = vrot.slane %v1679, 7
        %v1696 = vadd.f32 %v1671, %v1679
        %v1697 = vadd.f32 %v1672, %v1681
        %v1698 = vadd.f32 %v1673, %v1682
        %v1699 = vadd.f32 %v1674, %v1683
        %v1700 = vadd.f32 %v1675, %v1684
        %v1701 = vadd.f32 %v1676, %v1685
        %v1702 = vadd.f32 %v1677, %v1686
        %v1703 = vadd.f32 %v1678, %v1687
        %v1704 = vld [vmem:[%s494 + $0x2] sm:$0x1]
        %v1705 = vld [vmem:[%s494 + $0x6] sm:$0x1]
        %v1706 = vld [vmem:[%s494 + $0xa] sm:$0x1]
        %v1707 = vld [vmem:[%s494 + $0xe] sm:$0x1]
        %v1708 = vld [vmem:[%s494 + $0x12] sm:$0x1]
        %v1709 = vld [vmem:[%s494 + $0x16] sm:$0x1]
        %v1710 = vld [vmem:[%s494 + $0x1a] sm:$0x1]
        %v1711 = vld [vmem:[%s494 + $0x1e] sm:$0x1]
        %v1720 = vrot.slane %v1617, 7
        %v1721 = vsel %vm588, %v1720, %v1616
        %v1722 = vrot.slane %v1618, 6
        %v1723 = vsel %vm591, %v1722, %v1721
        %v1724 = vrot.slane %v1619, 5
        %v1725 = vsel %vm594, %v1724, %v1723
        %v1726 = vrot.slane %v1620, 4
        %v1727 = vsel %vm597, %v1726, %v1725
        %v1728 = vrot.slane %v1621, 3
        %v1729 = vsel %vm600, %v1728, %v1727
        %v1730 = vrot.slane %v1622, 2
        %v1731 = vsel %vm603, %v1730, %v1729
        %v1732 = vrot.slane %v1623, 1
        %v1733 = vsel %vm606, %v1732, %v1731
        %v1742 = vrot.slane %v1697, 7
        %v1743 = vsel %vm588, %v1742, %v1696
        %v1744 = vrot.slane %v1698, 6
        %v1745 = vsel %vm591, %v1744, %v1743
        %v1746 = vrot.slane %v1699, 5
        %v1747 = vsel %vm594, %v1746, %v1745
        %v1748 = vrot.slane %v1700, 4
        %v1749 = vsel %vm597, %v1748, %v1747
        %v1750 = vrot.slane %v1701, 3
        %v1751 = vsel %vm600, %v1750, %v1749
        %v1752 = vrot.slane %v1702, 2
        %v1753 = vsel %vm603, %v1752, %v1751
        %v1754 = vrot.slane %v1703, 1
        %v1755 = vsel %vm606, %v1754, %v1753
        %v1756 = vsel %vm816, %v1733, 0
        %v1758 = vsel %vm816, %v1755, 0
        %1760 = vmatprep.subr.mxu0 0.0
        %1761 = vmatpush1.xpose.msra.mxu0 0.0
        %1762 = vmatprep.subr.mxu0 0.0
        %1763 = vmatpush1.xpose.msra.mxu0 0.0
        %1764 = vmatprep.subr.mxu0 0.0
        %1765 = vmatpush1.xpose.msra.mxu0 0.0
        %1766 = vmatprep.subr.mxu0 0.0
        %1767 = vmatpush1.xpose.msra.mxu0 0.0
        %1768 = vmatprep.subr.mxu0 0.0
        %1769 = vmatpush1.xpose.msra.mxu0 0.0
        %1770 = vmatprep.subr.mxu0 0.0
        %1771 = vmatpush1.xpose.msra.mxu0 0.0
        %1772 = vmatprep.subr.mxu0 0.0
        %1773 = vmatpush1.xpose.msra.mxu0 0.0
        %1774 = vmatprep.subr.mxu0 0.0
        %1775 = vmatpush1.xpose.msra.mxu0 0.0
        %1776 = vmatprep.subr.mxu0 0.0
        %1777 = vmatpush1.xpose.msra.mxu0 0.0
        %1778 = vmatprep.subr.mxu0 0.0
        %1779 = vmatpush1.xpose.msra.mxu0 0.0
        %1780 = vmatprep.subr.mxu0 0.0
        %1781 = vmatpush1.xpose.msra.mxu0 0.0
        %1782 = vmatprep.subr.mxu0 0.0
        %1783 = vmatpush1.xpose.msra.mxu0 0.0
        %1784 = vmatprep.subr.mxu0 0.0
        %1785 = vmatpush1.xpose.msra.mxu0 0.0
        %1786 = vmatprep.subr.mxu0 0.0
        %1787 = vmatpush1.xpose.msra.mxu0 0.0
        %1788 = vmatprep.subr.mxu0 0.0
        %1789 = vmatpush1.xpose.msra.mxu0 0.0
        %1790 = vmatprep.subr.mxu0 0.0
        %1791 = vmatpush1.xpose.msra.mxu0 %v1758
        %1792 = vmatprep.subr.mxu0 0.0
        %1793 = vmatpush2.xpose.msra.mxu0 0.0
        %1794 = vmatprep.subr.mxu0 0.0
        %1795 = vmatpush2.xpose.msra.mxu0 0.0
        %1796 = vmatprep.subr.mxu0 0.0
        %1797 = vmatpush2.xpose.msra.mxu0 0.0
        %1798 = vmatprep.subr.mxu0 0.0
        %1799 = vmatpush2.xpose.msra.mxu0 0.0
        %1800 = vmatprep.subr.mxu0 0.0
        %1801 = vmatpush2.xpose.msra.mxu0 0.0
        %1802 = vmatprep.subr.mxu0 0.0
        %1803 = vmatpush2.xpose.msra.mxu0 0.0
        %1804 = vmatprep.subr.mxu0 0.0
        %1805 = vmatpush2.xpose.msra.mxu0 0.0
        %1806 = vmatprep.subr.mxu0 0.0
        %1807 = vmatpush2.xpose.msra.mxu0 0.0
        %1808 = vmatprep.subr.mxu0 0.0
        %1809 = vmatpush2.xpose.msra.mxu0 0.0
        %1810 = vmatprep.subr.mxu0 0.0
        %1811 = vmatpush2.xpose.msra.mxu0 0.0
        %1812 = vmatprep.subr.mxu0 0.0
        %1813 = vmatpush2.xpose.msra.mxu0 0.0
        %1814 = vmatprep.subr.mxu0 0.0
        %1815 = vmatpush2.xpose.msra.mxu0 0.0
        %1816 = vmatprep.subr.mxu0 0.0
        %1817 = vmatpush2.xpose.msra.mxu0 0.0
        %1818 = vmatprep.subr.mxu0 0.0
        %1819 = vmatpush2.xpose.msra.mxu0 0.0
        %1820 = vmatprep.subr.mxu0 0.0
        %1821 = vmatpush2.xpose.msra.mxu0 0.0
        %1822 = vmatprep.subr.mxu0 0.0
        %1823 = vmatpush2.xpose.msra.mxu0 0.0
        %1824 = vmatprep.mubr.f32.mxu0 0.0
        %1825 = vmatmul.mubr.f32.gmra.mxu0 %v1756
        %v1826 = vpop.f32.mrf.mxu0
        %v1827 = vadd.f32 0.0, %v1826
        %v1828 = vpop.f32.mrf.mxu0
        %1829 = vdwg.mxu0
        %v1830 = vsel %vm891, %v1827, -inf
        %1831 = vmax.xlane.f32.xlu0 %v1830
        %v1832 = vpop.xlane.xlu0 %1831
        %v1833 = vsub.f32 %v1827, %v1832
        %v1834 = vmul.f32 %v1833, 1.442695
        %v1835 = vpow.pop %v1834
        %v1836 = vsel %vm891, %v1835, 0.0
        %1837 = vadd.xlane.f32.xlu0 %v1836
        %v1838 = vpop.xlane.xlu0 %1837
        %v1839 = vrcp.pop %v1838
        %v1840 = vmul.f32 %v1835, %v1839
        %s1841 = scalar_lea.vmem %s541, 16 [#allocation5]
        %1842 = vst.msk [vmem:[%s1841] sm:$0xff] %vm891, %v1840
        %v1851 = vrot.slane %v1705, 7
        %v1852 = vsel %vm588, %v1851, %v1704
        %v1853 = vrot.slane %v1706, 6
        %v1854 = vsel %vm591, %v1853, %v1852
        %v1855 = vrot.slane %v1707, 5
        %v1856 = vsel %vm594, %v1855, %v1854
        %v1857 = vrot.slane %v1708, 4
        %v1858 = vsel %vm597, %v1857, %v1856
        %v1859 = vrot.slane %v1709, 3
        %v1860 = vsel %vm600, %v1859, %v1858
        %v1861 = vrot.slane %v1710, 2
        %v1862 = vsel %vm603, %v1861, %v1860
        %v1863 = vrot.slane %v1711, 1
        %v1864 = vsel %vm606, %v1863, %v1862
        %v1867 = vsel %vm891, %v1840, 0
        %1869 = vmatprep.subr.mxu0 0.0
        %1870 = vmatpush1.msra.mxu0 0.0
        %1871 = vmatprep.subr.mxu0 0.0
        %1872 = vmatpush1.msra.mxu0 0.0
        %1873 = vmatprep.subr.mxu0 0.0
        %1874 = vmatpush1.msra.mxu0 0.0
        %1875 = vmatprep.subr.mxu0 0.0
        %1876 = vmatpush1.msra.mxu0 0.0
        %1877 = vmatprep.subr.mxu0 0.0
        %1878 = vmatpush1.msra.mxu0 0.0
        %1879 = vmatprep.subr.mxu0 0.0
        %1880 = vmatpush1.msra.mxu0 0.0
        %1881 = vmatprep.subr.mxu0 0.0
        %1882 = vmatpush1.msra.mxu0 0.0
        %1883 = vmatprep.subr.mxu0 0.0
        %1884 = vmatpush1.msra.mxu0 0.0
        %1885 = vmatprep.subr.mxu0 0.0
        %1886 = vmatpush1.msra.mxu0 0.0
        %1887 = vmatprep.subr.mxu0 0.0
        %1888 = vmatpush1.msra.mxu0 0.0
        %1889 = vmatprep.subr.mxu0 0.0
        %1890 = vmatpush1.msra.mxu0 0.0
        %1891 = vmatprep.subr.mxu0 0.0
        %1892 = vmatpush1.msra.mxu0 0.0
        %1893 = vmatprep.subr.mxu0 0.0
        %1894 = vmatpush1.msra.mxu0 0.0
        %1895 = vmatprep.subr.mxu0 0.0
        %1896 = vmatpush1.msra.mxu0 0.0
        %1897 = vmatprep.subr.mxu0 0.0
        %1898 = vmatpush1.msra.mxu0 0.0
        %1899 = vmatprep.subr.mxu0 0.0
        %1900 = vmatpush1.msra.mxu0 %v1864
        %1901 = vmatprep.subr.mxu0 0.0
        %1902 = vmatpush2.msra.mxu0 0.0
        %1903 = vmatprep.subr.mxu0 0.0
        %1904 = vmatpush2.msra.mxu0 0.0
        %1905 = vmatprep.subr.mxu0 0.0
        %1906 = vmatpush2.msra.mxu0 0.0
        %1907 = vmatprep.subr.mxu0 0.0
        %1908 = vmatpush2.msra.mxu0 0.0
        %1909 = vmatprep.subr.mxu0 0.0
        %1910 = vmatpush2.msra.mxu0 0.0
        %1911 = vmatprep.subr.mxu0 0.0
        %1912 = vmatpush2.msra.mxu0 0.0
        %1913 = vmatprep.subr.mxu0 0.0
        %1914 = vmatpush2.msra.mxu0 0.0
        %1915 = vmatprep.subr.mxu0 0.0
        %1916 = vmatpush2.msra.mxu0 0.0
        %1917 = vmatprep.subr.mxu0 0.0
        %1918 = vmatpush2.msra.mxu0 0.0
        %1919 = vmatprep.subr.mxu0 0.0
        %1920 = vmatpush2.msra.mxu0 0.0
        %1921 = vmatprep.subr.mxu0 0.0
        %1922 = vmatpush2.msra.mxu0 0.0
        %1923 = vmatprep.subr.mxu0 0.0
        %1924 = vmatpush2.msra.mxu0 0.0
        %1925 = vmatprep.subr.mxu0 0.0
        %1926 = vmatpush2.msra.mxu0 0.0
        %1927 = vmatprep.subr.mxu0 0.0
        %1928 = vmatpush2.msra.mxu0 0.0
        %1929 = vmatprep.subr.mxu0 0.0
        %1930 = vmatpush2.msra.mxu0 0.0
        %1931 = vmatprep.subr.mxu0 0.0
        %1932 = vmatpush2.msra.mxu0 0.0
        %1933 = vmatprep.mubr.f32.mxu0 0.0
        %1934 = vmatmul.mubr.f32.gmra.mxu0 %v1867
        %v1935 = vpop.f32.mrf.mxu0
        %v1936 = vadd.f32 0.0, %v1935
        %v1937 = vpop.f32.mrf.mxu0
        %1938 = vdwg.mxu0
        %v1940 = vcombine.high %v1936, %v1936
        %v1942 = vunpack.c.l.s4 1966171168
        %v1943 = vunpack.c.0.s8 %v1942
        %v1944 = vlaneseq
        %v1945 = vshrl.u32 %v1944, 7
        %v1946 = vsub.s32 %v1943, %v1945
        %v1947 = vrot.slane %v1936, %v1946
        %v1949 = vunpack.c.l.s4 1966171168
        %v1950 = vunpack.c.0.s8 %v1949
        %v1951 = vlaneseq
        %v1952 = vshrl.u32 %v1951, 7
        %v1953 = vsub.s32 %v1950, %v1952
        %v1954 = vrot.slane %v1940, %v1953
        %v1955 = vcombine.high %v1947, %v1947
        %v1956 = vcombine.high %v1954, %v1954
        %v1958 = vunpack.c.l.s4 1966171168
        %v1959 = vunpack.c.0.s8 %v1958
        %v1960 = vlaneseq
        %v1961 = vshrl.u32 %v1960, 7
        %v1962 = vsub.s32 %v1959, %v1961
        %v1963 = vrot.slane %v1947, %v1962
        %v1965 = vunpack.c.l.s4 1966171168
        %v1966 = vunpack.c.0.s8 %v1965
        %v1967 = vlaneseq
        %v1968 = vshrl.u32 %v1967, 7
        %v1969 = vsub.s32 %v1966, %v1968
        %v1970 = vrot.slane %v1954, %v1969
        %v1972 = vunpack.c.l.s4 1966171168
        %v1973 = vunpack.c.0.s8 %v1972
        %v1974 = vlaneseq
        %v1975 = vshrl.u32 %v1974, 7
        %v1976 = vsub.s32 %v1973, %v1975
        %v1977 = vrot.slane %v1955, %v1976
        %v1979 = vunpack.c.l.s4 1966171168
        %v1980 = vunpack.c.0.s8 %v1979
        %v1981 = vlaneseq
        %v1982 = vshrl.u32 %v1981, 7
        %v1983 = vsub.s32 %v1980, %v1982
        %v1984 = vrot.slane %v1956, %v1983
        %v1985 = vcombine.high %v1963, %v1963
        %v1986 = vcombine.high %v1970, %v1970
        %v1987 = vcombine.high %v1977, %v1977
        %v1988 = vcombine.high %v1984, %v1984
        %1997 = vst.msk [vmem:[%s554 + $0x2] sm:$0x1] %vm1058, %v1963
        %1998 = vst.msk [vmem:[%s554 + $0x6] sm:$0x1] %vm1058, %v1977
        %1999 = vst.msk [vmem:[%s554 + $0xa] sm:$0x1] %vm1058, %v1985
        %2000 = vst.msk [vmem:[%s554 + $0xe] sm:$0x1] %vm1058, %v1987
        %2001 = vst.msk [vmem:[%s554 + $0x12] sm:$0x1] %vm1058, %v1970
        %2002 = vst.msk [vmem:[%s554 + $0x16] sm:$0x1] %vm1058, %v1984
        %2003 = vst.msk [vmem:[%s554 + $0x1a] sm:$0x1] %vm1058, %v1986
        %2004 = vst.msk [vmem:[%s554 + $0x1e] sm:$0x1] %vm1058, %v1988
        %v2005 = vld [vmem:[%s480 + $0x3] sm:$0x1]
        %v2006 = vld [vmem:[%s480 + $0x7] sm:$0x1]
        %v2007 = vld [vmem:[%s480 + $0xb] sm:$0x1]
        %v2008 = vld [vmem:[%s480 + $0xf] sm:$0x1]
        %v2009 = vld [vmem:[%s480 + $0x13] sm:$0x1]
        %v2010 = vld [vmem:[%s480 + $0x17] sm:$0x1]
        %v2011 = vld [vmem:[%s480 + $0x1b] sm:$0x1]
        %v2012 = vld [vmem:[%s480 + $0x1f] sm:$0x1]
        %v2021 = vrot.slane %v2006, 7
        %v2022 = vsel %vm588, %v2021, %v2005
        %v2023 = vrot.slane %v2007, 6
        %v2024 = vsel %vm591, %v2023, %v2022
        %v2025 = vrot.slane %v2008, 5
        %v2026 = vsel %vm594, %v2025, %v2024
        %v2027 = vrot.slane %v2009, 4
        %v2028 = vsel %vm597, %v2027, %v2026
        %v2029 = vrot.slane %v2010, 3
        %v2030 = vsel %vm600, %v2029, %v2028
        %v2031 = vrot.slane %v2011, 2
        %v2032 = vsel %vm603, %v2031, %v2030
        %v2033 = vrot.slane %v2012, 1
        %v2034 = vsel %vm606, %v2033, %v2032
        %2036 = vrot.lane.b32.xlu0 %v2034, 16
        %v2037 = vpop.permute.xlu0 %2036
        %v2038 = vsel %vm609, %v2037, %v2034
        %2039 = vrot.lane.b32.xlu0 %v2038, 16
        %v2040 = vpop.permute.xlu0 %2039
        %v2041 = vsel %vm609, %v2040, %v2034
        %v2042 = vsub.f32 0.0, %v2041
        %2044 = vrot.lane.b32.xlu0 %v2042, 127
        %v2045 = vpop.permute.xlu0 %2044
        %2048 = vrot.lane.b32.xlu0 %v2041, 113
        %v2049 = vpop.permute.xlu0 %2048
        %v2051 = vsel %vm616, %v2045, %v2049
        %v2052 = vmul.f32 %v2005, %v556
        %v2053 = vmul.f32 %v2006, %v628
        %v2054 = vmul.f32 %v2007, %v629
        %v2055 = vmul.f32 %v2008, %v630
        %v2056 = vmul.f32 %v2009, %v631
        %v2057 = vmul.f32 %v2010, %v632
        %v2058 = vmul.f32 %v2011, %v633
        %v2059 = vmul.f32 %v2012, %v634
        %v2060 = vmul.f32 %v2051, %v555
        %v2062 = vrot.slane %v2060, 1
        %v2063 = vrot.slane %v2060, 2
        %v2064 = vrot.slane %v2060, 3
        %v2065 = vrot.slane %v2060, 4
        %v2066 = vrot.slane %v2060, 5
        %v2067 = vrot.slane %v2060, 6
        %v2068 = vrot.slane %v2060, 7
        %v2077 = vadd.f32 %v2052, %v2060
        %v2078 = vadd.f32 %v2053, %v2062
        %v2079 = vadd.f32 %v2054, %v2063
        %v2080 = vadd.f32 %v2055, %v2064
        %v2081 = vadd.f32 %v2056, %v2065
        %v2082 = vadd.f32 %v2057, %v2066
        %v2083 = vadd.f32 %v2058, %v2067
        %v2084 = vadd.f32 %v2059, %v2068
        %v2085 = vmul.f32 %v2077, 0.25
        %v2086 = vmul.f32 %v2078, 0.25
        %v2087 = vmul.f32 %v2079, 0.25
        %v2088 = vmul.f32 %v2080, 0.25
        %v2089 = vmul.f32 %v2081, 0.25
        %v2090 = vmul.f32 %v2082, 0.25
        %v2091 = vmul.f32 %v2083, 0.25
        %v2092 = vmul.f32 %v2084, 0.25
        %v2093 = vld [vmem:[%s487 + $0x3] sm:$0x1]
        %v2094 = vld [vmem:[%s487 + $0x7] sm:$0x1]
        %v2095 = vld [vmem:[%s487 + $0xb] sm:$0x1]
        %v2096 = vld [vmem:[%s487 + $0xf] sm:$0x1]
        %v2097 = vld [vmem:[%s487 + $0x13] sm:$0x1]
        %v2098 = vld [vmem:[%s487 + $0x17] sm:$0x1]
        %v2099 = vld [vmem:[%s487 + $0x1b] sm:$0x1]
        %v2100 = vld [vmem:[%s487 + $0x1f] sm:$0x1]
        %v2109 = vrot.slane %v2094, 7
        %v2110 = vsel %vm588, %v2109, %v2093
        %v2111 = vrot.slane %v2095, 6
        %v2112 = vsel %vm591, %v2111, %v2110
        %v2113 = vrot.slane %v2096, 5
        %v2114 = vsel %vm594, %v2113, %v2112
        %v2115 = vrot.slane %v2097, 4
        %v2116 = vsel %vm597, %v2115, %v2114
        %v2117 = vrot.slane %v2098, 3
        %v2118 = vsel %vm600, %v2117, %v2116
        %v2119 = vrot.slane %v2099, 2
        %v2120 = vsel %vm603, %v2119, %v2118
        %v2121 = vrot.slane %v2100, 1
        %v2122 = vsel %vm606, %v2121, %v2120
        %2124 = vrot.lane.b32.xlu0 %v2122, 16
        %v2125 = vpop.permute.xlu0 %2124
        %v2126 = vsel %vm609, %v2125, %v2122
        %2127 = vrot.lane.b32.xlu0 %v2126, 16
        %v2128 = vpop.permute.xlu0 %2127
        %v2129 = vsel %vm609, %v2128, %v2122
        %v2130 = vsub.f32 0.0, %v2129
        %2132 = vrot.lane.b32.xlu0 %v2130, 127
        %v2133 = vpop.permute.xlu0 %2132
        %2136 = vrot.lane.b32.xlu0 %v2129, 113
        %v2137 = vpop.permute.xlu0 %2136
        %v2139 = vsel %vm616, %v2133, %v2137
        %v2140 = vmul.f32 %v2093, %v556
        %v2141 = vmul.f32 %v2094, %v628
        %v2142 = vmul.f32 %v2095, %v629
        %v2143 = vmul.f32 %v2096, %v630
        %v2144 = vmul.f32 %v2097, %v631
        %v2145 = vmul.f32 %v2098, %v632
        %v2146 = vmul.f32 %v2099, %v633
        %v2147 = vmul.f32 %v2100, %v634
        %v2148 = vmul.f32 %v2139, %v555
        %v2150 = vrot.slane %v2148, 1
        %v2151 = vrot.slane %v2148, 2
        %v2152 = vrot.slane %v2148, 3
        %v2153 = vrot.slane %v2148, 4
        %v2154 = vrot.slane %v2148, 5
        %v2155 = vrot.slane %v2148, 6
        %v2156 = vrot.slane %v2148, 7
        %v2165 = vadd.f32 %v2140, %v2148
        %v2166 = vadd.f32 %v2141, %v2150
        %v2167 = vadd.f32 %v2142, %v2151
        %v2168 = vadd.f32 %v2143, %v2152
        %v2169 = vadd.f32 %v2144, %v2153
        %v2170 = vadd.f32 %v2145, %v2154
        %v2171 = vadd.f32 %v2146, %v2155
        %v2172 = vadd.f32 %v2147, %v2156
        %v2173 = vld [vmem:[%s494 + $0x3] sm:$0x1]
        %v2174 = vld [vmem:[%s494 + $0x7] sm:$0x1]
        %v2175 = vld [vmem:[%s494 + $0xb] sm:$0x1]
        %v2176 = vld [vmem:[%s494 + $0xf] sm:$0x1]
        %v2177 = vld [vmem:[%s494 + $0x13] sm:$0x1]
        %v2178 = vld [vmem:[%s494 + $0x17] sm:$0x1]
        %v2179 = vld [vmem:[%s494 + $0x1b] sm:$0x1]
        %v2180 = vld [vmem:[%s494 + $0x1f] sm:$0x1]
        %v2189 = vrot.slane %v2086, 7
        %v2190 = vsel %vm588, %v2189, %v2085
        %v2191 = vrot.slane %v2087, 6
        %v2192 = vsel %vm591, %v2191, %v2190
        %v2193 = vrot.slane %v2088, 5
        %v2194 = vsel %vm594, %v2193, %v2192
        %v2195 = vrot.slane %v2089, 4
        %v2196 = vsel %vm597, %v2195, %v2194
        %v2197 = vrot.slane %v2090, 3
        %v2198 = vsel %vm600, %v2197, %v2196
        %v2199 = vrot.slane %v2091, 2
        %v2200 = vsel %vm603, %v2199, %v2198
        %v2201 = vrot.slane %v2092, 1
        %v2202 = vsel %vm606, %v2201, %v2200
        %v2211 = vrot.slane %v2166, 7
        %v2212 = vsel %vm588, %v2211, %v2165
        %v2213 = vrot.slane %v2167, 6
        %v2214 = vsel %vm591, %v2213, %v2212
        %v2215 = vrot.slane %v2168, 5
        %v2216 = vsel %vm594, %v2215, %v2214
        %v2217 = vrot.slane %v2169, 4
        %v2218 = vsel %vm597, %v2217, %v2216
        %v2219 = vrot.slane %v2170, 3
        %v2220 = vsel %vm600, %v2219, %v2218
        %v2221 = vrot.slane %v2171, 2
        %v2222 = vsel %vm603, %v2221, %v2220
        %v2223 = vrot.slane %v2172, 1
        %v2224 = vsel %vm606, %v2223, %v2222
        %v2225 = vsel %vm816, %v2202, 0
        %v2227 = vsel %vm816, %v2224, 0
        %2229 = vmatprep.subr.mxu0 0.0
        %2230 = vmatpush1.xpose.msra.mxu0 0.0
        %2231 = vmatprep.subr.mxu0 0.0
        %2232 = vmatpush1.xpose.msra.mxu0 0.0
        %2233 = vmatprep.subr.mxu0 0.0
        %2234 = vmatpush1.xpose.msra.mxu0 0.0
        %2235 = vmatprep.subr.mxu0 0.0
        %2236 = vmatpush1.xpose.msra.mxu0 0.0
        %2237 = vmatprep.subr.mxu0 0.0
        %2238 = vmatpush1.xpose.msra.mxu0 0.0
        %2239 = vmatprep.subr.mxu0 0.0
        %2240 = vmatpush1.xpose.msra.mxu0 0.0
        %2241 = vmatprep.subr.mxu0 0.0
        %2242 = vmatpush1.xpose.msra.mxu0 0.0
        %2243 = vmatprep.subr.mxu0 0.0
        %2244 = vmatpush1.xpose.msra.mxu0 0.0
        %2245 = vmatprep.subr.mxu0 0.0
        %2246 = vmatpush1.xpose.msra.mxu0 0.0
        %2247 = vmatprep.subr.mxu0 0.0
        %2248 = vmatpush1.xpose.msra.mxu0 0.0
        %2249 = vmatprep.subr.mxu0 0.0
        %2250 = vmatpush1.xpose.msra.mxu0 0.0
        %2251 = vmatprep.subr.mxu0 0.0
        %2252 = vmatpush1.xpose.msra.mxu0 0.0
        %2253 = vmatprep.subr.mxu0 0.0
        %2254 = vmatpush1.xpose.msra.mxu0 0.0
        %2255 = vmatprep.subr.mxu0 0.0
        %2256 = vmatpush1.xpose.msra.mxu0 0.0
        %2257 = vmatprep.subr.mxu0 0.0
        %2258 = vmatpush1.xpose.msra.mxu0 0.0
        %2259 = vmatprep.subr.mxu0 0.0
        %2260 = vmatpush1.xpose.msra.mxu0 %v2227
        %2261 = vmatprep.subr.mxu0 0.0
        %2262 = vmatpush2.xpose.msra.mxu0 0.0
        %2263 = vmatprep.subr.mxu0 0.0
        %2264 = vmatpush2.xpose.msra.mxu0 0.0
        %2265 = vmatprep.subr.mxu0 0.0
        %2266 = vmatpush2.xpose.msra.mxu0 0.0
        %2267 = vmatprep.subr.mxu0 0.0
        %2268 = vmatpush2.xpose.msra.mxu0 0.0
        %2269 = vmatprep.subr.mxu0 0.0
        %2270 = vmatpush2.xpose.msra.mxu0 0.0
        %2271 = vmatprep.subr.mxu0 0.0
        %2272 = vmatpush2.xpose.msra.mxu0 0.0
        %2273 = vmatprep.subr.mxu0 0.0
        %2274 = vmatpush2.xpose.msra.mxu0 0.0
        %2275 = vmatprep.subr.mxu0 0.0
        %2276 = vmatpush2.xpose.msra.mxu0 0.0
        %2277 = vmatprep.subr.mxu0 0.0
        %2278 = vmatpush2.xpose.msra.mxu0 0.0
        %2279 = vmatprep.subr.mxu0 0.0
        %2280 = vmatpush2.xpose.msra.mxu0 0.0
        %2281 = vmatprep.subr.mxu0 0.0
        %2282 = vmatpush2.xpose.msra.mxu0 0.0
        %2283 = vmatprep.subr.mxu0 0.0
        %2284 = vmatpush2.xpose.msra.mxu0 0.0
        %2285 = vmatprep.subr.mxu0 0.0
        %2286 = vmatpush2.xpose.msra.mxu0 0.0
        %2287 = vmatprep.subr.mxu0 0.0
        %2288 = vmatpush2.xpose.msra.mxu0 0.0
        %2289 = vmatprep.subr.mxu0 0.0
        %2290 = vmatpush2.xpose.msra.mxu0 0.0
        %2291 = vmatprep.subr.mxu0 0.0
        %2292 = vmatpush2.xpose.msra.mxu0 0.0
        %2293 = vmatprep.mubr.f32.mxu0 0.0
        %2294 = vmatmul.mubr.f32.gmra.mxu0 %v2225
        %v2295 = vpop.f32.mrf.mxu0
        %v2296 = vadd.f32 0.0, %v2295
        %v2297 = vpop.f32.mrf.mxu0
        %2298 = vdwg.mxu0
        %v2299 = vsel %vm891, %v2296, -inf
        %2300 = vmax.xlane.f32.xlu0 %v2299
        %v2301 = vpop.xlane.xlu0 %2300
        %v2302 = vsub.f32 %v2296, %v2301
        %v2303 = vmul.f32 %v2302, 1.442695
        %v2304 = vpow.pop %v2303
        %v2305 = vsel %vm891, %v2304, 0.0
        %2306 = vadd.xlane.f32.xlu0 %v2305
        %v2307 = vpop.xlane.xlu0 %2306
        %v2308 = vrcp.pop %v2307
        %v2309 = vmul.f32 %v2304, %v2308
        %s2310 = scalar_lea.vmem %s541, 24 [#allocation5]
        %2311 = vst.msk [vmem:[%s2310] sm:$0xff] %vm891, %v2309
        %v2320 = vrot.slane %v2174, 7
        %v2321 = vsel %vm588, %v2320, %v2173
        %v2322 = vrot.slane %v2175, 6
        %v2323 = vsel %vm591, %v2322, %v2321
        %v2324 = vrot.slane %v2176, 5
        %v2325 = vsel %vm594, %v2324, %v2323
        %v2326 = vrot.slane %v2177, 4
        %v2327 = vsel %vm597, %v2326, %v2325
        %v2328 = vrot.slane %v2178, 3
        %v2329 = vsel %vm600, %v2328, %v2327
        %v2330 = vrot.slane %v2179, 2
        %v2331 = vsel %vm603, %v2330, %v2329
        %v2332 = vrot.slane %v2180, 1
        %v2333 = vsel %vm606, %v2332, %v2331
        %v2336 = vsel %vm891, %v2309, 0
        %2338 = vmatprep.subr.mxu0 0.0
        %2339 = vmatpush1.msra.mxu0 0.0
        %2340 = vmatprep.subr.mxu0 0.0
        %2341 = vmatpush1.msra.mxu0 0.0
        %2342 = vmatprep.subr.mxu0 0.0
        %2343 = vmatpush1.msra.mxu0 0.0
        %2344 = vmatprep.subr.mxu0 0.0
        %2345 = vmatpush1.msra.mxu0 0.0
        %2346 = vmatprep.subr.mxu0 0.0
        %2347 = vmatpush1.msra.mxu0 0.0
        %2348 = vmatprep.subr.mxu0 0.0
        %2349 = vmatpush1.msra.mxu0 0.0
        %2350 = vmatprep.subr.mxu0 0.0
        %2351 = vmatpush1.msra.mxu0 0.0
        %2352 = vmatprep.subr.mxu0 0.0
        %2353 = vmatpush1.msra.mxu0 0.0
        %2354 = vmatprep.subr.mxu0 0.0
        %2355 = vmatpush1.msra.mxu0 0.0
        %2356 = vmatprep.subr.mxu0 0.0
        %2357 = vmatpush1.msra.mxu0 0.0
        %2358 = vmatprep.subr.mxu0 0.0
        %2359 = vmatpush1.msra.mxu0 0.0
        %2360 = vmatprep.subr.mxu0 0.0
        %2361 = vmatpush1.msra.mxu0 0.0
        %2362 = vmatprep.subr.mxu0 0.0
        %2363 = vmatpush1.msra.mxu0 0.0
        %2364 = vmatprep.subr.mxu0 0.0
        %2365 = vmatpush1.msra.mxu0 0.0
        %2366 = vmatprep.subr.mxu0 0.0
        %2367 = vmatpush1.msra.mxu0 0.0
        %2368 = vmatprep.subr.mxu0 0.0
        %2369 = vmatpush1.msra.mxu0 %v2333
        %2370 = vmatprep.subr.mxu0 0.0
        %2371 = vmatpush2.msra.mxu0 0.0
        %2372 = vmatprep.subr.mxu0 0.0
        %2373 = vmatpush2.msra.mxu0 0.0
        %2374 = vmatprep.subr.mxu0 0.0
        %2375 = vmatpush2.msra.mxu0 0.0
        %2376 = vmatprep.subr.mxu0 0.0
        %2377 = vmatpush2.msra.mxu0 0.0
        %2378 = vmatprep.subr.mxu0 0.0
        %2379 = vmatpush2.msra.mxu0 0.0
        %2380 = vmatprep.subr.mxu0 0.0
        %2381 = vmatpush2.msra.mxu0 0.0
        %2382 = vmatprep.subr.mxu0 0.0
        %2383 = vmatpush2.msra.mxu0 0.0
        %2384 = vmatprep.subr.mxu0 0.0
        %2385 = vmatpush2.msra.mxu0 0.0
        %2386 = vmatprep.subr.mxu0 0.0
        %2387 = vmatpush2.msra.mxu0 0.0
        %2388 = vmatprep.subr.mxu0 0.0
        %2389 = vmatpush2.msra.mxu0 0.0
        %2390 = vmatprep.subr.mxu0 0.0
        %2391 = vmatpush2.msra.mxu0 0.0
        %2392 = vmatprep.subr.mxu0 0.0
        %2393 = vmatpush2.msra.mxu0 0.0
        %2394 = vmatprep.subr.mxu0 0.0
        %2395 = vmatpush2.msra.mxu0 0.0
        %2396 = vmatprep.subr.mxu0 0.0
        %2397 = vmatpush2.msra.mxu0 0.0
        %2398 = vmatprep.subr.mxu0 0.0
        %2399 = vmatpush2.msra.mxu0 0.0
        %2400 = vmatprep.subr.mxu0 0.0
        %2401 = vmatpush2.msra.mxu0 0.0
        %2402 = vmatprep.mubr.f32.mxu0 0.0
        %2403 = vmatmul.mubr.f32.gmra.mxu0 %v2336
        %v2404 = vpop.f32.mrf.mxu0
        %v2405 = vadd.f32 0.0, %v2404
        %v2406 = vpop.f32.mrf.mxu0
        %2407 = vdwg.mxu0
        %v2409 = vcombine.high %v2405, %v2405
        %v2411 = vunpack.c.l.s4 1966171168
        %v2412 = vunpack.c.0.s8 %v2411
        %v2413 = vlaneseq
        %v2414 = vshrl.u32 %v2413, 7
        %v2415 = vsub.s32 %v2412, %v2414
        %v2416 = vrot.slane %v2405, %v2415
        %v2418 = vunpack.c.l.s4 1966171168
        %v2419 = vunpack.c.0.s8 %v2418
        %v2420 = vlaneseq
        %v2421 = vshrl.u32 %v2420, 7
        %v2422 = vsub.s32 %v2419, %v2421
        %v2423 = vrot.slane %v2409, %v2422
        %v2424 = vcombine.high %v2416, %v2416
        %v2425 = vcombine.high %v2423, %v2423
        %v2427 = vunpack.c.l.s4 1966171168
        %v2428 = vunpack.c.0.s8 %v2427
        %v2429 = vlaneseq
        %v2430 = vshrl.u32 %v2429, 7
        %v2431 = vsub.s32 %v2428, %v2430
        %v2432 = vrot.slane %v2416, %v2431
        %v2434 = vunpack.c.l.s4 1966171168
        %v2435 = vunpack.c.0.s8 %v2434
        %v2436 = vlaneseq
        %v2437 = vshrl.u32 %v2436, 7
        %v2438 = vsub.s32 %v2435, %v2437
        %v2439 = vrot.slane %v2423, %v2438
        %v2441 = vunpack.c.l.s4 1966171168
        %v2442 = vunpack.c.0.s8 %v2441
        %v2443 = vlaneseq
        %v2444 = vshrl.u32 %v2443, 7
        %v2445 = vsub.s32 %v2442, %v2444
        %v2446 = vrot.slane %v2424, %v2445
        %v2448 = vunpack.c.l.s4 1966171168
        %v2449 = vunpack.c.0.s8 %v2448
        %v2450 = vlaneseq
        %v2451 = vshrl.u32 %v2450, 7
        %v2452 = vsub.s32 %v2449, %v2451
        %v2453 = vrot.slane %v2425, %v2452
        %v2454 = vcombine.high %v2432, %v2432
        %v2455 = vcombine.high %v2439, %v2439
        %v2456 = vcombine.high %v2446, %v2446
        %v2457 = vcombine.high %v2453, %v2453
        %2466 = vst.msk [vmem:[%s554 + $0x3] sm:$0x1] %vm1058, %v2432
        %2467 = vst.msk [vmem:[%s554 + $0x7] sm:$0x1] %vm1058, %v2446
        %2468 = vst.msk [vmem:[%s554 + $0xb] sm:$0x1] %vm1058, %v2454
        %2469 = vst.msk [vmem:[%s554 + $0xf] sm:$0x1] %vm1058, %v2456
        %2470 = vst.msk [vmem:[%s554 + $0x13] sm:$0x1] %vm1058, %v2439
        %2471 = vst.msk [vmem:[%s554 + $0x17] sm:$0x1] %vm1058, %v2453
        %2472 = vst.msk [vmem:[%s554 + $0x1b] sm:$0x1] %vm1058, %v2455
        %2473 = vst.msk [vmem:[%s554 + $0x1f] sm:$0x1] %vm1058, %v2457
        %p2474 = scmp.lt.s32.totalorder %s21, 1
        %s2475 = scalar_select %p2474, %s21, 1
        %s2476 = smul.addr %s2475, 8
        %s2477 = smul.addr %s2476, 4
        %s2478 = scalar_lea.vmem %s5, %s2477
        %s2479 = sand.u32 %s185, 1
        %s2480 = scalar_lea.sflag [#allocation6], %s2479
        %s2481 = sand.u32 %s185, 1
        %s2482 = smul.addr %s2481, 32
        %s2483 = scalar_lea.vmem [#allocation5], %s2482
        // Predicated region
        $region164: #{self_attention_forward.4} parent=150 // pred_check
          %p2484 = pneg %p169
        $region165: #{self_attention_forward.4} parent=150 // pred_check_branch
          %2486 = sbr.rel (%p2484) target = $region167
        $region166: #{self_attention_forward.4} parent=150 // pred_region
          _
        $region167: #{self_attention_forward.4} parent=150 // pred_fallthru
          _
        // Predicated region
        $region168: #{self_attention_forward.4} parent=150 // pred_check
          %p2487 = pneg %p195
        $region169: #{self_attention_forward.4} parent=150 // pred_check_branch
          %2489 = sbr.rel (%p2487) target = $region171
        $region170: #{self_attention_forward.4} parent=150 // pred_region
          %s2491 = ssub.s32 512, 512
          %2492 = vsyncadd %s2480, %s2491
          %s2493 = smul.addr %s21, 4
          %s2494 = smul.addr %s2493, 128
          %s2495 = scalar_lea.hbm %s6, %s2494
          %s2496 = sshll.u32 %s2483, 4
          %s2497 = int_to_ptr.vmem [resolvable:$true] %s2496
          %2502 = dma.vmem_to_hbm [thread:$0]  %s2497, 512, %s2495, %s2480, 128, 128, 8
        $region171: #{self_attention_forward.4} parent=150 // pred_fallthru
          _
      $region151: #{self_attention_forward.4} parent=5 // pred_fallthru
        _
      %p2503 = scmp.le.s32.totalorder 2, %s16
      // Predicated region
      $region172: #{self_attention_forward.4} parent=5 // pred_check
        %p2504 = pneg %p2503
      $region173: #{self_attention_forward.4} parent=5 // pred_check_branch
        %2506 = sbr.rel (%p2504) target = $region175
      $region174: #{self_attention_forward.4} parent=5 // pred_region
        %s2507 = ssub.s32 %s16, 2
        // Predicated region
        $region176: #{self_attention_forward.4} parent=174 // pred_check
          %p2508 = pneg %p175
        $region177: #{self_attention_forward.4} parent=174 // pred_check_branch
          %2510 = sbr.rel (%p2508) target = $region179
        $region178: #{self_attention_forward.4} parent=174 // pred_region
          %p2511 = scmp.lt.s32.totalorder %s22, 1
          %s2512 = scalar_select %p2511, %s22, 1
          %s2513 = smul.addr %s2512, 8
          %s2514 = smul.addr %s2513, 4
          %s2515 = scalar_lea.vmem %s5, %s2514
        $region179: #{self_attention_forward.4} parent=174 // pred_fallthru
          _
        // Predicated region
        $region180: #{self_attention_forward.4} parent=174 // pred_check
          %p2516 = pneg %p201
        $region181: #{self_attention_forward.4} parent=174 // pred_check_branch
          %2518 = sbr.rel (%p2516) target = $region183
        $region182: #{self_attention_forward.4} parent=174 // pred_region
          %s2519 = sand.u32 %s186, 1
          %s2520 = scalar_lea.sflag [#allocation6], %s2519
          %s2521 = sand.u32 %s186, 1
          %s2522 = smul.addr %s2521, 32
          %s2523 = scalar_lea.vmem [#allocation5], %s2522
          %2524 = dma.done %s2520, 512
        $region183: #{self_attention_forward.4} parent=174 // pred_fallthru
          _
      $region175: #{self_attention_forward.4} parent=5 // pred_fallthru
        _
    $region6: #{self_attention_forward.4} parent=1 // loop_footer
      %s20 = sadd.s32 1, %s16
    $region7: #{self_attention_forward.4} parent=1 // loop_footer_branch
      %15 = sbr.rel target = $region3
    $region8: #{self_attention_forward.4} parent=1 // loop_exit
      _
    %2525 = vsyncpa [#allocation6], 1
    %s2526 = scalar_lea.sflag [#allocation6], 1
    %2527 = vsyncpa %s2526, 1

</llo_original>
